<compile_context>
chip_gen: v6e
topology: v6e:2x2x1
jax: 0.10.0
libtpu: 0.0.40
codegen_flags: <defaults>
</compile_context>

<pallas_src>
import jax
import jax.numpy as jnp
from jax.experimental import pallas as pl
from jax.experimental.pallas import tpu as pltpu


# ----------------------------- model dims ---------------------------------
V_IN = 16     # encoder (input) vocab size
V_OUT = 16    # decoder (output) vocab size
EMB = 32      # embedding dim
HID = 32      # LSTM hidden dim
T_IN = 8      # input sequence length
T_OUT = 8     # output sequence length
G4 = 4 * HID  # gate width (i,f,g,o)


def _lstm_combine(gates, c):
    """LSTM nonlinearities (PyTorch gate order i,f,g,o) and cell update.

    `gates` is the (1, 4H) pre-activation computed with the g-gate columns
    PRE-DOUBLED in the weights, so tanh(g_pre) == 2*sigmoid(gates_g) - 1.
    One full-width sigmoid (EUP) + one narrow tanh(c_new) per step.
    """
    sg = jax.nn.sigmoid(gates)
    i = sg[:, 0 * HID:1 * HID]
    f = sg[:, 1 * HID:2 * HID]
    g = 2.0 * sg[:, 2 * HID:3 * HID] - 1.0      # == tanh(original g preact)
    o = sg[:, 3 * HID:4 * HID]
    c_new = f * c + i * g
    h_new = o * jnp.tanh(c_new)
    return h_new, c_new


# --------------------------- fused seq2seq kernel ---------------------------
def seq2seq_kernel(in_tok_ref,     # (T_IN, 1)  int32 encoder tokens
                   enc_fused_ref,  # (V_IN, 4H)  enc_emb@Wih + b, g-cols x2
                   enc_whh_ref,    # (HID, 4H)   g-cols x2
                   out_tok_ref,    # (T_OUT, 1) int32 (only row 0 used)
                   dec_fused_ref,  # (V_OUT, 4H) dec_emb@Wih + b, g-cols x2
                   dec_hcat_ref,   # (HID, 4H+V_OUT) [Whh (g-cols x2) | Wout]
                   dec_bout_ref,   # (1, V_OUT)
                   out_ref):       # (T_OUT, V_OUT) log-probs
    t_in = in_tok_ref.shape[0]
    t_out = out_ref.shape[0]

    # ---------------- encoder ----------------
    # One-hot the tokens in-kernel and do ONE (T_IN, V_IN) @ (V_IN, 4H) MXU
    # matmul for the input-gate contribution of ALL timesteps (embedding and
    # bias already folded into enc_fused at param-prep time).
    col_in = jax.lax.broadcasted_iota(jnp.int32, (t_in, V_IN), 1)
    onehot_in = (in_tok_ref[...] == col_in).astype(jnp.float32)
    x_pre = jnp.dot(onehot_in, enc_fused_ref[...],
                    preferred_element_type=jnp.float32)

    enc_whh = enc_whh_ref[...]
    h = jnp.zeros((1, HID), jnp.float32)
    c = jnp.zeros((1, HID), jnp.float32)
    for t in range(t_in):                               # static unroll
        gates = x_pre[t:t + 1, :] + jnp.dot(
            h, enc_whh, preferred_element_type=jnp.float32)
        h, c = _lstm_combine(gates, c)

    # ---------------- decoder ----------------
    # p_tf = 0  ->  greedy feedback after step 0, deterministic.
    dec_fused = dec_fused_ref[...]   # (V_OUT, 4H), bias folded, g-cols x2
    dec_hcat = dec_hcat_ref[...]     # (HID, 4H + V_OUT)
    bout = dec_bout_ref[...]

    col_out = jax.lax.broadcasted_iota(jnp.int32, (1, V_OUT), 1)
    oh = (out_tok_ref[0:1, :] == col_out).astype(jnp.float32)   # (1, V_OUT)

    # h @ [Whh | Wout]: columns 0:4H feed the NEXT step's gates, columns
    # 4H: are this step's logits.  Prime with the encoder-final h.
    hw = jnp.dot(h, dec_hcat, preferred_element_type=jnp.float32)

    for t in range(t_out):                              # static unroll
        gates = jnp.dot(oh, dec_fused,
                        preferred_element_type=jnp.float32) + hw[:, :G4]
        h, c = _lstm_combine(gates, c)

        hw = jnp.dot(h, dec_hcat, preferred_element_type=jnp.float32)
        logits = hw[:, G4:] + bout                      # (1, V_OUT)

        m = jnp.max(logits, axis=-1, keepdims=True)
        if t + 1 < t_out:
            # greedy argmax feedback; single XLU reduce (m) reused.
            # Exact float ties (prob ~0) would make this multi-hot.
            oh = (logits == m).astype(jnp.float32)

        # log-softmax (off the feedback critical path)
        lse = m + jnp.log(jnp.sum(jnp.exp(logits - m), axis=-1, keepdims=True))
        out_ref[t:t + 1, :] = logits - lse              # direct row store


# --------------------------- param preparation -------------------------------
def _double_g_cols(w):
    """Scale the g-gate (third quarter) columns of a (*, 4H) weight by 2."""
    return w.at[..., 2 * HID:3 * HID].multiply(2.0)


def prepare_params(p):
    """Param-only precomputation, done ONCE (not per forward call)."""
    enc_fused = _double_g_cols(
        jnp.dot(p["enc_emb"], p["enc_wih_t"],
                preferred_element_type=jnp.float32) + p["enc_b"])
    enc_whh = _double_g_cols(p["enc_whh_t"])
    dec_fused = _double_g_cols(
        jnp.dot(p["dec_emb"], p["dec_wih_t"],
                preferred_element_type=jnp.float32) + p["dec_b"])
    dec_hcat = jnp.concatenate(
        [_double_g_cols(p["dec_whh_t"]), p["dec_wout_t"]], axis=1)
    return {
        "enc_fused": enc_fused.astype(jnp.float32),   # (V_IN, 4H)
        "enc_whh": enc_whh.astype(jnp.float32),       # (HID, 4H)
        "dec_fused": dec_fused.astype(jnp.float32),   # (V_OUT, 4H)
        "dec_hcat": dec_hcat.astype(jnp.float32),     # (HID, 4H + V_OUT)
        "dec_bout": p["dec_bout"].astype(jnp.float32),
    }


# ------------------------------ wrapper -------------------------------------
@jax.jit
def seq2seq_forward(prep, input_seq, output_seq):
    """Seq2seq.forward with p_tf = 0. Returns (T_out, V_OUT) log-probs."""
    t_out = output_seq.shape[0]
    in_tok = input_seq.reshape(-1, 1).astype(jnp.int32)
    out_tok = output_seq.reshape(-1, 1).astype(jnp.int32)

    vmem = pl.BlockSpec(memory_space=pltpu.MemorySpace.VMEM)
    return pl.pallas_call(
        seq2seq_kernel,
        out_shape=jax.ShapeDtypeStruct((t_out, V_OUT), jnp.float32),
        in_specs=[vmem] * 7,
        out_specs=vmem,
    )(in_tok, prep["enc_fused"], prep["enc_whh"],
      out_tok, prep["dec_fused"], prep["dec_hcat"], prep["dec_bout"])


# --------------------------- pure-JAX reference ------------------------------
def seq2seq_reference(params, input_seq, output_seq):
    def cell(x, h, c, wih_t, whh_t, b):
        g = x @ wih_t + h @ whh_t + b
        i = jax.nn.sigmoid(g[:, :HID])
        f = jax.nn.sigmoid(g[:, HID:2 * HID])
        gg = jnp.tanh(g[:, 2 * HID:3 * HID])
        o = jax.nn.sigmoid(g[:, 3 * HID:4 * HID])
        c = f * c + i * gg
        return o * jnp.tanh(c), c

    h = jnp.zeros((1, HID), jnp.float32)
    c = jnp.zeros((1, HID), jnp.float32)
    for tok in input_seq:
        x = params["enc_emb"][tok].reshape(1, EMB)
        h, c = cell(x, h, c, params["enc_wih_t"], params["enc_whh_t"],
                    params["enc_b"])

    outs = []
    tok = int(output_seq[0])
    for i in range(output_seq.shape[0]):
        x = params["dec_emb"][tok].reshape(1, EMB)
        h, c = cell(x, h, c, params["dec_wih_t"], params["dec_whh_t"],
                    params["dec_b"])
        logits = h @ params["dec_wout_t"] + params["dec_bout"]
        logp = logits - jax.scipy.special.logsumexp(logits, axis=-1,
                                                    keepdims=True)
        outs.append(logp[0])
        tok = int(jnp.argmax(logits))
    return jnp.stack(outs)


# ------------------------------- main ----------------------------------------
if __name__ == "__main__":
    key = jax.random.PRNGKey(0)
    ks = jax.random.split(key, 12)
    s = 0.1
    params = {
        # encoder: Embedding(V_IN, EMB) + LSTM(EMB, HID)
        "enc_emb":    s * jax.random.normal(ks[0], (V_IN, EMB), jnp.float32),
        "enc_wih_t":  s * jax.random.normal(ks[1], (EMB, 4 * HID), jnp.float32),
        "enc_whh_t":  s * jax.random.normal(ks[2], (HID, 4 * HID), jnp.float32),
        "enc_b":      s * jax.random.normal(ks[3], (1, 4 * HID), jnp.float32),
        # decoder: Embedding(V_OUT, EMB) + LSTM(EMB, HID) + Linear(HID, V_OUT)
        "dec_emb":    s * jax.random.normal(ks[4], (V_OUT, EMB), jnp.float32),
        "dec_wih_t":  s * jax.random.normal(ks[5], (EMB, 4 * HID), jnp.float32),
        "dec_whh_t":  s * jax.random.normal(ks[6], (HID, 4 * HID), jnp.float32),
        "dec_b":      s * jax.random.normal(ks[7], (1, 4 * HID), jnp.float32),
        "dec_wout_t": s * jax.random.normal(ks[8], (HID, V_OUT), jnp.float32),
        "dec_bout":   s * jax.random.normal(ks[9], (1, V_OUT), jnp.float32),
    }

    input_seq = jax.random.randint(ks[10], (T_IN,), 0, V_IN, dtype=jnp.int32)
    output_seq = jax.random.randint(ks[11], (T_OUT,), 0, V_OUT, dtype=jnp.int32)

    prep = prepare_params(params)          # one-time param-only precompute

    out = seq2seq_forward(prep, input_seq, output_seq)
    out = jax.block_until_ready(out)
    assert out.shape == (T_OUT, V_OUT), out.shape

    ref = seq2seq_reference(params, input_seq, output_seq)
    assert jnp.allclose(out, ref, rtol=1e-4, atol=1e-4), (
        float(jnp.max(jnp.abs(out - ref))))

    print("KERNEL_OK")
</pallas_src>

<mosaic_0001>
module attributes {stable_mosaic.version = 11 : i64} {
  func.func @seq2seq_kernel(%arg0: memref<8x1xi32, #tpu.memory_space<vmem>>, %arg1: memref<16x128xf32, #tpu.memory_space<vmem>>, %arg2: memref<32x128xf32, #tpu.memory_space<vmem>>, %arg3: memref<8x1xi32, #tpu.memory_space<vmem>>, %arg4: memref<16x128xf32, #tpu.memory_space<vmem>>, %arg5: memref<32x144xf32, #tpu.memory_space<vmem>>, %arg6: memref<1x16xf32, #tpu.memory_space<vmem>>, %arg7: memref<8x16xf32, #tpu.memory_space<vmem>>) attributes {dimension_semantics = [], scalar_prefetch = 0 : i64, scratch_operands = 0 : i64, tpu.core_type = #tpu.core_type<tc>} {
    %0 = tpu.iota {dimensions = array<i32: 1>} : vector<8x16xi32>
    %c0 = arith.constant 0 : index
    %c0_0 = arith.constant 0 : index
    %1 = vector.load %arg0[%c0, %c0_0] : memref<8x1xi32, #tpu.memory_space<vmem>>, vector<8x1xi32>
    %2 = vector.broadcast %1 : vector<8x1xi32> to vector<8x16xi32>
    %3 = arith.cmpi eq, %2, %0 : vector<8x16xi32>
    %4 = arith.extui %3 : vector<8x16xi1> to vector<8x16xi32>
    %5 = arith.sitofp %4 : vector<8x16xi32> to vector<8x16xf32>
    %c0_1 = arith.constant 0 : index
    %c0_2 = arith.constant 0 : index
    %6 = vector.load %arg1[%c0_1, %c0_2] : memref<16x128xf32, #tpu.memory_space<vmem>>, vector<16x128xf32>
    %cst = arith.constant dense<0.000000e+00> : vector<8x128xf32>
    %7 = tpu.matmul %5, %6, %cst {dimension_numbers = #tpu.dot_dimension_numbers<[1], [0], [0], [1], [0, 0, 1, 1], [], []>} : vector<8x16xf32>, vector<16x128xf32>, vector<8x128xf32> -> vector<8x128xf32>
    %c0_3 = arith.constant 0 : index
    %c0_4 = arith.constant 0 : index
    %8 = vector.load %arg2[%c0_3, %c0_4] : memref<32x128xf32, #tpu.memory_space<vmem>>, vector<32x128xf32>
    %cst_5 = arith.constant 0.000000e+00 : f32
    %9 = vector.broadcast %cst_5 : f32 to vector<1x32xf32>
    %cst_6 = arith.constant 0.000000e+00 : f32
    %10 = vector.broadcast %cst_6 : f32 to vector<1x32xf32>
    %11 = vector.extract_strided_slice %7 {offsets = [0, 0], sizes = [1, 128], strides = [1, 1]} : vector<8x128xf32> to vector<1x128xf32>
    %cst_7 = arith.constant dense<0.000000e+00> : vector<1x128xf32>
    %12 = tpu.matmul %9, %8, %cst_7 {dimension_numbers = #tpu.dot_dimension_numbers<[1], [0], [0], [1], [0, 0, 1, 1], [], []>} : vector<1x32xf32>, vector<32x128xf32>, vector<1x128xf32> -> vector<1x128xf32>
    %13 = arith.addf %11, %12 : vector<1x128xf32>
    %14 = arith.negf %13 : vector<1x128xf32>
    %15 = math.exp %14 : vector<1x128xf32>
    %cst_8 = arith.constant 1.000000e+00 : f32
    %16 = vector.broadcast %cst_8 : f32 to vector<1x128xf32>
    %17 = arith.addf %16, %15 : vector<1x128xf32>
    %18 = arith.divf %16, %17 : vector<1x128xf32>
    %19 = vector.extract_strided_slice %18 {offsets = [0, 0], sizes = [1, 32], strides = [1, 1]} : vector<1x128xf32> to vector<1x32xf32>
    %20 = vector.extract_strided_slice %18 {offsets = [0, 32], sizes = [1, 32], strides = [1, 1]} : vector<1x128xf32> to vector<1x32xf32>
    %21 = vector.extract_strided_slice %18 {offsets = [0, 64], sizes = [1, 32], strides = [1, 1]} : vector<1x128xf32> to vector<1x32xf32>
    %cst_9 = arith.constant 2.000000e+00 : f32
    %22 = vector.broadcast %cst_9 : f32 to vector<1x32xf32>
    %23 = arith.mulf %22, %21 : vector<1x32xf32>
    %cst_10 = arith.constant 1.000000e+00 : f32
    %24 = vector.broadcast %cst_10 : f32 to vector<1x32xf32>
    %25 = arith.subf %23, %24 : vector<1x32xf32>
    %26 = vector.extract_strided_slice %18 {offsets = [0, 96], sizes = [1, 32], strides = [1, 1]} : vector<1x128xf32> to vector<1x32xf32>
    %27 = arith.mulf %20, %10 : vector<1x32xf32>
    %28 = arith.mulf %19, %25 : vector<1x32xf32>
    %29 = arith.addf %27, %28 : vector<1x32xf32>
    %30 = math.tanh %29 : vector<1x32xf32>
    %31 = arith.mulf %26, %30 : vector<1x32xf32>
    %32 = vector.extract_strided_slice %7 {offsets = [1, 0], sizes = [1, 128], strides = [1, 1]} : vector<8x128xf32> to vector<1x128xf32>
    %cst_11 = arith.constant dense<0.000000e+00> : vector<1x128xf32>
    %33 = tpu.matmul %31, %8, %cst_11 {dimension_numbers = #tpu.dot_dimension_numbers<[1], [0], [0], [1], [0, 0, 1, 1], [], []>} : vector<1x32xf32>, vector<32x128xf32>, vector<1x128xf32> -> vector<1x128xf32>
    %34 = arith.addf %32, %33 : vector<1x128xf32>
    %35 = arith.negf %34 : vector<1x128xf32>
    %36 = math.exp %35 : vector<1x128xf32>
    %cst_12 = arith.constant 1.000000e+00 : f32
    %37 = vector.broadcast %cst_12 : f32 to vector<1x128xf32>
    %38 = arith.addf %37, %36 : vector<1x128xf32>
    %39 = arith.divf %37, %38 : vector<1x128xf32>
    %40 = vector.extract_strided_slice %39 {offsets = [0, 0], sizes = [1, 32], strides = [1, 1]} : vector<1x128xf32> to vector<1x32xf32>
    %41 = vector.extract_strided_slice %39 {offsets = [0, 32], sizes = [1, 32], strides = [1, 1]} : vector<1x128xf32> to vector<1x32xf32>
    %42 = vector.extract_strided_slice %39 {offsets = [0, 64], sizes = [1, 32], strides = [1, 1]} : vector<1x128xf32> to vector<1x32xf32>
    %cst_13 = arith.constant 2.000000e+00 : f32
    %43 = vector.broadcast %cst_13 : f32 to vector<1x32xf32>
    %44 = arith.mulf %43, %42 : vector<1x32xf32>
    %cst_14 = arith.constant 1.000000e+00 : f32
    %45 = vector.broadcast %cst_14 : f32 to vector<1x32xf32>
    %46 = arith.subf %44, %45 : vector<1x32xf32>
    %47 = vector.extract_strided_slice %39 {offsets = [0, 96], sizes = [1, 32], strides = [1, 1]} : vector<1x128xf32> to vector<1x32xf32>
    %48 = arith.mulf %41, %29 : vector<1x32xf32>
    %49 = arith.mulf %40, %46 : vector<1x32xf32>
    %50 = arith.addf %48, %49 : vector<1x32xf32>
    %51 = math.tanh %50 : vector<1x32xf32>
    %52 = arith.mulf %47, %51 : vector<1x32xf32>
    %53 = vector.extract_strided_slice %7 {offsets = [2, 0], sizes = [1, 128], strides = [1, 1]} : vector<8x128xf32> to vector<1x128xf32>
    %cst_15 = arith.constant dense<0.000000e+00> : vector<1x128xf32>
    %54 = tpu.matmul %52, %8, %cst_15 {dimension_numbers = #tpu.dot_dimension_numbers<[1], [0], [0], [1], [0, 0, 1, 1], [], []>} : vector<1x32xf32>, vector<32x128xf32>, vector<1x128xf32> -> vector<1x128xf32>
    %55 = arith.addf %53, %54 : vector<1x128xf32>
    %56 = arith.negf %55 : vector<1x128xf32>
    %57 = math.exp %56 : vector<1x128xf32>
    %cst_16 = arith.constant 1.000000e+00 : f32
    %58 = vector.broadcast %cst_16 : f32 to vector<1x128xf32>
    %59 = arith.addf %58, %57 : vector<1x128xf32>
    %60 = arith.divf %58, %59 : vector<1x128xf32>
    %61 = vector.extract_strided_slice %60 {offsets = [0, 0], sizes = [1, 32], strides = [1, 1]} : vector<1x128xf32> to vector<1x32xf32>
    %62 = vector.extract_strided_slice %60 {offsets = [0, 32], sizes = [1, 32], strides = [1, 1]} : vector<1x128xf32> to vector<1x32xf32>
    %63 = vector.extract_strided_slice %60 {offsets = [0, 64], sizes = [1, 32], strides = [1, 1]} : vector<1x128xf32> to vector<1x32xf32>
    %cst_17 = arith.constant 2.000000e+00 : f32
    %64 = vector.broadcast %cst_17 : f32 to vector<1x32xf32>
    %65 = arith.mulf %64, %63 : vector<1x32xf32>
    %cst_18 = arith.constant 1.000000e+00 : f32
    %66 = vector.broadcast %cst_18 : f32 to vector<1x32xf32>
    %67 = arith.subf %65, %66 : vector<1x32xf32>
    %68 = vector.extract_strided_slice %60 {offsets = [0, 96], sizes = [1, 32], strides = [1, 1]} : vector<1x128xf32> to vector<1x32xf32>
    %69 = arith.mulf %62, %50 : vector<1x32xf32>
    %70 = arith.mulf %61, %67 : vector<1x32xf32>
    %71 = arith.addf %69, %70 : vector<1x32xf32>
    %72 = math.tanh %71 : vector<1x32xf32>
    %73 = arith.mulf %68, %72 : vector<1x32xf32>
    %74 = vector.extract_strided_slice %7 {offsets = [3, 0], sizes = [1, 128], strides = [1, 1]} : vector<8x128xf32> to vector<1x128xf32>
    %cst_19 = arith.constant dense<0.000000e+00> : vector<1x128xf32>
    %75 = tpu.matmul %73, %8, %cst_19 {dimension_numbers = #tpu.dot_dimension_numbers<[1], [0], [0], [1], [0, 0, 1, 1], [], []>} : vector<1x32xf32>, vector<32x128xf32>, vector<1x128xf32> -> vector<1x128xf32>
    %76 = arith.addf %74, %75 : vector<1x128xf32>
    %77 = arith.negf %76 : vector<1x128xf32>
    %78 = math.exp %77 : vector<1x128xf32>
    %cst_20 = arith.constant 1.000000e+00 : f32
    %79 = vector.broadcast %cst_20 : f32 to vector<1x128xf32>
    %80 = arith.addf %79, %78 : vector<1x128xf32>
    %81 = arith.divf %79, %80 : vector<1x128xf32>
    %82 = vector.extract_strided_slice %81 {offsets = [0, 0], sizes = [1, 32], strides = [1, 1]} : vector<1x128xf32> to vector<1x32xf32>
    %83 = vector.extract_strided_slice %81 {offsets = [0, 32], sizes = [1, 32], strides = [1, 1]} : vector<1x128xf32> to vector<1x32xf32>
    %84 = vector.extract_strided_slice %81 {offsets = [0, 64], sizes = [1, 32], strides = [1, 1]} : vector<1x128xf32> to vector<1x32xf32>
    %cst_21 = arith.constant 2.000000e+00 : f32
    %85 = vector.broadcast %cst_21 : f32 to vector<1x32xf32>
    %86 = arith.mulf %85, %84 : vector<1x32xf32>
    %cst_22 = arith.constant 1.000000e+00 : f32
    %87 = vector.broadcast %cst_22 : f32 to vector<1x32xf32>
    %88 = arith.subf %86, %87 : vector<1x32xf32>
    %89 = vector.extract_strided_slice %81 {offsets = [0, 96], sizes = [1, 32], strides = [1, 1]} : vector<1x128xf32> to vector<1x32xf32>
    %90 = arith.mulf %83, %71 : vector<1x32xf32>
    %91 = arith.mulf %82, %88 : vector<1x32xf32>
    %92 = arith.addf %90, %91 : vector<1x32xf32>
    %93 = math.tanh %92 : vector<1x32xf32>
    %94 = arith.mulf %89, %93 : vector<1x32xf32>
    %95 = vector.extract_strided_slice %7 {offsets = [4, 0], sizes = [1, 128], strides = [1, 1]} : vector<8x128xf32> to vector<1x128xf32>
    %cst_23 = arith.constant dense<0.000000e+00> : vector<1x128xf32>
    %96 = tpu.matmul %94, %8, %cst_23 {dimension_numbers = #tpu.dot_dimension_numbers<[1], [0], [0], [1], [0, 0, 1, 1], [], []>} : vector<1x32xf32>, vector<32x128xf32>, vector<1x128xf32> -> vector<1x128xf32>
    %97 = arith.addf %95, %96 : vector<1x128xf32>
    %98 = arith.negf %97 : vector<1x128xf32>
    %99 = math.exp %98 : vector<1x128xf32>
    %cst_24 = arith.constant 1.000000e+00 : f32
    %100 = vector.broadcast %cst_24 : f32 to vector<1x128xf32>
    %101 = arith.addf %100, %99 : vector<1x128xf32>
    %102 = arith.divf %100, %101 : vector<1x128xf32>
    %103 = vector.extract_strided_slice %102 {offsets = [0, 0], sizes = [1, 32], strides = [1, 1]} : vector<1x128xf32> to vector<1x32xf32>
    %104 = vector.extract_strided_slice %102 {offsets = [0, 32], sizes = [1, 32], strides = [1, 1]} : vector<1x128xf32> to vector<1x32xf32>
    %105 = vector.extract_strided_slice %102 {offsets = [0, 64], sizes = [1, 32], strides = [1, 1]} : vector<1x128xf32> to vector<1x32xf32>
    %cst_25 = arith.constant 2.000000e+00 : f32
    %106 = vector.broadcast %cst_25 : f32 to vector<1x32xf32>
    %107 = arith.mulf %106, %105 : vector<1x32xf32>
    %cst_26 = arith.constant 1.000000e+00 : f32
    %108 = vector.broadcast %cst_26 : f32 to vector<1x32xf32>
    %109 = arith.subf %107, %108 : vector<1x32xf32>
    %110 = vector.extract_strided_slice %102 {offsets = [0, 96], sizes = [1, 32], strides = [1, 1]} : vector<1x128xf32> to vector<1x32xf32>
    %111 = arith.mulf %104, %92 : vector<1x32xf32>
    %112 = arith.mulf %103, %109 : vector<1x32xf32>
    %113 = arith.addf %111, %112 : vector<1x32xf32>
    %114 = math.tanh %113 : vector<1x32xf32>
    %115 = arith.mulf %110, %114 : vector<1x32xf32>
    %116 = vector.extract_strided_slice %7 {offsets = [5, 0], sizes = [1, 128], strides = [1, 1]} : vector<8x128xf32> to vector<1x128xf32>
    %cst_27 = arith.constant dense<0.000000e+00> : vector<1x128xf32>
    %117 = tpu.matmul %115, %8, %cst_27 {dimension_numbers = #tpu.dot_dimension_numbers<[1], [0], [0], [1], [0, 0, 1, 1], [], []>} : vector<1x32xf32>, vector<32x128xf32>, vector<1x128xf32> -> vector<1x128xf32>
    %118 = arith.addf %116, %117 : vector<1x128xf32>
    %119 = arith.negf %118 : vector<1x128xf32>
    %120 = math.exp %119 : vector<1x128xf32>
    %cst_28 = arith.constant 1.000000e+00 : f32
    %121 = vector.broadcast %cst_28 : f32 to vector<1x128xf32>
    %122 = arith.addf %121, %120 : vector<1x128xf32>
    %123 = arith.divf %121, %122 : vector<1x128xf32>
    %124 = vector.extract_strided_slice %123 {offsets = [0, 0], sizes = [1, 32], strides = [1, 1]} : vector<1x128xf32> to vector<1x32xf32>
    %125 = vector.extract_strided_slice %123 {offsets = [0, 32], sizes = [1, 32], strides = [1, 1]} : vector<1x128xf32> to vector<1x32xf32>
    %126 = vector.extract_strided_slice %123 {offsets = [0, 64], sizes = [1, 32], strides = [1, 1]} : vector<1x128xf32> to vector<1x32xf32>
    %cst_29 = arith.constant 2.000000e+00 : f32
    %127 = vector.broadcast %cst_29 : f32 to vector<1x32xf32>
    %128 = arith.mulf %127, %126 : vector<1x32xf32>
    %cst_30 = arith.constant 1.000000e+00 : f32
    %129 = vector.broadcast %cst_30 : f32 to vector<1x32xf32>
    %130 = arith.subf %128, %129 : vector<1x32xf32>
    %131 = vector.extract_strided_slice %123 {offsets = [0, 96], sizes = [1, 32], strides = [1, 1]} : vector<1x128xf32> to vector<1x32xf32>
    %132 = arith.mulf %125, %113 : vector<1x32xf32>
    %133 = arith.mulf %124, %130 : vector<1x32xf32>
    %134 = arith.addf %132, %133 : vector<1x32xf32>
    %135 = math.tanh %134 : vector<1x32xf32>
    %136 = arith.mulf %131, %135 : vector<1x32xf32>
    %137 = vector.extract_strided_slice %7 {offsets = [6, 0], sizes = [1, 128], strides = [1, 1]} : vector<8x128xf32> to vector<1x128xf32>
    %cst_31 = arith.constant dense<0.000000e+00> : vector<1x128xf32>
    %138 = tpu.matmul %136, %8, %cst_31 {dimension_numbers = #tpu.dot_dimension_numbers<[1], [0], [0], [1], [0, 0, 1, 1], [], []>} : vector<1x32xf32>, vector<32x128xf32>, vector<1x128xf32> -> vector<1x128xf32>
    %139 = arith.addf %137, %138 : vector<1x128xf32>
    %140 = arith.negf %139 : vector<1x128xf32>
    %141 = math.exp %140 : vector<1x128xf32>
    %cst_32 = arith.constant 1.000000e+00 : f32
    %142 = vector.broadcast %cst_32 : f32 to vector<1x128xf32>
    %143 = arith.addf %142, %141 : vector<1x128xf32>
    %144 = arith.divf %142, %143 : vector<1x128xf32>
    %145 = vector.extract_strided_slice %144 {offsets = [0, 0], sizes = [1, 32], strides = [1, 1]} : vector<1x128xf32> to vector<1x32xf32>
    %146 = vector.extract_strided_slice %144 {offsets = [0, 32], sizes = [1, 32], strides = [1, 1]} : vector<1x128xf32> to vector<1x32xf32>
    %147 = vector.extract_strided_slice %144 {offsets = [0, 64], sizes = [1, 32], strides = [1, 1]} : vector<1x128xf32> to vector<1x32xf32>
    %cst_33 = arith.constant 2.000000e+00 : f32
    %148 = vector.broadcast %cst_33 : f32 to vector<1x32xf32>
    %149 = arith.mulf %148, %147 : vector<1x32xf32>
    %cst_34 = arith.constant 1.000000e+00 : f32
    %150 = vector.broadcast %cst_34 : f32 to vector<1x32xf32>
    %151 = arith.subf %149, %150 : vector<1x32xf32>
    %152 = vector.extract_strided_slice %144 {offsets = [0, 96], sizes = [1, 32], strides = [1, 1]} : vector<1x128xf32> to vector<1x32xf32>
    %153 = arith.mulf %146, %134 : vector<1x32xf32>
    %154 = arith.mulf %145, %151 : vector<1x32xf32>
    %155 = arith.addf %153, %154 : vector<1x32xf32>
    %156 = math.tanh %155 : vector<1x32xf32>
    %157 = arith.mulf %152, %156 : vector<1x32xf32>
    %158 = vector.extract_strided_slice %7 {offsets = [7, 0], sizes = [1, 128], strides = [1, 1]} : vector<8x128xf32> to vector<1x128xf32>
    %cst_35 = arith.constant dense<0.000000e+00> : vector<1x128xf32>
    %159 = tpu.matmul %157, %8, %cst_35 {dimension_numbers = #tpu.dot_dimension_numbers<[1], [0], [0], [1], [0, 0, 1, 1], [], []>} : vector<1x32xf32>, vector<32x128xf32>, vector<1x128xf32> -> vector<1x128xf32>
    %160 = arith.addf %158, %159 : vector<1x128xf32>
    %161 = arith.negf %160 : vector<1x128xf32>
    %162 = math.exp %161 : vector<1x128xf32>
    %cst_36 = arith.constant 1.000000e+00 : f32
    %163 = vector.broadcast %cst_36 : f32 to vector<1x128xf32>
    %164 = arith.addf %163, %162 : vector<1x128xf32>
    %165 = arith.divf %163, %164 : vector<1x128xf32>
    %166 = vector.extract_strided_slice %165 {offsets = [0, 0], sizes = [1, 32], strides = [1, 1]} : vector<1x128xf32> to vector<1x32xf32>
    %167 = vector.extract_strided_slice %165 {offsets = [0, 32], sizes = [1, 32], strides = [1, 1]} : vector<1x128xf32> to vector<1x32xf32>
    %168 = vector.extract_strided_slice %165 {offsets = [0, 64], sizes = [1, 32], strides = [1, 1]} : vector<1x128xf32> to vector<1x32xf32>
    %cst_37 = arith.constant 2.000000e+00 : f32
    %169 = vector.broadcast %cst_37 : f32 to vector<1x32xf32>
    %170 = arith.mulf %169, %168 : vector<1x32xf32>
    %cst_38 = arith.constant 1.000000e+00 : f32
    %171 = vector.broadcast %cst_38 : f32 to vector<1x32xf32>
    %172 = arith.subf %170, %171 : vector<1x32xf32>
    %173 = vector.extract_strided_slice %165 {offsets = [0, 96], sizes = [1, 32], strides = [1, 1]} : vector<1x128xf32> to vector<1x32xf32>
    %174 = arith.mulf %167, %155 : vector<1x32xf32>
    %175 = arith.mulf %166, %172 : vector<1x32xf32>
    %176 = arith.addf %174, %175 : vector<1x32xf32>
    %177 = math.tanh %176 : vector<1x32xf32>
    %178 = arith.mulf %173, %177 : vector<1x32xf32>
    %c0_39 = arith.constant 0 : index
    %c0_40 = arith.constant 0 : index
    %179 = vector.load %arg4[%c0_39, %c0_40] : memref<16x128xf32, #tpu.memory_space<vmem>>, vector<16x128xf32>
    %c0_41 = arith.constant 0 : index
    %c0_42 = arith.constant 0 : index
    %180 = vector.load %arg5[%c0_41, %c0_42] : memref<32x144xf32, #tpu.memory_space<vmem>>, vector<32x144xf32>
    %c0_43 = arith.constant 0 : index
    %c0_44 = arith.constant 0 : index
    %181 = vector.load %arg6[%c0_43, %c0_44] : memref<1x16xf32, #tpu.memory_space<vmem>>, vector<1x16xf32>
    %182 = tpu.iota {dimensions = array<i32: 1>} : vector<1x16xi32>
    %c0_45 = arith.constant 0 : index
    %c0_46 = arith.constant 0 : index
    %183 = vector.load %arg3[%c0_45, %c0_46] : memref<8x1xi32, #tpu.memory_space<vmem>>, vector<1x1xi32>
    %184 = vector.broadcast %183 : vector<1x1xi32> to vector<1x16xi32>
    %185 = arith.cmpi eq, %184, %182 : vector<1x16xi32>
    %186 = arith.extui %185 : vector<1x16xi1> to vector<1x16xi32>
    %187 = arith.sitofp %186 : vector<1x16xi32> to vector<1x16xf32>
    %cst_47 = arith.constant dense<0.000000e+00> : vector<1x144xf32>
    %188 = tpu.matmul %178, %180, %cst_47 {dimension_numbers = #tpu.dot_dimension_numbers<[1], [0], [0], [1], [0, 0, 1, 1], [], []>} : vector<1x32xf32>, vector<32x144xf32>, vector<1x144xf32> -> vector<1x144xf32>
    %cst_48 = arith.constant dense<0.000000e+00> : vector<1x128xf32>
    %189 = tpu.matmul %187, %179, %cst_48 {dimension_numbers = #tpu.dot_dimension_numbers<[1], [0], [0], [1], [0, 0, 1, 1], [], []>} : vector<1x16xf32>, vector<16x128xf32>, vector<1x128xf32> -> vector<1x128xf32>
    %190 = vector.extract_strided_slice %188 {offsets = [0, 0], sizes = [1, 128], strides = [1, 1]} : vector<1x144xf32> to vector<1x128xf32>
    %191 = arith.addf %189, %190 : vector<1x128xf32>
    %192 = arith.negf %191 : vector<1x128xf32>
    %193 = math.exp %192 : vector<1x128xf32>
    %cst_49 = arith.constant 1.000000e+00 : f32
    %194 = vector.broadcast %cst_49 : f32 to vector<1x128xf32>
    %195 = arith.addf %194, %193 : vector<1x128xf32>
    %196 = arith.divf %194, %195 : vector<1x128xf32>
    %197 = vector.extract_strided_slice %196 {offsets = [0, 0], sizes = [1, 32], strides = [1, 1]} : vector<1x128xf32> to vector<1x32xf32>
    %198 = vector.extract_strided_slice %196 {offsets = [0, 32], sizes = [1, 32], strides = [1, 1]} : vector<1x128xf32> to vector<1x32xf32>
    %199 = vector.extract_strided_slice %196 {offsets = [0, 64], sizes = [1, 32], strides = [1, 1]} : vector<1x128xf32> to vector<1x32xf32>
    %cst_50 = arith.constant 2.000000e+00 : f32
    %200 = vector.broadcast %cst_50 : f32 to vector<1x32xf32>
    %201 = arith.mulf %200, %199 : vector<1x32xf32>
    %cst_51 = arith.constant 1.000000e+00 : f32
    %202 = vector.broadcast %cst_51 : f32 to vector<1x32xf32>
    %203 = arith.subf %201, %202 : vector<1x32xf32>
    %204 = vector.extract_strided_slice %196 {offsets = [0, 96], sizes = [1, 32], strides = [1, 1]} : vector<1x128xf32> to vector<1x32xf32>
    %205 = arith.mulf %198, %176 : vector<1x32xf32>
    %206 = arith.mulf %197, %203 : vector<1x32xf32>
    %207 = arith.addf %205, %206 : vector<1x32xf32>
    %208 = math.tanh %207 : vector<1x32xf32>
    %209 = arith.mulf %204, %208 : vector<1x32xf32>
    %cst_52 = arith.constant dense<0.000000e+00> : vector<1x144xf32>
    %210 = tpu.matmul %209, %180, %cst_52 {dimension_numbers = #tpu.dot_dimension_numbers<[1], [0], [0], [1], [0, 0, 1, 1], [], []>} : vector<1x32xf32>, vector<32x144xf32>, vector<1x144xf32> -> vector<1x144xf32>
    %211 = vector.extract_strided_slice %210 {offsets = [0, 128], sizes = [1, 16], strides = [1, 1]} : vector<1x144xf32> to vector<1x16xf32>
    %212 = arith.addf %211, %181 : vector<1x16xf32>
    %cst_53 = arith.constant dense<0xFF800000> : vector<1xf32>
    %213 = vector.multi_reduction <maximumf>, %212, %cst_53 [1] : vector<1x16xf32> to vector<1xf32>
    %214 = vector.shape_cast %213 : vector<1xf32> to vector<1x1xf32>
    %215 = vector.broadcast %214 : vector<1x1xf32> to vector<1x16xf32>
    %216 = arith.cmpf oeq, %212, %215 : vector<1x16xf32>
    %217 = arith.extui %216 : vector<1x16xi1> to vector<1x16xi32>
    %218 = arith.sitofp %217 : vector<1x16xi32> to vector<1x16xf32>
    %219 = vector.broadcast %214 : vector<1x1xf32> to vector<1x16xf32>
    %220 = arith.subf %212, %219 : vector<1x16xf32>
    %221 = math.exp %220 : vector<1x16xf32>
    %cst_54 = arith.constant dense<0.000000e+00> : vector<1xf32>
    %222 = vector.multi_reduction <add>, %221, %cst_54 [1] : vector<1x16xf32> to vector<1xf32>
    %223 = vector.shape_cast %222 : vector<1xf32> to vector<1x1xf32>
    %224 = math.log %223 : vector<1x1xf32>
    %225 = arith.addf %214, %224 : vector<1x1xf32>
    %226 = vector.broadcast %225 : vector<1x1xf32> to vector<1x16xf32>
    %227 = arith.subf %212, %226 : vector<1x16xf32>
    %c0_55 = arith.constant 0 : index
    %c0_56 = arith.constant 0 : index
    %228 = vector.load %arg7[%c0_55, %c0_56] : memref<8x16xf32, #tpu.memory_space<vmem>>, vector<1x16xf32>
    tpu.vector_store %arg7[%c0_55, %c0_56], %227 {strides = array<i32>} : memref<8x16xf32, #tpu.memory_space<vmem>>, vector<1x16xf32>,
    %cst_57 = arith.constant dense<0.000000e+00> : vector<1x128xf32>
    %229 = tpu.matmul %218, %179, %cst_57 {dimension_numbers = #tpu.dot_dimension_numbers<[1], [0], [0], [1], [0, 0, 1, 1], [], []>} : vector<1x16xf32>, vector<16x128xf32>, vector<1x128xf32> -> vector<1x128xf32>
    %230 = vector.extract_strided_slice %210 {offsets = [0, 0], sizes = [1, 128], strides = [1, 1]} : vector<1x144xf32> to vector<1x128xf32>
    %231 = arith.addf %229, %230 : vector<1x128xf32>
    %232 = arith.negf %231 : vector<1x128xf32>
    %233 = math.exp %232 : vector<1x128xf32>
    %cst_58 = arith.constant 1.000000e+00 : f32
    %234 = vector.broadcast %cst_58 : f32 to vector<1x128xf32>
    %235 = arith.addf %234, %233 : vector<1x128xf32>
    %236 = arith.divf %234, %235 : vector<1x128xf32>
    %237 = vector.extract_strided_slice %236 {offsets = [0, 0], sizes = [1, 32], strides = [1, 1]} : vector<1x128xf32> to vector<1x32xf32>
    %238 = vector.extract_strided_slice %236 {offsets = [0, 32], sizes = [1, 32], strides = [1, 1]} : vector<1x128xf32> to vector<1x32xf32>
    %239 = vector.extract_strided_slice %236 {offsets = [0, 64], sizes = [1, 32], strides = [1, 1]} : vector<1x128xf32> to vector<1x32xf32>
    %cst_59 = arith.constant 2.000000e+00 : f32
    %240 = vector.broadcast %cst_59 : f32 to vector<1x32xf32>
    %241 = arith.mulf %240, %239 : vector<1x32xf32>
    %cst_60 = arith.constant 1.000000e+00 : f32
    %242 = vector.broadcast %cst_60 : f32 to vector<1x32xf32>
    %243 = arith.subf %241, %242 : vector<1x32xf32>
    %244 = vector.extract_strided_slice %236 {offsets = [0, 96], sizes = [1, 32], strides = [1, 1]} : vector<1x128xf32> to vector<1x32xf32>
    %245 = arith.mulf %238, %207 : vector<1x32xf32>
    %246 = arith.mulf %237, %243 : vector<1x32xf32>
    %247 = arith.addf %245, %246 : vector<1x32xf32>
    %248 = math.tanh %247 : vector<1x32xf32>
    %249 = arith.mulf %244, %248 : vector<1x32xf32>
    %cst_61 = arith.constant dense<0.000000e+00> : vector<1x144xf32>
    %250 = tpu.matmul %249, %180, %cst_61 {dimension_numbers = #tpu.dot_dimension_numbers<[1], [0], [0], [1], [0, 0, 1, 1], [], []>} : vector<1x32xf32>, vector<32x144xf32>, vector<1x144xf32> -> vector<1x144xf32>
    %251 = vector.extract_strided_slice %250 {offsets = [0, 128], sizes = [1, 16], strides = [1, 1]} : vector<1x144xf32> to vector<1x16xf32>
    %252 = arith.addf %251, %181 : vector<1x16xf32>
    %cst_62 = arith.constant dense<0xFF800000> : vector<1xf32>
    %253 = vector.multi_reduction <maximumf>, %252, %cst_62 [1] : vector<1x16xf32> to vector<1xf32>
    %254 = vector.shape_cast %253 : vector<1xf32> to vector<1x1xf32>
    %255 = vector.broadcast %254 : vector<1x1xf32> to vector<1x16xf32>
    %256 = arith.cmpf oeq, %252, %255 : vector<1x16xf32>
    %257 = arith.extui %256 : vector<1x16xi1> to vector<1x16xi32>
    %258 = arith.sitofp %257 : vector<1x16xi32> to vector<1x16xf32>
    %259 = vector.broadcast %254 : vector<1x1xf32> to vector<1x16xf32>
    %260 = arith.subf %252, %259 : vector<1x16xf32>
    %261 = math.exp %260 : vector<1x16xf32>
    %cst_63 = arith.constant dense<0.000000e+00> : vector<1xf32>
    %262 = vector.multi_reduction <add>, %261, %cst_63 [1] : vector<1x16xf32> to vector<1xf32>
    %263 = vector.shape_cast %262 : vector<1xf32> to vector<1x1xf32>
    %264 = math.log %263 : vector<1x1xf32>
    %265 = arith.addf %254, %264 : vector<1x1xf32>
    %266 = vector.broadcast %265 : vector<1x1xf32> to vector<1x16xf32>
    %267 = arith.subf %252, %266 : vector<1x16xf32>
    %c1 = arith.constant 1 : index
    %c0_64 = arith.constant 0 : index
    %268 = vector.load %arg7[%c1, %c0_64] : memref<8x16xf32, #tpu.memory_space<vmem>>, vector<1x16xf32>
    tpu.vector_store %arg7[%c1, %c0_64], %267 {strides = array<i32>} : memref<8x16xf32, #tpu.memory_space<vmem>>, vector<1x16xf32>,
    %cst_65 = arith.constant dense<0.000000e+00> : vector<1x128xf32>
    %269 = tpu.matmul %258, %179, %cst_65 {dimension_numbers = #tpu.dot_dimension_numbers<[1], [0], [0], [1], [0, 0, 1, 1], [], []>} : vector<1x16xf32>, vector<16x128xf32>, vector<1x128xf32> -> vector<1x128xf32>
    %270 = vector.extract_strided_slice %250 {offsets = [0, 0], sizes = [1, 128], strides = [1, 1]} : vector<1x144xf32> to vector<1x128xf32>
    %271 = arith.addf %269, %270 : vector<1x128xf32>
    %272 = arith.negf %271 : vector<1x128xf32>
    %273 = math.exp %272 : vector<1x128xf32>
    %cst_66 = arith.constant 1.000000e+00 : f32
    %274 = vector.broadcast %cst_66 : f32 to vector<1x128xf32>
    %275 = arith.addf %274, %273 : vector<1x128xf32>
    %276 = arith.divf %274, %275 : vector<1x128xf32>
    %277 = vector.extract_strided_slice %276 {offsets = [0, 0], sizes = [1, 32], strides = [1, 1]} : vector<1x128xf32> to vector<1x32xf32>
    %278 = vector.extract_strided_slice %276 {offsets = [0, 32], sizes = [1, 32], strides = [1, 1]} : vector<1x128xf32> to vector<1x32xf32>
    %279 = vector.extract_strided_slice %276 {offsets = [0, 64], sizes = [1, 32], strides = [1, 1]} : vector<1x128xf32> to vector<1x32xf32>
    %cst_67 = arith.constant 2.000000e+00 : f32
    %280 = vector.broadcast %cst_67 : f32 to vector<1x32xf32>
    %281 = arith.mulf %280, %279 : vector<1x32xf32>
    %cst_68 = arith.constant 1.000000e+00 : f32
    %282 = vector.broadcast %cst_68 : f32 to vector<1x32xf32>
    %283 = arith.subf %281, %282 : vector<1x32xf32>
    %284 = vector.extract_strided_slice %276 {offsets = [0, 96], sizes = [1, 32], strides = [1, 1]} : vector<1x128xf32> to vector<1x32xf32>
    %285 = arith.mulf %278, %247 : vector<1x32xf32>
    %286 = arith.mulf %277, %283 : vector<1x32xf32>
    %287 = arith.addf %285, %286 : vector<1x32xf32>
    %288 = math.tanh %287 : vector<1x32xf32>
    %289 = arith.mulf %284, %288 : vector<1x32xf32>
    %cst_69 = arith.constant dense<0.000000e+00> : vector<1x144xf32>
    %290 = tpu.matmul %289, %180, %cst_69 {dimension_numbers = #tpu.dot_dimension_numbers<[1], [0], [0], [1], [0, 0, 1, 1], [], []>} : vector<1x32xf32>, vector<32x144xf32>, vector<1x144xf32> -> vector<1x144xf32>
    %291 = vector.extract_strided_slice %290 {offsets = [0, 128], sizes = [1, 16], strides = [1, 1]} : vector<1x144xf32> to vector<1x16xf32>
    %292 = arith.addf %291, %181 : vector<1x16xf32>
    %cst_70 = arith.constant dense<0xFF800000> : vector<1xf32>
    %293 = vector.multi_reduction <maximumf>, %292, %cst_70 [1] : vector<1x16xf32> to vector<1xf32>
    %294 = vector.shape_cast %293 : vector<1xf32> to vector<1x1xf32>
    %295 = vector.broadcast %294 : vector<1x1xf32> to vector<1x16xf32>
    %296 = arith.cmpf oeq, %292, %295 : vector<1x16xf32>
    %297 = arith.extui %296 : vector<1x16xi1> to vector<1x16xi32>
    %298 = arith.sitofp %297 : vector<1x16xi32> to vector<1x16xf32>
    %299 = vector.broadcast %294 : vector<1x1xf32> to vector<1x16xf32>
    %300 = arith.subf %292, %299 : vector<1x16xf32>
    %301 = math.exp %300 : vector<1x16xf32>
    %cst_71 = arith.constant dense<0.000000e+00> : vector<1xf32>
    %302 = vector.multi_reduction <add>, %301, %cst_71 [1] : vector<1x16xf32> to vector<1xf32>
    %303 = vector.shape_cast %302 : vector<1xf32> to vector<1x1xf32>
    %304 = math.log %303 : vector<1x1xf32>
    %305 = arith.addf %294, %304 : vector<1x1xf32>
    %306 = vector.broadcast %305 : vector<1x1xf32> to vector<1x16xf32>
    %307 = arith.subf %292, %306 : vector<1x16xf32>
    %c2 = arith.constant 2 : index
    %c0_72 = arith.constant 0 : index
    %308 = vector.load %arg7[%c2, %c0_72] : memref<8x16xf32, #tpu.memory_space<vmem>>, vector<1x16xf32>
    tpu.vector_store %arg7[%c2, %c0_72], %307 {strides = array<i32>} : memref<8x16xf32, #tpu.memory_space<vmem>>, vector<1x16xf32>,
    %cst_73 = arith.constant dense<0.000000e+00> : vector<1x128xf32>
    %309 = tpu.matmul %298, %179, %cst_73 {dimension_numbers = #tpu.dot_dimension_numbers<[1], [0], [0], [1], [0, 0, 1, 1], [], []>} : vector<1x16xf32>, vector<16x128xf32>, vector<1x128xf32> -> vector<1x128xf32>
    %310 = vector.extract_strided_slice %290 {offsets = [0, 0], sizes = [1, 128], strides = [1, 1]} : vector<1x144xf32> to vector<1x128xf32>
    %311 = arith.addf %309, %310 : vector<1x128xf32>
    %312 = arith.negf %311 : vector<1x128xf32>
    %313 = math.exp %312 : vector<1x128xf32>
    %cst_74 = arith.constant 1.000000e+00 : f32
    %314 = vector.broadcast %cst_74 : f32 to vector<1x128xf32>
    %315 = arith.addf %314, %313 : vector<1x128xf32>
    %316 = arith.divf %314, %315 : vector<1x128xf32>
    %317 = vector.extract_strided_slice %316 {offsets = [0, 0], sizes = [1, 32], strides = [1, 1]} : vector<1x128xf32> to vector<1x32xf32>
    %318 = vector.extract_strided_slice %316 {offsets = [0, 32], sizes = [1, 32], strides = [1, 1]} : vector<1x128xf32> to vector<1x32xf32>
    %319 = vector.extract_strided_slice %316 {offsets = [0, 64], sizes = [1, 32], strides = [1, 1]} : vector<1x128xf32> to vector<1x32xf32>
    %cst_75 = arith.constant 2.000000e+00 : f32
    %320 = vector.broadcast %cst_75 : f32 to vector<1x32xf32>
    %321 = arith.mulf %320, %319 : vector<1x32xf32>
    %cst_76 = arith.constant 1.000000e+00 : f32
    %322 = vector.broadcast %cst_76 : f32 to vector<1x32xf32>
    %323 = arith.subf %321, %322 : vector<1x32xf32>
    %324 = vector.extract_strided_slice %316 {offsets = [0, 96], sizes = [1, 32], strides = [1, 1]} : vector<1x128xf32> to vector<1x32xf32>
    %325 = arith.mulf %318, %287 : vector<1x32xf32>
    %326 = arith.mulf %317, %323 : vector<1x32xf32>
    %327 = arith.addf %325, %326 : vector<1x32xf32>
    %328 = math.tanh %327 : vector<1x32xf32>
    %329 = arith.mulf %324, %328 : vector<1x32xf32>
    %cst_77 = arith.constant dense<0.000000e+00> : vector<1x144xf32>
    %330 = tpu.matmul %329, %180, %cst_77 {dimension_numbers = #tpu.dot_dimension_numbers<[1], [0], [0], [1], [0, 0, 1, 1], [], []>} : vector<1x32xf32>, vector<32x144xf32>, vector<1x144xf32> -> vector<1x144xf32>
    %331 = vector.extract_strided_slice %330 {offsets = [0, 128], sizes = [1, 16], strides = [1, 1]} : vector<1x144xf32> to vector<1x16xf32>
    %332 = arith.addf %331, %181 : vector<1x16xf32>
    %cst_78 = arith.constant dense<0xFF800000> : vector<1xf32>
    %333 = vector.multi_reduction <maximumf>, %332, %cst_78 [1] : vector<1x16xf32> to vector<1xf32>
    %334 = vector.shape_cast %333 : vector<1xf32> to vector<1x1xf32>
    %335 = vector.broadcast %334 : vector<1x1xf32> to vector<1x16xf32>
    %336 = arith.cmpf oeq, %332, %335 : vector<1x16xf32>
    %337 = arith.extui %336 : vector<1x16xi1> to vector<1x16xi32>
    %338 = arith.sitofp %337 : vector<1x16xi32> to vector<1x16xf32>
    %339 = vector.broadcast %334 : vector<1x1xf32> to vector<1x16xf32>
    %340 = arith.subf %332, %339 : vector<1x16xf32>
    %341 = math.exp %340 : vector<1x16xf32>
    %cst_79 = arith.constant dense<0.000000e+00> : vector<1xf32>
    %342 = vector.multi_reduction <add>, %341, %cst_79 [1] : vector<1x16xf32> to vector<1xf32>
    %343 = vector.shape_cast %342 : vector<1xf32> to vector<1x1xf32>
    %344 = math.log %343 : vector<1x1xf32>
    %345 = arith.addf %334, %344 : vector<1x1xf32>
    %346 = vector.broadcast %345 : vector<1x1xf32> to vector<1x16xf32>
    %347 = arith.subf %332, %346 : vector<1x16xf32>
    %c3 = arith.constant 3 : index
    %c0_80 = arith.constant 0 : index
    %348 = vector.load %arg7[%c3, %c0_80] : memref<8x16xf32, #tpu.memory_space<vmem>>, vector<1x16xf32>
    tpu.vector_store %arg7[%c3, %c0_80], %347 {strides = array<i32>} : memref<8x16xf32, #tpu.memory_space<vmem>>, vector<1x16xf32>,
    %cst_81 = arith.constant dense<0.000000e+00> : vector<1x128xf32>
    %349 = tpu.matmul %338, %179, %cst_81 {dimension_numbers = #tpu.dot_dimension_numbers<[1], [0], [0], [1], [0, 0, 1, 1], [], []>} : vector<1x16xf32>, vector<16x128xf32>, vector<1x128xf32> -> vector<1x128xf32>
    %350 = vector.extract_strided_slice %330 {offsets = [0, 0], sizes = [1, 128], strides = [1, 1]} : vector<1x144xf32> to vector<1x128xf32>
    %351 = arith.addf %349, %350 : vector<1x128xf32>
    %352 = arith.negf %351 : vector<1x128xf32>
    %353 = math.exp %352 : vector<1x128xf32>
    %cst_82 = arith.constant 1.000000e+00 : f32
    %354 = vector.broadcast %cst_82 : f32 to vector<1x128xf32>
    %355 = arith.addf %354, %353 : vector<1x128xf32>
    %356 = arith.divf %354, %355 : vector<1x128xf32>
    %357 = vector.extract_strided_slice %356 {offsets = [0, 0], sizes = [1, 32], strides = [1, 1]} : vector<1x128xf32> to vector<1x32xf32>
    %358 = vector.extract_strided_slice %356 {offsets = [0, 32], sizes = [1, 32], strides = [1, 1]} : vector<1x128xf32> to vector<1x32xf32>
    %359 = vector.extract_strided_slice %356 {offsets = [0, 64], sizes = [1, 32], strides = [1, 1]} : vector<1x128xf32> to vector<1x32xf32>
    %cst_83 = arith.constant 2.000000e+00 : f32
    %360 = vector.broadcast %cst_83 : f32 to vector<1x32xf32>
    %361 = arith.mulf %360, %359 : vector<1x32xf32>
    %cst_84 = arith.constant 1.000000e+00 : f32
    %362 = vector.broadcast %cst_84 : f32 to vector<1x32xf32>
    %363 = arith.subf %361, %362 : vector<1x32xf32>
    %364 = vector.extract_strided_slice %356 {offsets = [0, 96], sizes = [1, 32], strides = [1, 1]} : vector<1x128xf32> to vector<1x32xf32>
    %365 = arith.mulf %358, %327 : vector<1x32xf32>
    %366 = arith.mulf %357, %363 : vector<1x32xf32>
    %367 = arith.addf %365, %366 : vector<1x32xf32>
    %368 = math.tanh %367 : vector<1x32xf32>
    %369 = arith.mulf %364, %368 : vector<1x32xf32>
    %cst_85 = arith.constant dense<0.000000e+00> : vector<1x144xf32>
    %370 = tpu.matmul %369, %180, %cst_85 {dimension_numbers = #tpu.dot_dimension_numbers<[1], [0], [0], [1], [0, 0, 1, 1], [], []>} : vector<1x32xf32>, vector<32x144xf32>, vector<1x144xf32> -> vector<1x144xf32>
    %371 = vector.extract_strided_slice %370 {offsets = [0, 128], sizes = [1, 16], strides = [1, 1]} : vector<1x144xf32> to vector<1x16xf32>
    %372 = arith.addf %371, %181 : vector<1x16xf32>
    %cst_86 = arith.constant dense<0xFF800000> : vector<1xf32>
    %373 = vector.multi_reduction <maximumf>, %372, %cst_86 [1] : vector<1x16xf32> to vector<1xf32>
    %374 = vector.shape_cast %373 : vector<1xf32> to vector<1x1xf32>
    %375 = vector.broadcast %374 : vector<1x1xf32> to vector<1x16xf32>
    %376 = arith.cmpf oeq, %372, %375 : vector<1x16xf32>
    %377 = arith.extui %376 : vector<1x16xi1> to vector<1x16xi32>
    %378 = arith.sitofp %377 : vector<1x16xi32> to vector<1x16xf32>
    %379 = vector.broadcast %374 : vector<1x1xf32> to vector<1x16xf32>
    %380 = arith.subf %372, %379 : vector<1x16xf32>
    %381 = math.exp %380 : vector<1x16xf32>
    %cst_87 = arith.constant dense<0.000000e+00> : vector<1xf32>
    %382 = vector.multi_reduction <add>, %381, %cst_87 [1] : vector<1x16xf32> to vector<1xf32>
    %383 = vector.shape_cast %382 : vector<1xf32> to vector<1x1xf32>
    %384 = math.log %383 : vector<1x1xf32>
    %385 = arith.addf %374, %384 : vector<1x1xf32>
    %386 = vector.broadcast %385 : vector<1x1xf32> to vector<1x16xf32>
    %387 = arith.subf %372, %386 : vector<1x16xf32>
    %c4 = arith.constant 4 : index
    %c0_88 = arith.constant 0 : index
    %388 = vector.load %arg7[%c4, %c0_88] : memref<8x16xf32, #tpu.memory_space<vmem>>, vector<1x16xf32>
    tpu.vector_store %arg7[%c4, %c0_88], %387 {strides = array<i32>} : memref<8x16xf32, #tpu.memory_space<vmem>>, vector<1x16xf32>,
    %cst_89 = arith.constant dense<0.000000e+00> : vector<1x128xf32>
    %389 = tpu.matmul %378, %179, %cst_89 {dimension_numbers = #tpu.dot_dimension_numbers<[1], [0], [0], [1], [0, 0, 1, 1], [], []>} : vector<1x16xf32>, vector<16x128xf32>, vector<1x128xf32> -> vector<1x128xf32>
    %390 = vector.extract_strided_slice %370 {offsets = [0, 0], sizes = [1, 128], strides = [1, 1]} : vector<1x144xf32> to vector<1x128xf32>
    %391 = arith.addf %389, %390 : vector<1x128xf32>
    %392 = arith.negf %391 : vector<1x128xf32>
    %393 = math.exp %392 : vector<1x128xf32>
    %cst_90 = arith.constant 1.000000e+00 : f32
    %394 = vector.broadcast %cst_90 : f32 to vector<1x128xf32>
    %395 = arith.addf %394, %393 : vector<1x128xf32>
    %396 = arith.divf %394, %395 : vector<1x128xf32>
    %397 = vector.extract_strided_slice %396 {offsets = [0, 0], sizes = [1, 32], strides = [1, 1]} : vector<1x128xf32> to vector<1x32xf32>
    %398 = vector.extract_strided_slice %396 {offsets = [0, 32], sizes = [1, 32], strides = [1, 1]} : vector<1x128xf32> to vector<1x32xf32>
    %399 = vector.extract_strided_slice %396 {offsets = [0, 64], sizes = [1, 32], strides = [1, 1]} : vector<1x128xf32> to vector<1x32xf32>
    %cst_91 = arith.constant 2.000000e+00 : f32
    %400 = vector.broadcast %cst_91 : f32 to vector<1x32xf32>
    %401 = arith.mulf %400, %399 : vector<1x32xf32>
    %cst_92 = arith.constant 1.000000e+00 : f32
    %402 = vector.broadcast %cst_92 : f32 to vector<1x32xf32>
    %403 = arith.subf %401, %402 : vector<1x32xf32>
    %404 = vector.extract_strided_slice %396 {offsets = [0, 96], sizes = [1, 32], strides = [1, 1]} : vector<1x128xf32> to vector<1x32xf32>
    %405 = arith.mulf %398, %367 : vector<1x32xf32>
    %406 = arith.mulf %397, %403 : vector<1x32xf32>
    %407 = arith.addf %405, %406 : vector<1x32xf32>
    %408 = math.tanh %407 : vector<1x32xf32>
    %409 = arith.mulf %404, %408 : vector<1x32xf32>
    %cst_93 = arith.constant dense<0.000000e+00> : vector<1x144xf32>
    %410 = tpu.matmul %409, %180, %cst_93 {dimension_numbers = #tpu.dot_dimension_numbers<[1], [0], [0], [1], [0, 0, 1, 1], [], []>} : vector<1x32xf32>, vector<32x144xf32>, vector<1x144xf32> -> vector<1x144xf32>
    %411 = vector.extract_strided_slice %410 {offsets = [0, 128], sizes = [1, 16], strides = [1, 1]} : vector<1x144xf32> to vector<1x16xf32>
    %412 = arith.addf %411, %181 : vector<1x16xf32>
    %cst_94 = arith.constant dense<0xFF800000> : vector<1xf32>
    %413 = vector.multi_reduction <maximumf>, %412, %cst_94 [1] : vector<1x16xf32> to vector<1xf32>
    %414 = vector.shape_cast %413 : vector<1xf32> to vector<1x1xf32>
    %415 = vector.broadcast %414 : vector<1x1xf32> to vector<1x16xf32>
    %416 = arith.cmpf oeq, %412, %415 : vector<1x16xf32>
    %417 = arith.extui %416 : vector<1x16xi1> to vector<1x16xi32>
    %418 = arith.sitofp %417 : vector<1x16xi32> to vector<1x16xf32>
    %419 = vector.broadcast %414 : vector<1x1xf32> to vector<1x16xf32>
    %420 = arith.subf %412, %419 : vector<1x16xf32>
    %421 = math.exp %420 : vector<1x16xf32>
    %cst_95 = arith.constant dense<0.000000e+00> : vector<1xf32>
    %422 = vector.multi_reduction <add>, %421, %cst_95 [1] : vector<1x16xf32> to vector<1xf32>
    %423 = vector.shape_cast %422 : vector<1xf32> to vector<1x1xf32>
    %424 = math.log %423 : vector<1x1xf32>
    %425 = arith.addf %414, %424 : vector<1x1xf32>
    %426 = vector.broadcast %425 : vector<1x1xf32> to vector<1x16xf32>
    %427 = arith.subf %412, %426 : vector<1x16xf32>
    %c5 = arith.constant 5 : index
    %c0_96 = arith.constant 0 : index
    %428 = vector.load %arg7[%c5, %c0_96] : memref<8x16xf32, #tpu.memory_space<vmem>>, vector<1x16xf32>
    tpu.vector_store %arg7[%c5, %c0_96], %427 {strides = array<i32>} : memref<8x16xf32, #tpu.memory_space<vmem>>, vector<1x16xf32>,
    %cst_97 = arith.constant dense<0.000000e+00> : vector<1x128xf32>
    %429 = tpu.matmul %418, %179, %cst_97 {dimension_numbers = #tpu.dot_dimension_numbers<[1], [0], [0], [1], [0, 0, 1, 1], [], []>} : vector<1x16xf32>, vector<16x128xf32>, vector<1x128xf32> -> vector<1x128xf32>
    %430 = vector.extract_strided_slice %410 {offsets = [0, 0], sizes = [1, 128], strides = [1, 1]} : vector<1x144xf32> to vector<1x128xf32>
    %431 = arith.addf %429, %430 : vector<1x128xf32>
    %432 = arith.negf %431 : vector<1x128xf32>
    %433 = math.exp %432 : vector<1x128xf32>
    %cst_98 = arith.constant 1.000000e+00 : f32
    %434 = vector.broadcast %cst_98 : f32 to vector<1x128xf32>
    %435 = arith.addf %434, %433 : vector<1x128xf32>
    %436 = arith.divf %434, %435 : vector<1x128xf32>
    %437 = vector.extract_strided_slice %436 {offsets = [0, 0], sizes = [1, 32], strides = [1, 1]} : vector<1x128xf32> to vector<1x32xf32>
    %438 = vector.extract_strided_slice %436 {offsets = [0, 32], sizes = [1, 32], strides = [1, 1]} : vector<1x128xf32> to vector<1x32xf32>
    %439 = vector.extract_strided_slice %436 {offsets = [0, 64], sizes = [1, 32], strides = [1, 1]} : vector<1x128xf32> to vector<1x32xf32>
    %cst_99 = arith.constant 2.000000e+00 : f32
    %440 = vector.broadcast %cst_99 : f32 to vector<1x32xf32>
    %441 = arith.mulf %440, %439 : vector<1x32xf32>
    %cst_100 = arith.constant 1.000000e+00 : f32
    %442 = vector.broadcast %cst_100 : f32 to vector<1x32xf32>
    %443 = arith.subf %441, %442 : vector<1x32xf32>
    %444 = vector.extract_strided_slice %436 {offsets = [0, 96], sizes = [1, 32], strides = [1, 1]} : vector<1x128xf32> to vector<1x32xf32>
    %445 = arith.mulf %438, %407 : vector<1x32xf32>
    %446 = arith.mulf %437, %443 : vector<1x32xf32>
    %447 = arith.addf %445, %446 : vector<1x32xf32>
    %448 = math.tanh %447 : vector<1x32xf32>
    %449 = arith.mulf %444, %448 : vector<1x32xf32>
    %cst_101 = arith.constant dense<0.000000e+00> : vector<1x144xf32>
    %450 = tpu.matmul %449, %180, %cst_101 {dimension_numbers = #tpu.dot_dimension_numbers<[1], [0], [0], [1], [0, 0, 1, 1], [], []>} : vector<1x32xf32>, vector<32x144xf32>, vector<1x144xf32> -> vector<1x144xf32>
    %451 = vector.extract_strided_slice %450 {offsets = [0, 128], sizes = [1, 16], strides = [1, 1]} : vector<1x144xf32> to vector<1x16xf32>
    %452 = arith.addf %451, %181 : vector<1x16xf32>
    %cst_102 = arith.constant dense<0xFF800000> : vector<1xf32>
    %453 = vector.multi_reduction <maximumf>, %452, %cst_102 [1] : vector<1x16xf32> to vector<1xf32>
    %454 = vector.shape_cast %453 : vector<1xf32> to vector<1x1xf32>
    %455 = vector.broadcast %454 : vector<1x1xf32> to vector<1x16xf32>
    %456 = arith.cmpf oeq, %452, %455 : vector<1x16xf32>
    %457 = arith.extui %456 : vector<1x16xi1> to vector<1x16xi32>
    %458 = arith.sitofp %457 : vector<1x16xi32> to vector<1x16xf32>
    %459 = vector.broadcast %454 : vector<1x1xf32> to vector<1x16xf32>
    %460 = arith.subf %452, %459 : vector<1x16xf32>
    %461 = math.exp %460 : vector<1x16xf32>
    %cst_103 = arith.constant dense<0.000000e+00> : vector<1xf32>
    %462 = vector.multi_reduction <add>, %461, %cst_103 [1] : vector<1x16xf32> to vector<1xf32>
    %463 = vector.shape_cast %462 : vector<1xf32> to vector<1x1xf32>
    %464 = math.log %463 : vector<1x1xf32>
    %465 = arith.addf %454, %464 : vector<1x1xf32>
    %466 = vector.broadcast %465 : vector<1x1xf32> to vector<1x16xf32>
    %467 = arith.subf %452, %466 : vector<1x16xf32>
    %c6 = arith.constant 6 : index
    %c0_104 = arith.constant 0 : index
    %468 = vector.load %arg7[%c6, %c0_104] : memref<8x16xf32, #tpu.memory_space<vmem>>, vector<1x16xf32>
    tpu.vector_store %arg7[%c6, %c0_104], %467 {strides = array<i32>} : memref<8x16xf32, #tpu.memory_space<vmem>>, vector<1x16xf32>,
    %cst_105 = arith.constant dense<0.000000e+00> : vector<1x128xf32>
    %469 = tpu.matmul %458, %179, %cst_105 {dimension_numbers = #tpu.dot_dimension_numbers<[1], [0], [0], [1], [0, 0, 1, 1], [], []>} : vector<1x16xf32>, vector<16x128xf32>, vector<1x128xf32> -> vector<1x128xf32>
    %470 = vector.extract_strided_slice %450 {offsets = [0, 0], sizes = [1, 128], strides = [1, 1]} : vector<1x144xf32> to vector<1x128xf32>
    %471 = arith.addf %469, %470 : vector<1x128xf32>
    %472 = arith.negf %471 : vector<1x128xf32>
    %473 = math.exp %472 : vector<1x128xf32>
    %cst_106 = arith.constant 1.000000e+00 : f32
    %474 = vector.broadcast %cst_106 : f32 to vector<1x128xf32>
    %475 = arith.addf %474, %473 : vector<1x128xf32>
    %476 = arith.divf %474, %475 : vector<1x128xf32>
    %477 = vector.extract_strided_slice %476 {offsets = [0, 0], sizes = [1, 32], strides = [1, 1]} : vector<1x128xf32> to vector<1x32xf32>
    %478 = vector.extract_strided_slice %476 {offsets = [0, 32], sizes = [1, 32], strides = [1, 1]} : vector<1x128xf32> to vector<1x32xf32>
    %479 = vector.extract_strided_slice %476 {offsets = [0, 64], sizes = [1, 32], strides = [1, 1]} : vector<1x128xf32> to vector<1x32xf32>
    %cst_107 = arith.constant 2.000000e+00 : f32
    %480 = vector.broadcast %cst_107 : f32 to vector<1x32xf32>
    %481 = arith.mulf %480, %479 : vector<1x32xf32>
    %cst_108 = arith.constant 1.000000e+00 : f32
    %482 = vector.broadcast %cst_108 : f32 to vector<1x32xf32>
    %483 = arith.subf %481, %482 : vector<1x32xf32>
    %484 = vector.extract_strided_slice %476 {offsets = [0, 96], sizes = [1, 32], strides = [1, 1]} : vector<1x128xf32> to vector<1x32xf32>
    %485 = arith.mulf %478, %447 : vector<1x32xf32>
    %486 = arith.mulf %477, %483 : vector<1x32xf32>
    %487 = arith.addf %485, %486 : vector<1x32xf32>
    %488 = math.tanh %487 : vector<1x32xf32>
    %489 = arith.mulf %484, %488 : vector<1x32xf32>
    %cst_109 = arith.constant dense<0.000000e+00> : vector<1x144xf32>
    %490 = tpu.matmul %489, %180, %cst_109 {dimension_numbers = #tpu.dot_dimension_numbers<[1], [0], [0], [1], [0, 0, 1, 1], [], []>} : vector<1x32xf32>, vector<32x144xf32>, vector<1x144xf32> -> vector<1x144xf32>
    %491 = vector.extract_strided_slice %490 {offsets = [0, 128], sizes = [1, 16], strides = [1, 1]} : vector<1x144xf32> to vector<1x16xf32>
    %492 = arith.addf %491, %181 : vector<1x16xf32>
    %cst_110 = arith.constant dense<0xFF800000> : vector<1xf32>
    %493 = vector.multi_reduction <maximumf>, %492, %cst_110 [1] : vector<1x16xf32> to vector<1xf32>
    %494 = vector.shape_cast %493 : vector<1xf32> to vector<1x1xf32>
    %495 = vector.broadcast %494 : vector<1x1xf32> to vector<1x16xf32>
    %496 = arith.subf %492, %495 : vector<1x16xf32>
    %497 = math.exp %496 : vector<1x16xf32>
    %cst_111 = arith.constant dense<0.000000e+00> : vector<1xf32>
    %498 = vector.multi_reduction <add>, %497, %cst_111 [1] : vector<1x16xf32> to vector<1xf32>
    %499 = vector.shape_cast %498 : vector<1xf32> to vector<1x1xf32>
    %500 = math.log %499 : vector<1x1xf32>
    %501 = arith.addf %494, %500 : vector<1x1xf32>
    %502 = vector.broadcast %501 : vector<1x1xf32> to vector<1x16xf32>
    %503 = arith.subf %492, %502 : vector<1x16xf32>
    %c7 = arith.constant 7 : index
    %c0_112 = arith.constant 0 : index
    %504 = vector.load %arg7[%c7, %c0_112] : memref<8x16xf32, #tpu.memory_space<vmem>>, vector<1x16xf32>
    tpu.vector_store %arg7[%c7, %c0_112], %503 {strides = array<i32>} : memref<8x16xf32, #tpu.memory_space<vmem>>, vector<1x16xf32>,
    return
  }
}

</mosaic_0001>

<llo_original>
// kernel: seq2seq_forward.1
$region0: #{seq2seq_forward.1}
  #allocation0 [shape = 'u32[]', space=smem, size = 0x4, offset = 0x4, fixed_abs, tag = 'smem constant byte address 0x4 - core index']
  #allocation1 [shape = 'u32[144,128]{1,0:T(1,128)}', space=vmem, size = 0x12000, scoped, tag = 'internal scratch']
  %s0 = inlined_call_operand.vmem [shape: s32[8,1], index: 0, kind: input, shape index: {}]
  %s1 = inlined_call_operand.vmem [shape: f32[16,128], index: 1, kind: input, shape index: {}]
  %s2 = inlined_call_operand.hbm [shape: f32[32,128], index: 2, kind: input, shape index: {}]
  %s3 = inlined_call_operand.vmem [shape: s32[8,1], index: 3, kind: input, shape index: {}]
  %s4 = inlined_call_operand.hbm [shape: f32[16,128], index: 4, kind: input, shape index: {}]
  %s5 = inlined_call_operand.hbm [shape: f32[32,144], index: 5, kind: input, shape index: {}]
  %s6 = inlined_call_operand.vmem [shape: f32[1,16], index: 6, kind: input, shape index: {}]
  %s7 = inlined_call_operand.hbm [shape: f32[8,16], index: 7, kind: output, shape index: {}]
  %s8 = sld [smem:[#allocation0]]
  $region50: #{seq2seq_forward.1} parent=0
    _
  %s10 = ssub.s32 1, %s8
  %s11 = scalar_select 0, %s10, %s8
  $region1: #{seq2seq_forward.1} parent=0
    #allocation2 [shape = 'u8[16384]{0}', space=vmem, size = 0x4000, scoped, tag = 'input window, operand 2, single buffered']
    #allocation3 [shape = 's32[1]{0}', space=sflag, size = 0x4, scoped, tag = 'scoped memory for seq2seq_forward.1']
    #allocation4 [shape = 's32[1]{0}', space=sflag, size = 0x4, scoped, tag = 'scoped memory for seq2seq_forward.1']
    #allocation5 [shape = 'u8[8192]{0}', space=vmem, size = 0x2000, scoped, tag = 'input window, operand 4, single buffered']
    #allocation6 [shape = 's32[1]{0}', space=sflag, size = 0x4, scoped, tag = 'scoped memory for seq2seq_forward.1']
    #allocation7 [shape = 'u8[32768]{0}', space=vmem, size = 0x8000, scoped, tag = 'input window, operand 5, single buffered']
    #allocation8 [shape = 'u8[4096]{0}', space=vmem, size = 0x1000, scoped, tag = 'output window, operand 0, single buffered']
    %12 = vsyncpa [#allocation3], 0
    %13 = vsyncpa [#allocation6], 0
    %14 = vsyncpa [#allocation4], 0
    // Predicated region
    $region2: #{seq2seq_forward.1} parent=1 // pred_check
      _
    $region3: #{seq2seq_forward.1} parent=1 // pred_check_branch
      %16 = sbr.rel (0) target = $region5
    $region4: #{seq2seq_forward.1} parent=1 // pred_region
      _
    $region5: #{seq2seq_forward.1} parent=1 // pred_fallthru
      _
    // Predicated region
    $region6: #{seq2seq_forward.1} parent=1 // pred_check
      _
    $region7: #{seq2seq_forward.1} parent=1 // pred_check_branch
      %18 = sbr.rel (0) target = $region9
    $region8: #{seq2seq_forward.1} parent=1 // pred_region
      _
    $region9: #{seq2seq_forward.1} parent=1 // pred_fallthru
      _
    // Predicated region
    $region10: #{seq2seq_forward.1} parent=1 // pred_check
      _
    $region11: #{seq2seq_forward.1} parent=1 // pred_check_branch
      %20 = sbr.rel (0) target = $region13
    $region12: #{seq2seq_forward.1} parent=1 // pred_region
      %s22 = ssub.s32 512, 512
      %23 = vsyncadd [#allocation3], %s22
      %s24 = sshll.u32 [#allocation2], 4
      %s25 = int_to_ptr.vmem [resolvable:$true] %s24
      %30 = dma.hbm_to_vmem [thread:$0]  %s2, 512, %s25, [#allocation3], 128, 128, 8
    $region13: #{seq2seq_forward.1} parent=1 // pred_fallthru
      _
    // Predicated region
    $region14: #{seq2seq_forward.1} parent=1 // pred_check
      _
    $region15: #{seq2seq_forward.1} parent=1 // pred_check_branch
      %32 = sbr.rel (0) target = $region17
    $region16: #{seq2seq_forward.1} parent=1 // pred_region
      _
    $region17: #{seq2seq_forward.1} parent=1 // pred_fallthru
      _
    // Predicated region
    $region18: #{seq2seq_forward.1} parent=1 // pred_check
      _
    $region19: #{seq2seq_forward.1} parent=1 // pred_check_branch
      %34 = sbr.rel (0) target = $region21
    $region20: #{seq2seq_forward.1} parent=1 // pred_region
      %s36 = ssub.s32 256, 256
      %37 = vsyncadd [#allocation6], %s36
      %s38 = sshll.u32 [#allocation5], 4
      %s39 = int_to_ptr.vmem [resolvable:$true] %s38
      %44 = dma.hbm_to_vmem [thread:$0]  %s4, 256, %s39, [#allocation6], 128, 128, 8
    $region21: #{seq2seq_forward.1} parent=1 // pred_fallthru
      _
    // Predicated region
    $region22: #{seq2seq_forward.1} parent=1 // pred_check
      _
    $region23: #{seq2seq_forward.1} parent=1 // pred_check_branch
      %46 = sbr.rel (0) target = $region25
    $region24: #{seq2seq_forward.1} parent=1 // pred_region
      %s48 = ssub.s32 1024, 1024
      %49 = vsyncadd [#allocation6], %s48
      %s50 = sshll.u32 [#allocation7], 4
      %s51 = int_to_ptr.vmem [resolvable:$true] %s50
      %56 = dma.hbm_to_vmem [thread:$0]  %s5, 1024, %s51, [#allocation6], 256, 256, 16
    $region25: #{seq2seq_forward.1} parent=1 // pred_fallthru
      _
    // Predicated region
    $region26: #{seq2seq_forward.1} parent=1 // pred_check
      _
    $region27: #{seq2seq_forward.1} parent=1 // pred_check_branch
      %58 = sbr.rel (0) target = $region29
    $region28: #{seq2seq_forward.1} parent=1 // pred_region
      _
    $region29: #{seq2seq_forward.1} parent=1 // pred_fallthru
      _
    // Predicated region
    $region30: #{seq2seq_forward.1} parent=1 // pred_check
      _
    $region31: #{seq2seq_forward.1} parent=1 // pred_check_branch
      %60 = sbr.rel (0) target = $region33
    $region32: #{seq2seq_forward.1} parent=1 // pred_region
      %61 = dma.done [#allocation3], 512
    $region33: #{seq2seq_forward.1} parent=1 // pred_fallthru
      _
    // Predicated region
    $region34: #{seq2seq_forward.1} parent=1 // pred_check
      _
    $region35: #{seq2seq_forward.1} parent=1 // pred_check_branch
      %63 = sbr.rel (0) target = $region37
    $region36: #{seq2seq_forward.1} parent=1 // pred_region
      %64 = dma.done [#allocation6], 256
    $region37: #{seq2seq_forward.1} parent=1 // pred_fallthru
      _
    // Predicated region
    $region38: #{seq2seq_forward.1} parent=1 // pred_check
      _
    $region39: #{seq2seq_forward.1} parent=1 // pred_check_branch
      %66 = sbr.rel (0) target = $region41
    $region40: #{seq2seq_forward.1} parent=1 // pred_region
      %67 = dma.done [#allocation6], 1024
    $region41: #{seq2seq_forward.1} parent=1 // pred_fallthru
      _
    %v68 = vlaneseq
    %v69 = vand.u32 %v68, 127
    %v70 = vld [vmem:[%s0] sm:$0xff]
    %71 = vset.pattern.permute.xlu0 0
    %72 = vperm.xlu0 %71, %v70
    %v73 = vpop.permute.xlu0 %72
    %vm74 = vcmp.eq.s32.totalorder %v73, %v69
    %v75 = vsel %vm74, 1, 0
    %v76 = vcvt.s32.f32 %v75
    %v77 = vld [vmem:[%s1] sm:$0xff]
    %v78 = vld [vmem:[%s1 + $0x8] sm:$0xff]
    %vm79 = vcmask 130048
    %v81 = vsel %vm79, %v76, 0
    %83 = vmatprep.subr.mxu0 0.0
    %84 = vmatpush1.msra.mxu0 0.0
    %85 = vmatprep.subr.mxu0 0.0
    %86 = vmatpush1.msra.mxu0 0.0
    %87 = vmatprep.subr.mxu0 0.0
    %88 = vmatpush1.msra.mxu0 0.0
    %89 = vmatprep.subr.mxu0 0.0
    %90 = vmatpush1.msra.mxu0 0.0
    %91 = vmatprep.subr.mxu0 0.0
    %92 = vmatpush1.msra.mxu0 0.0
    %93 = vmatprep.subr.mxu0 0.0
    %94 = vmatpush1.msra.mxu0 0.0
    %95 = vmatprep.subr.mxu0 0.0
    %96 = vmatpush1.msra.mxu0 0.0
    %97 = vmatprep.subr.mxu0 0.0
    %98 = vmatpush1.msra.mxu0 0.0
    %99 = vmatprep.subr.mxu0 0.0
    %100 = vmatpush1.msra.mxu0 0.0
    %101 = vmatprep.subr.mxu0 0.0
    %102 = vmatpush1.msra.mxu0 0.0
    %103 = vmatprep.subr.mxu0 0.0
    %104 = vmatpush1.msra.mxu0 0.0
    %105 = vmatprep.subr.mxu0 0.0
    %106 = vmatpush1.msra.mxu0 0.0
    %107 = vmatprep.subr.mxu0 0.0
    %108 = vmatpush1.msra.mxu0 0.0
    %109 = vmatprep.subr.mxu0 0.0
    %110 = vmatpush1.msra.mxu0 0.0
    %111 = vmatprep.subr.mxu0 0.0
    %112 = vmatpush1.msra.mxu0 %v78
    %113 = vmatprep.subr.mxu0 0.0
    %114 = vmatpush1.msra.mxu0 %v77
    %115 = vmatprep.subr.mxu0 0.0
    %116 = vmatpush2.msra.mxu0 0.0
    %117 = vmatprep.subr.mxu0 0.0
    %118 = vmatpush2.msra.mxu0 0.0
    %119 = vmatprep.subr.mxu0 0.0
    %120 = vmatpush2.msra.mxu0 0.0
    %121 = vmatprep.subr.mxu0 0.0
    %122 = vmatpush2.msra.mxu0 0.0
    %123 = vmatprep.subr.mxu0 0.0
    %124 = vmatpush2.msra.mxu0 0.0
    %125 = vmatprep.subr.mxu0 0.0
    %126 = vmatpush2.msra.mxu0 0.0
    %127 = vmatprep.subr.mxu0 0.0
    %128 = vmatpush2.msra.mxu0 0.0
    %129 = vmatprep.subr.mxu0 0.0
    %130 = vmatpush2.msra.mxu0 0.0
    %131 = vmatprep.subr.mxu0 0.0
    %132 = vmatpush2.msra.mxu0 0.0
    %133 = vmatprep.subr.mxu0 0.0
    %134 = vmatpush2.msra.mxu0 0.0
    %135 = vmatprep.subr.mxu0 0.0
    %136 = vmatpush2.msra.mxu0 0.0
    %137 = vmatprep.subr.mxu0 0.0
    %138 = vmatpush2.msra.mxu0 0.0
    %139 = vmatprep.subr.mxu0 0.0
    %140 = vmatpush2.msra.mxu0 0.0
    %141 = vmatprep.subr.mxu0 0.0
    %142 = vmatpush2.msra.mxu0 0.0
    %143 = vmatprep.subr.mxu0 0.0
    %144 = vmatpush2.msra.mxu0 0.0
    %145 = vmatprep.subr.mxu0 0.0
    %146 = vmatpush2.msra.mxu0 0.0
    %147 = vmatprep.mubr.f32.mxu0 0.0
    %148 = vmatmul.mubr.f32.gmra.mxu0 %v81
    %v149 = vpop.f32.mrf.mxu0
    %v150 = vadd.f32 0.0, %v149
    %v151 = vpop.f32.mrf.mxu0
    %152 = vdwg.mxu0
    %v153 = vld [vmem:[#allocation2] sm:$0xff]
    %v154 = vld [vmem:[#allocation2 + $0x8] sm:$0xff]
    %v155 = vld [vmem:[#allocation2 + $0x10] sm:$0xff]
    %v156 = vld [vmem:[#allocation2 + $0x18] sm:$0xff]
    %vm157 = vcmask 261120
    %v159 = vsel %vm157, 0.0, 0
    %161 = vmatprep.subr.mxu0 0.0
    %162 = vmatpush1.msra.mxu0 0.0
    %163 = vmatprep.subr.mxu0 0.0
    %164 = vmatpush1.msra.mxu0 0.0
    %165 = vmatprep.subr.mxu0 0.0
    %166 = vmatpush1.msra.mxu0 0.0
    %167 = vmatprep.subr.mxu0 0.0
    %168 = vmatpush1.msra.mxu0 0.0
    %169 = vmatprep.subr.mxu0 0.0
    %170 = vmatpush1.msra.mxu0 0.0
    %171 = vmatprep.subr.mxu0 0.0
    %172 = vmatpush1.msra.mxu0 0.0
    %173 = vmatprep.subr.mxu0 0.0
    %174 = vmatpush1.msra.mxu0 0.0
    %175 = vmatprep.subr.mxu0 0.0
    %176 = vmatpush1.msra.mxu0 0.0
    %177 = vmatprep.subr.mxu0 0.0
    %178 = vmatpush1.msra.mxu0 0.0
    %179 = vmatprep.subr.mxu0 0.0
    %180 = vmatpush1.msra.mxu0 0.0
    %181 = vmatprep.subr.mxu0 0.0
    %182 = vmatpush1.msra.mxu0 0.0
    %183 = vmatprep.subr.mxu0 0.0
    %184 = vmatpush1.msra.mxu0 0.0
    %185 = vmatprep.subr.mxu0 0.0
    %186 = vmatpush1.msra.mxu0 %v156
    %187 = vmatprep.subr.mxu0 0.0
    %188 = vmatpush1.msra.mxu0 %v155
    %189 = vmatprep.subr.mxu0 0.0
    %190 = vmatpush1.msra.mxu0 %v154
    %191 = vmatprep.subr.mxu0 0.0
    %192 = vmatpush1.msra.mxu0 %v153
    %193 = vmatprep.subr.mxu0 0.0
    %194 = vmatpush2.msra.mxu0 0.0
    %195 = vmatprep.subr.mxu0 0.0
    %196 = vmatpush2.msra.mxu0 0.0
    %197 = vmatprep.subr.mxu0 0.0
    %198 = vmatpush2.msra.mxu0 0.0
    %199 = vmatprep.subr.mxu0 0.0
    %200 = vmatpush2.msra.mxu0 0.0
    %201 = vmatprep.subr.mxu0 0.0
    %202 = vmatpush2.msra.mxu0 0.0
    %203 = vmatprep.subr.mxu0 0.0
    %204 = vmatpush2.msra.mxu0 0.0
    %205 = vmatprep.subr.mxu0 0.0
    %206 = vmatpush2.msra.mxu0 0.0
    %207 = vmatprep.subr.mxu0 0.0
    %208 = vmatpush2.msra.mxu0 0.0
    %209 = vmatprep.subr.mxu0 0.0
    %210 = vmatpush2.msra.mxu0 0.0
    %211 = vmatprep.subr.mxu0 0.0
    %212 = vmatpush2.msra.mxu0 0.0
    %213 = vmatprep.subr.mxu0 0.0
    %214 = vmatpush2.msra.mxu0 0.0
    %215 = vmatprep.subr.mxu0 0.0
    %216 = vmatpush2.msra.mxu0 0.0
    %217 = vmatprep.subr.mxu0 0.0
    %218 = vmatpush2.msra.mxu0 0.0
    %219 = vmatprep.subr.mxu0 0.0
    %220 = vmatpush2.msra.mxu0 0.0
    %221 = vmatprep.subr.mxu0 0.0
    %222 = vmatpush2.msra.mxu0 0.0
    %223 = vmatprep.subr.mxu0 0.0
    %224 = vmatpush2.msra.mxu0 0.0
    %225 = vmatprep.mubr.f32.mxu0 0.0
    %226 = vmatmul.mubr.f32.gmra.mxu0 %v159
    %v227 = vpop.f32.mrf.mxu0
    %v228 = vadd.f32 0.0, %v227
    %v229 = vpop.f32.mrf.mxu0
    %230 = vdwg.mxu0
    %v231 = vadd.f32 %v150, %v228
    %v232 = vxor.u32 %v231, 2147483648
    %v233 = vmul.f32 %v232, 1.442695
    %v234 = vpow.pop %v233
    %v235 = vadd.f32 %v234, 1.0
    %v236 = vrcp.pop %v235
    %v237 = vmul.f32 1.0, %v236
    %v238 = vmul.f32 %v237, 2.0
    %v239 = vsub.f32 %v238, 1.0
    %v240 = vmul.f32 %v237, 0.0
    %242 = vrot.lane.b32.xlu0 %v239, 64
    %v243 = vpop.permute.xlu0 %242
    %v245 = vmul.f32 %v237, %v243
    %247 = vrot.lane.b32.xlu0 %v245, 32
    %v248 = vpop.permute.xlu0 %247
    %v250 = vadd.f32 %v240, %v248
    %v251 = vtanh.pop %v250
    %253 = vrot.lane.b32.xlu0 %v251, 64
    %v254 = vpop.permute.xlu0 %253
    %v256 = vmul.f32 %v237, %v254
    %258 = vrot.lane.b32.xlu0 %v256, 32
    %v259 = vpop.permute.xlu0 %258
    %v260 = vsel %vm157, %v259, 0
    %262 = vmatprep.subr.mxu0 0.0
    %263 = vmatpush1.msra.mxu0 0.0
    %264 = vmatprep.subr.mxu0 0.0
    %265 = vmatpush1.msra.mxu0 0.0
    %266 = vmatprep.subr.mxu0 0.0
    %267 = vmatpush1.msra.mxu0 0.0
    %268 = vmatprep.subr.mxu0 0.0
    %269 = vmatpush1.msra.mxu0 0.0
    %270 = vmatprep.subr.mxu0 0.0
    %271 = vmatpush1.msra.mxu0 0.0
    %272 = vmatprep.subr.mxu0 0.0
    %273 = vmatpush1.msra.mxu0 0.0
    %274 = vmatprep.subr.mxu0 0.0
    %275 = vmatpush1.msra.mxu0 0.0
    %276 = vmatprep.subr.mxu0 0.0
    %277 = vmatpush1.msra.mxu0 0.0
    %278 = vmatprep.subr.mxu0 0.0
    %279 = vmatpush1.msra.mxu0 0.0
    %280 = vmatprep.subr.mxu0 0.0
    %281 = vmatpush1.msra.mxu0 0.0
    %282 = vmatprep.subr.mxu0 0.0
    %283 = vmatpush1.msra.mxu0 0.0
    %284 = vmatprep.subr.mxu0 0.0
    %285 = vmatpush1.msra.mxu0 0.0
    %286 = vmatprep.subr.mxu0 0.0
    %287 = vmatpush1.msra.mxu0 %v156
    %288 = vmatprep.subr.mxu0 0.0
    %289 = vmatpush1.msra.mxu0 %v155
    %290 = vmatprep.subr.mxu0 0.0
    %291 = vmatpush1.msra.mxu0 %v154
    %292 = vmatprep.subr.mxu0 0.0
    %293 = vmatpush1.msra.mxu0 %v153
    %294 = vmatprep.subr.mxu0 0.0
    %295 = vmatpush2.msra.mxu0 0.0
    %296 = vmatprep.subr.mxu0 0.0
    %297 = vmatpush2.msra.mxu0 0.0
    %298 = vmatprep.subr.mxu0 0.0
    %299 = vmatpush2.msra.mxu0 0.0
    %300 = vmatprep.subr.mxu0 0.0
    %301 = vmatpush2.msra.mxu0 0.0
    %302 = vmatprep.subr.mxu0 0.0
    %303 = vmatpush2.msra.mxu0 0.0
    %304 = vmatprep.subr.mxu0 0.0
    %305 = vmatpush2.msra.mxu0 0.0
    %306 = vmatprep.subr.mxu0 0.0
    %307 = vmatpush2.msra.mxu0 0.0
    %308 = vmatprep.subr.mxu0 0.0
    %309 = vmatpush2.msra.mxu0 0.0
    %310 = vmatprep.subr.mxu0 0.0
    %311 = vmatpush2.msra.mxu0 0.0
    %312 = vmatprep.subr.mxu0 0.0
    %313 = vmatpush2.msra.mxu0 0.0
    %314 = vmatprep.subr.mxu0 0.0
    %315 = vmatpush2.msra.mxu0 0.0
    %316 = vmatprep.subr.mxu0 0.0
    %317 = vmatpush2.msra.mxu0 0.0
    %318 = vmatprep.subr.mxu0 0.0
    %319 = vmatpush2.msra.mxu0 0.0
    %320 = vmatprep.subr.mxu0 0.0
    %321 = vmatpush2.msra.mxu0 0.0
    %322 = vmatprep.subr.mxu0 0.0
    %323 = vmatpush2.msra.mxu0 0.0
    %324 = vmatprep.subr.mxu0 0.0
    %325 = vmatpush2.msra.mxu0 0.0
    %326 = vmatprep.mubr.f32.mxu0 0.0
    %327 = vmatmul.mubr.f32.gmra.mxu0 %v260
    %v328 = vpop.f32.mrf.mxu0
    %v329 = vadd.f32 0.0, %v328
    %v330 = vpop.f32.mrf.mxu0
    %331 = vdwg.mxu0
    %v333 = vrot.slane %v329, 7
    %v335 = vadd.f32 %v150, %v333
    %v336 = vxor.u32 %v335, 2147483648
    %v337 = vmul.f32 %v336, 1.442695
    %v338 = vpow.pop %v337
    %v339 = vadd.f32 %v338, 1.0
    %v340 = vrcp.pop %v339
    %v341 = vmul.f32 1.0, %v340
    %v342 = vmul.f32 %v341, 2.0
    %v343 = vsub.f32 %v342, 1.0
    %v345 = vrot.slane %v250, 7
    %v347 = vmul.f32 %v341, %v345
    %349 = vrot.lane.b32.xlu0 %v343, 64
    %v350 = vpop.permute.xlu0 %349
    %v352 = vmul.f32 %v341, %v350
    %354 = vrot.lane.b32.xlu0 %v352, 32
    %v355 = vpop.permute.xlu0 %354
    %v357 = vadd.f32 %v347, %v355
    %v358 = vtanh.pop %v357
    %360 = vrot.lane.b32.xlu0 %v358, 64
    %v361 = vpop.permute.xlu0 %360
    %v363 = vmul.f32 %v341, %v361
    %v365 = vrot.slane %v363, 1
    %366 = vrot.lane.b32.xlu0 %v365, 32
    %v367 = vpop.permute.xlu0 %366
    %v368 = vsel %vm157, %v367, 0
    %370 = vmatprep.subr.mxu0 0.0
    %371 = vmatpush1.msra.mxu0 0.0
    %372 = vmatprep.subr.mxu0 0.0
    %373 = vmatpush1.msra.mxu0 0.0
    %374 = vmatprep.subr.mxu0 0.0
    %375 = vmatpush1.msra.mxu0 0.0
    %376 = vmatprep.subr.mxu0 0.0
    %377 = vmatpush1.msra.mxu0 0.0
    %378 = vmatprep.subr.mxu0 0.0
    %379 = vmatpush1.msra.mxu0 0.0
    %380 = vmatprep.subr.mxu0 0.0
    %381 = vmatpush1.msra.mxu0 0.0
    %382 = vmatprep.subr.mxu0 0.0
    %383 = vmatpush1.msra.mxu0 0.0
    %384 = vmatprep.subr.mxu0 0.0
    %385 = vmatpush1.msra.mxu0 0.0
    %386 = vmatprep.subr.mxu0 0.0
    %387 = vmatpush1.msra.mxu0 0.0
    %388 = vmatprep.subr.mxu0 0.0
    %389 = vmatpush1.msra.mxu0 0.0
    %390 = vmatprep.subr.mxu0 0.0
    %391 = vmatpush1.msra.mxu0 0.0
    %392 = vmatprep.subr.mxu0 0.0
    %393 = vmatpush1.msra.mxu0 0.0
    %394 = vmatprep.subr.mxu0 0.0
    %395 = vmatpush1.msra.mxu0 %v156
    %396 = vmatprep.subr.mxu0 0.0
    %397 = vmatpush1.msra.mxu0 %v155
    %398 = vmatprep.subr.mxu0 0.0
    %399 = vmatpush1.msra.mxu0 %v154
    %400 = vmatprep.subr.mxu0 0.0
    %401 = vmatpush1.msra.mxu0 %v153
    %402 = vmatprep.subr.mxu0 0.0
    %403 = vmatpush2.msra.mxu0 0.0
    %404 = vmatprep.subr.mxu0 0.0
    %405 = vmatpush2.msra.mxu0 0.0
    %406 = vmatprep.subr.mxu0 0.0
    %407 = vmatpush2.msra.mxu0 0.0
    %408 = vmatprep.subr.mxu0 0.0
    %409 = vmatpush2.msra.mxu0 0.0
    %410 = vmatprep.subr.mxu0 0.0
    %411 = vmatpush2.msra.mxu0 0.0
    %412 = vmatprep.subr.mxu0 0.0
    %413 = vmatpush2.msra.mxu0 0.0
    %414 = vmatprep.subr.mxu0 0.0
    %415 = vmatpush2.msra.mxu0 0.0
    %416 = vmatprep.subr.mxu0 0.0
    %417 = vmatpush2.msra.mxu0 0.0
    %418 = vmatprep.subr.mxu0 0.0
    %419 = vmatpush2.msra.mxu0 0.0
    %420 = vmatprep.subr.mxu0 0.0
    %421 = vmatpush2.msra.mxu0 0.0
    %422 = vmatprep.subr.mxu0 0.0
    %423 = vmatpush2.msra.mxu0 0.0
    %424 = vmatprep.subr.mxu0 0.0
    %425 = vmatpush2.msra.mxu0 0.0
    %426 = vmatprep.subr.mxu0 0.0
    %427 = vmatpush2.msra.mxu0 0.0
    %428 = vmatprep.subr.mxu0 0.0
    %429 = vmatpush2.msra.mxu0 0.0
    %430 = vmatprep.subr.mxu0 0.0
    %431 = vmatpush2.msra.mxu0 0.0
    %432 = vmatprep.subr.mxu0 0.0
    %433 = vmatpush2.msra.mxu0 0.0
    %434 = vmatprep.mubr.f32.mxu0 0.0
    %435 = vmatmul.mubr.f32.gmra.mxu0 %v368
    %v436 = vpop.f32.mrf.mxu0
    %v437 = vadd.f32 0.0, %v436
    %v438 = vpop.f32.mrf.mxu0
    %439 = vdwg.mxu0
    %v441 = vrot.slane %v437, 6
    %v443 = vadd.f32 %v150, %v441
    %v444 = vxor.u32 %v443, 2147483648
    %v445 = vmul.f32 %v444, 1.442695
    %v446 = vpow.pop %v445
    %v447 = vadd.f32 %v446, 1.0
    %v448 = vrcp.pop %v447
    %v449 = vmul.f32 1.0, %v448
    %v450 = vmul.f32 %v449, 2.0
    %v451 = vsub.f32 %v450, 1.0
    %v453 = vrot.slane %v357, 7
    %v455 = vmul.f32 %v449, %v453
    %457 = vrot.lane.b32.xlu0 %v451, 64
    %v458 = vpop.permute.xlu0 %457
    %v460 = vmul.f32 %v449, %v458
    %462 = vrot.lane.b32.xlu0 %v460, 32
    %v463 = vpop.permute.xlu0 %462
    %v465 = vadd.f32 %v455, %v463
    %v466 = vtanh.pop %v465
    %468 = vrot.lane.b32.xlu0 %v466, 64
    %v469 = vpop.permute.xlu0 %468
    %v471 = vmul.f32 %v449, %v469
    %v473 = vrot.slane %v471, 2
    %474 = vrot.lane.b32.xlu0 %v473, 32
    %v475 = vpop.permute.xlu0 %474
    %v476 = vsel %vm157, %v475, 0
    %478 = vmatprep.subr.mxu0 0.0
    %479 = vmatpush1.msra.mxu0 0.0
    %480 = vmatprep.subr.mxu0 0.0
    %481 = vmatpush1.msra.mxu0 0.0
    %482 = vmatprep.subr.mxu0 0.0
    %483 = vmatpush1.msra.mxu0 0.0
    %484 = vmatprep.subr.mxu0 0.0
    %485 = vmatpush1.msra.mxu0 0.0
    %486 = vmatprep.subr.mxu0 0.0
    %487 = vmatpush1.msra.mxu0 0.0
    %488 = vmatprep.subr.mxu0 0.0
    %489 = vmatpush1.msra.mxu0 0.0
    %490 = vmatprep.subr.mxu0 0.0
    %491 = vmatpush1.msra.mxu0 0.0
    %492 = vmatprep.subr.mxu0 0.0
    %493 = vmatpush1.msra.mxu0 0.0
    %494 = vmatprep.subr.mxu0 0.0
    %495 = vmatpush1.msra.mxu0 0.0
    %496 = vmatprep.subr.mxu0 0.0
    %497 = vmatpush1.msra.mxu0 0.0
    %498 = vmatprep.subr.mxu0 0.0
    %499 = vmatpush1.msra.mxu0 0.0
    %500 = vmatprep.subr.mxu0 0.0
    %501 = vmatpush1.msra.mxu0 0.0
    %502 = vmatprep.subr.mxu0 0.0
    %503 = vmatpush1.msra.mxu0 %v156
    %504 = vmatprep.subr.mxu0 0.0
    %505 = vmatpush1.msra.mxu0 %v155
    %506 = vmatprep.subr.mxu0 0.0
    %507 = vmatpush1.msra.mxu0 %v154
    %508 = vmatprep.subr.mxu0 0.0
    %509 = vmatpush1.msra.mxu0 %v153
    %510 = vmatprep.subr.mxu0 0.0
    %511 = vmatpush2.msra.mxu0 0.0
    %512 = vmatprep.subr.mxu0 0.0
    %513 = vmatpush2.msra.mxu0 0.0
    %514 = vmatprep.subr.mxu0 0.0
    %515 = vmatpush2.msra.mxu0 0.0
    %516 = vmatprep.subr.mxu0 0.0
    %517 = vmatpush2.msra.mxu0 0.0
    %518 = vmatprep.subr.mxu0 0.0
    %519 = vmatpush2.msra.mxu0 0.0
    %520 = vmatprep.subr.mxu0 0.0
    %521 = vmatpush2.msra.mxu0 0.0
    %522 = vmatprep.subr.mxu0 0.0
    %523 = vmatpush2.msra.mxu0 0.0
    %524 = vmatprep.subr.mxu0 0.0
    %525 = vmatpush2.msra.mxu0 0.0
    %526 = vmatprep.subr.mxu0 0.0
    %527 = vmatpush2.msra.mxu0 0.0
    %528 = vmatprep.subr.mxu0 0.0
    %529 = vmatpush2.msra.mxu0 0.0
    %530 = vmatprep.subr.mxu0 0.0
    %531 = vmatpush2.msra.mxu0 0.0
    %532 = vmatprep.subr.mxu0 0.0
    %533 = vmatpush2.msra.mxu0 0.0
    %534 = vmatprep.subr.mxu0 0.0
    %535 = vmatpush2.msra.mxu0 0.0
    %536 = vmatprep.subr.mxu0 0.0
    %537 = vmatpush2.msra.mxu0 0.0
    %538 = vmatprep.subr.mxu0 0.0
    %539 = vmatpush2.msra.mxu0 0.0
    %540 = vmatprep.subr.mxu0 0.0
    %541 = vmatpush2.msra.mxu0 0.0
    %542 = vmatprep.mubr.f32.mxu0 0.0
    %543 = vmatmul.mubr.f32.gmra.mxu0 %v476
    %v544 = vpop.f32.mrf.mxu0
    %v545 = vadd.f32 0.0, %v544
    %v546 = vpop.f32.mrf.mxu0
    %547 = vdwg.mxu0
    %v549 = vrot.slane %v545, 5
    %v551 = vadd.f32 %v150, %v549
    %v552 = vxor.u32 %v551, 2147483648
    %v553 = vmul.f32 %v552, 1.442695
    %v554 = vpow.pop %v553
    %v555 = vadd.f32 %v554, 1.0
    %v556 = vrcp.pop %v555
    %v557 = vmul.f32 1.0, %v556
    %v558 = vmul.f32 %v557, 2.0
    %v559 = vsub.f32 %v558, 1.0
    %v561 = vrot.slane %v465, 7
    %v563 = vmul.f32 %v557, %v561
    %565 = vrot.lane.b32.xlu0 %v559, 64
    %v566 = vpop.permute.xlu0 %565
    %v568 = vmul.f32 %v557, %v566
    %570 = vrot.lane.b32.xlu0 %v568, 32
    %v571 = vpop.permute.xlu0 %570
    %v573 = vadd.f32 %v563, %v571
    %v574 = vtanh.pop %v573
    %576 = vrot.lane.b32.xlu0 %v574, 64
    %v577 = vpop.permute.xlu0 %576
    %v579 = vmul.f32 %v557, %v577
    %v581 = vrot.slane %v579, 3
    %582 = vrot.lane.b32.xlu0 %v581, 32
    %v583 = vpop.permute.xlu0 %582
    %v584 = vsel %vm157, %v583, 0
    %586 = vmatprep.subr.mxu0 0.0
    %587 = vmatpush1.msra.mxu0 0.0
    %588 = vmatprep.subr.mxu0 0.0
    %589 = vmatpush1.msra.mxu0 0.0
    %590 = vmatprep.subr.mxu0 0.0
    %591 = vmatpush1.msra.mxu0 0.0
    %592 = vmatprep.subr.mxu0 0.0
    %593 = vmatpush1.msra.mxu0 0.0
    %594 = vmatprep.subr.mxu0 0.0
    %595 = vmatpush1.msra.mxu0 0.0
    %596 = vmatprep.subr.mxu0 0.0
    %597 = vmatpush1.msra.mxu0 0.0
    %598 = vmatprep.subr.mxu0 0.0
    %599 = vmatpush1.msra.mxu0 0.0
    %600 = vmatprep.subr.mxu0 0.0
    %601 = vmatpush1.msra.mxu0 0.0
    %602 = vmatprep.subr.mxu0 0.0
    %603 = vmatpush1.msra.mxu0 0.0
    %604 = vmatprep.subr.mxu0 0.0
    %605 = vmatpush1.msra.mxu0 0.0
    %606 = vmatprep.subr.mxu0 0.0
    %607 = vmatpush1.msra.mxu0 0.0
    %608 = vmatprep.subr.mxu0 0.0
    %609 = vmatpush1.msra.mxu0 0.0
    %610 = vmatprep.subr.mxu0 0.0
    %611 = vmatpush1.msra.mxu0 %v156
    %612 = vmatprep.subr.mxu0 0.0
    %613 = vmatpush1.msra.mxu0 %v155
    %614 = vmatprep.subr.mxu0 0.0
    %615 = vmatpush1.msra.mxu0 %v154
    %616 = vmatprep.subr.mxu0 0.0
    %617 = vmatpush1.msra.mxu0 %v153
    %618 = vmatprep.subr.mxu0 0.0
    %619 = vmatpush2.msra.mxu0 0.0
    %620 = vmatprep.subr.mxu0 0.0
    %621 = vmatpush2.msra.mxu0 0.0
    %622 = vmatprep.subr.mxu0 0.0
    %623 = vmatpush2.msra.mxu0 0.0
    %624 = vmatprep.subr.mxu0 0.0
    %625 = vmatpush2.msra.mxu0 0.0
    %626 = vmatprep.subr.mxu0 0.0
    %627 = vmatpush2.msra.mxu0 0.0
    %628 = vmatprep.subr.mxu0 0.0
    %629 = vmatpush2.msra.mxu0 0.0
    %630 = vmatprep.subr.mxu0 0.0
    %631 = vmatpush2.msra.mxu0 0.0
    %632 = vmatprep.subr.mxu0 0.0
    %633 = vmatpush2.msra.mxu0 0.0
    %634 = vmatprep.subr.mxu0 0.0
    %635 = vmatpush2.msra.mxu0 0.0
    %636 = vmatprep.subr.mxu0 0.0
    %637 = vmatpush2.msra.mxu0 0.0
    %638 = vmatprep.subr.mxu0 0.0
    %639 = vmatpush2.msra.mxu0 0.0
    %640 = vmatprep.subr.mxu0 0.0
    %641 = vmatpush2.msra.mxu0 0.0
    %642 = vmatprep.subr.mxu0 0.0
    %643 = vmatpush2.msra.mxu0 0.0
    %644 = vmatprep.subr.mxu0 0.0
    %645 = vmatpush2.msra.mxu0 0.0
    %646 = vmatprep.subr.mxu0 0.0
    %647 = vmatpush2.msra.mxu0 0.0
    %648 = vmatprep.subr.mxu0 0.0
    %649 = vmatpush2.msra.mxu0 0.0
    %650 = vmatprep.mubr.f32.mxu0 0.0
    %651 = vmatmul.mubr.f32.gmra.mxu0 %v584
    %v652 = vpop.f32.mrf.mxu0
    %v653 = vadd.f32 0.0, %v652
    %v654 = vpop.f32.mrf.mxu0
    %655 = vdwg.mxu0
    %v657 = vrot.slane %v653, 4
    %v659 = vadd.f32 %v150, %v657
    %v660 = vxor.u32 %v659, 2147483648
    %v661 = vmul.f32 %v660, 1.442695
    %v662 = vpow.pop %v661
    %v663 = vadd.f32 %v662, 1.0
    %v664 = vrcp.pop %v663
    %v665 = vmul.f32 1.0, %v664
    %v666 = vmul.f32 %v665, 2.0
    %v667 = vsub.f32 %v666, 1.0
    %v669 = vrot.slane %v573, 7
    %v671 = vmul.f32 %v665, %v669
    %673 = vrot.lane.b32.xlu0 %v667, 64
    %v674 = vpop.permute.xlu0 %673
    %v676 = vmul.f32 %v665, %v674
    %678 = vrot.lane.b32.xlu0 %v676, 32
    %v679 = vpop.permute.xlu0 %678
    %v681 = vadd.f32 %v671, %v679
    %v682 = vtanh.pop %v681
    %684 = vrot.lane.b32.xlu0 %v682, 64
    %v685 = vpop.permute.xlu0 %684
    %v687 = vmul.f32 %v665, %v685
    %v689 = vrot.slane %v687, 4
    %690 = vrot.lane.b32.xlu0 %v689, 32
    %v691 = vpop.permute.xlu0 %690
    %v692 = vsel %vm157, %v691, 0
    %694 = vmatprep.subr.mxu0 0.0
    %695 = vmatpush1.msra.mxu0 0.0
    %696 = vmatprep.subr.mxu0 0.0
    %697 = vmatpush1.msra.mxu0 0.0
    %698 = vmatprep.subr.mxu0 0.0
    %699 = vmatpush1.msra.mxu0 0.0
    %700 = vmatprep.subr.mxu0 0.0
    %701 = vmatpush1.msra.mxu0 0.0
    %702 = vmatprep.subr.mxu0 0.0
    %703 = vmatpush1.msra.mxu0 0.0
    %704 = vmatprep.subr.mxu0 0.0
    %705 = vmatpush1.msra.mxu0 0.0
    %706 = vmatprep.subr.mxu0 0.0
    %707 = vmatpush1.msra.mxu0 0.0
    %708 = vmatprep.subr.mxu0 0.0
    %709 = vmatpush1.msra.mxu0 0.0
    %710 = vmatprep.subr.mxu0 0.0
    %711 = vmatpush1.msra.mxu0 0.0
    %712 = vmatprep.subr.mxu0 0.0
    %713 = vmatpush1.msra.mxu0 0.0
    %714 = vmatprep.subr.mxu0 0.0
    %715 = vmatpush1.msra.mxu0 0.0
    %716 = vmatprep.subr.mxu0 0.0
    %717 = vmatpush1.msra.mxu0 0.0
    %718 = vmatprep.subr.mxu0 0.0
    %719 = vmatpush1.msra.mxu0 %v156
    %720 = vmatprep.subr.mxu0 0.0
    %721 = vmatpush1.msra.mxu0 %v155
    %722 = vmatprep.subr.mxu0 0.0
    %723 = vmatpush1.msra.mxu0 %v154
    %724 = vmatprep.subr.mxu0 0.0
    %725 = vmatpush1.msra.mxu0 %v153
    %726 = vmatprep.subr.mxu0 0.0
    %727 = vmatpush2.msra.mxu0 0.0
    %728 = vmatprep.subr.mxu0 0.0
    %729 = vmatpush2.msra.mxu0 0.0
    %730 = vmatprep.subr.mxu0 0.0
    %731 = vmatpush2.msra.mxu0 0.0
    %732 = vmatprep.subr.mxu0 0.0
    %733 = vmatpush2.msra.mxu0 0.0
    %734 = vmatprep.subr.mxu0 0.0
    %735 = vmatpush2.msra.mxu0 0.0
    %736 = vmatprep.subr.mxu0 0.0
    %737 = vmatpush2.msra.mxu0 0.0
    %738 = vmatprep.subr.mxu0 0.0
    %739 = vmatpush2.msra.mxu0 0.0
    %740 = vmatprep.subr.mxu0 0.0
    %741 = vmatpush2.msra.mxu0 0.0
    %742 = vmatprep.subr.mxu0 0.0
    %743 = vmatpush2.msra.mxu0 0.0
    %744 = vmatprep.subr.mxu0 0.0
    %745 = vmatpush2.msra.mxu0 0.0
    %746 = vmatprep.subr.mxu0 0.0
    %747 = vmatpush2.msra.mxu0 0.0
    %748 = vmatprep.subr.mxu0 0.0
    %749 = vmatpush2.msra.mxu0 0.0
    %750 = vmatprep.subr.mxu0 0.0
    %751 = vmatpush2.msra.mxu0 0.0
    %752 = vmatprep.subr.mxu0 0.0
    %753 = vmatpush2.msra.mxu0 0.0
    %754 = vmatprep.subr.mxu0 0.0
    %755 = vmatpush2.msra.mxu0 0.0
    %756 = vmatprep.subr.mxu0 0.0
    %757 = vmatpush2.msra.mxu0 0.0
    %758 = vmatprep.mubr.f32.mxu0 0.0
    %759 = vmatmul.mubr.f32.gmra.mxu0 %v692
    %v760 = vpop.f32.mrf.mxu0
    %v761 = vadd.f32 0.0, %v760
    %v762 = vpop.f32.mrf.mxu0
    %763 = vdwg.mxu0
    %v765 = vrot.slane %v761, 3
    %v767 = vadd.f32 %v150, %v765
    %v768 = vxor.u32 %v767, 2147483648
    %v769 = vmul.f32 %v768, 1.442695
    %v770 = vpow.pop %v769
    %v771 = vadd.f32 %v770, 1.0
    %v772 = vrcp.pop %v771
    %v773 = vmul.f32 1.0, %v772
    %v774 = vmul.f32 %v773, 2.0
    %v775 = vsub.f32 %v774, 1.0
    %v777 = vrot.slane %v681, 7
    %v779 = vmul.f32 %v773, %v777
    %781 = vrot.lane.b32.xlu0 %v775, 64
    %v782 = vpop.permute.xlu0 %781
    %v784 = vmul.f32 %v773, %v782
    %786 = vrot.lane.b32.xlu0 %v784, 32
    %v787 = vpop.permute.xlu0 %786
    %v789 = vadd.f32 %v779, %v787
    %v790 = vtanh.pop %v789
    %792 = vrot.lane.b32.xlu0 %v790, 64
    %v793 = vpop.permute.xlu0 %792
    %v795 = vmul.f32 %v773, %v793
    %v797 = vrot.slane %v795, 5
    %798 = vrot.lane.b32.xlu0 %v797, 32
    %v799 = vpop.permute.xlu0 %798
    %v800 = vsel %vm157, %v799, 0
    %802 = vmatprep.subr.mxu0 0.0
    %803 = vmatpush1.msra.mxu0 0.0
    %804 = vmatprep.subr.mxu0 0.0
    %805 = vmatpush1.msra.mxu0 0.0
    %806 = vmatprep.subr.mxu0 0.0
    %807 = vmatpush1.msra.mxu0 0.0
    %808 = vmatprep.subr.mxu0 0.0
    %809 = vmatpush1.msra.mxu0 0.0
    %810 = vmatprep.subr.mxu0 0.0
    %811 = vmatpush1.msra.mxu0 0.0
    %812 = vmatprep.subr.mxu0 0.0
    %813 = vmatpush1.msra.mxu0 0.0
    %814 = vmatprep.subr.mxu0 0.0
    %815 = vmatpush1.msra.mxu0 0.0
    %816 = vmatprep.subr.mxu0 0.0
    %817 = vmatpush1.msra.mxu0 0.0
    %818 = vmatprep.subr.mxu0 0.0
    %819 = vmatpush1.msra.mxu0 0.0
    %820 = vmatprep.subr.mxu0 0.0
    %821 = vmatpush1.msra.mxu0 0.0
    %822 = vmatprep.subr.mxu0 0.0
    %823 = vmatpush1.msra.mxu0 0.0
    %824 = vmatprep.subr.mxu0 0.0
    %825 = vmatpush1.msra.mxu0 0.0
    %826 = vmatprep.subr.mxu0 0.0
    %827 = vmatpush1.msra.mxu0 %v156
    %828 = vmatprep.subr.mxu0 0.0
    %829 = vmatpush1.msra.mxu0 %v155
    %830 = vmatprep.subr.mxu0 0.0
    %831 = vmatpush1.msra.mxu0 %v154
    %832 = vmatprep.subr.mxu0 0.0
    %833 = vmatpush1.msra.mxu0 %v153
    %834 = vmatprep.subr.mxu0 0.0
    %835 = vmatpush2.msra.mxu0 0.0
    %836 = vmatprep.subr.mxu0 0.0
    %837 = vmatpush2.msra.mxu0 0.0
    %838 = vmatprep.subr.mxu0 0.0
    %839 = vmatpush2.msra.mxu0 0.0
    %840 = vmatprep.subr.mxu0 0.0
    %841 = vmatpush2.msra.mxu0 0.0
    %842 = vmatprep.subr.mxu0 0.0
    %843 = vmatpush2.msra.mxu0 0.0
    %844 = vmatprep.subr.mxu0 0.0
    %845 = vmatpush2.msra.mxu0 0.0
    %846 = vmatprep.subr.mxu0 0.0
    %847 = vmatpush2.msra.mxu0 0.0
    %848 = vmatprep.subr.mxu0 0.0
    %849 = vmatpush2.msra.mxu0 0.0
    %850 = vmatprep.subr.mxu0 0.0
    %851 = vmatpush2.msra.mxu0 0.0
    %852 = vmatprep.subr.mxu0 0.0
    %853 = vmatpush2.msra.mxu0 0.0
    %854 = vmatprep.subr.mxu0 0.0
    %855 = vmatpush2.msra.mxu0 0.0
    %856 = vmatprep.subr.mxu0 0.0
    %857 = vmatpush2.msra.mxu0 0.0
    %858 = vmatprep.subr.mxu0 0.0
    %859 = vmatpush2.msra.mxu0 0.0
    %860 = vmatprep.subr.mxu0 0.0
    %861 = vmatpush2.msra.mxu0 0.0
    %862 = vmatprep.subr.mxu0 0.0
    %863 = vmatpush2.msra.mxu0 0.0
    %864 = vmatprep.subr.mxu0 0.0
    %865 = vmatpush2.msra.mxu0 0.0
    %866 = vmatprep.mubr.f32.mxu0 0.0
    %867 = vmatmul.mubr.f32.gmra.mxu0 %v800
    %v868 = vpop.f32.mrf.mxu0
    %v869 = vadd.f32 0.0, %v868
    %v870 = vpop.f32.mrf.mxu0
    %871 = vdwg.mxu0
    %v873 = vrot.slane %v869, 2
    %v875 = vadd.f32 %v150, %v873
    %v876 = vxor.u32 %v875, 2147483648
    %v877 = vmul.f32 %v876, 1.442695
    %v878 = vpow.pop %v877
    %v879 = vadd.f32 %v878, 1.0
    %v880 = vrcp.pop %v879
    %v881 = vmul.f32 1.0, %v880
    %v882 = vmul.f32 %v881, 2.0
    %v883 = vsub.f32 %v882, 1.0
    %v885 = vrot.slane %v789, 7
    %v887 = vmul.f32 %v881, %v885
    %889 = vrot.lane.b32.xlu0 %v883, 64
    %v890 = vpop.permute.xlu0 %889
    %v892 = vmul.f32 %v881, %v890
    %894 = vrot.lane.b32.xlu0 %v892, 32
    %v895 = vpop.permute.xlu0 %894
    %v897 = vadd.f32 %v887, %v895
    %v898 = vtanh.pop %v897
    %900 = vrot.lane.b32.xlu0 %v898, 64
    %v901 = vpop.permute.xlu0 %900
    %v903 = vmul.f32 %v881, %v901
    %v905 = vrot.slane %v903, 6
    %906 = vrot.lane.b32.xlu0 %v905, 32
    %v907 = vpop.permute.xlu0 %906
    %v908 = vsel %vm157, %v907, 0
    %910 = vmatprep.subr.mxu0 0.0
    %911 = vmatpush1.msra.mxu0 0.0
    %912 = vmatprep.subr.mxu0 0.0
    %913 = vmatpush1.msra.mxu0 0.0
    %914 = vmatprep.subr.mxu0 0.0
    %915 = vmatpush1.msra.mxu0 0.0
    %916 = vmatprep.subr.mxu0 0.0
    %917 = vmatpush1.msra.mxu0 0.0
    %918 = vmatprep.subr.mxu0 0.0
    %919 = vmatpush1.msra.mxu0 0.0
    %920 = vmatprep.subr.mxu0 0.0
    %921 = vmatpush1.msra.mxu0 0.0
    %922 = vmatprep.subr.mxu0 0.0
    %923 = vmatpush1.msra.mxu0 0.0
    %924 = vmatprep.subr.mxu0 0.0
    %925 = vmatpush1.msra.mxu0 0.0
    %926 = vmatprep.subr.mxu0 0.0
    %927 = vmatpush1.msra.mxu0 0.0
    %928 = vmatprep.subr.mxu0 0.0
    %929 = vmatpush1.msra.mxu0 0.0
    %930 = vmatprep.subr.mxu0 0.0
    %931 = vmatpush1.msra.mxu0 0.0
    %932 = vmatprep.subr.mxu0 0.0
    %933 = vmatpush1.msra.mxu0 0.0
    %934 = vmatprep.subr.mxu0 0.0
    %935 = vmatpush1.msra.mxu0 %v156
    %936 = vmatprep.subr.mxu0 0.0
    %937 = vmatpush1.msra.mxu0 %v155
    %938 = vmatprep.subr.mxu0 0.0
    %939 = vmatpush1.msra.mxu0 %v154
    %940 = vmatprep.subr.mxu0 0.0
    %941 = vmatpush1.msra.mxu0 %v153
    %942 = vmatprep.subr.mxu0 0.0
    %943 = vmatpush2.msra.mxu0 0.0
    %944 = vmatprep.subr.mxu0 0.0
    %945 = vmatpush2.msra.mxu0 0.0
    %946 = vmatprep.subr.mxu0 0.0
    %947 = vmatpush2.msra.mxu0 0.0
    %948 = vmatprep.subr.mxu0 0.0
    %949 = vmatpush2.msra.mxu0 0.0
    %950 = vmatprep.subr.mxu0 0.0
    %951 = vmatpush2.msra.mxu0 0.0
    %952 = vmatprep.subr.mxu0 0.0
    %953 = vmatpush2.msra.mxu0 0.0
    %954 = vmatprep.subr.mxu0 0.0
    %955 = vmatpush2.msra.mxu0 0.0
    %956 = vmatprep.subr.mxu0 0.0
    %957 = vmatpush2.msra.mxu0 0.0
    %958 = vmatprep.subr.mxu0 0.0
    %959 = vmatpush2.msra.mxu0 0.0
    %960 = vmatprep.subr.mxu0 0.0
    %961 = vmatpush2.msra.mxu0 0.0
    %962 = vmatprep.subr.mxu0 0.0
    %963 = vmatpush2.msra.mxu0 0.0
    %964 = vmatprep.subr.mxu0 0.0
    %965 = vmatpush2.msra.mxu0 0.0
    %966 = vmatprep.subr.mxu0 0.0
    %967 = vmatpush2.msra.mxu0 0.0
    %968 = vmatprep.subr.mxu0 0.0
    %969 = vmatpush2.msra.mxu0 0.0
    %970 = vmatprep.subr.mxu0 0.0
    %971 = vmatpush2.msra.mxu0 0.0
    %972 = vmatprep.subr.mxu0 0.0
    %973 = vmatpush2.msra.mxu0 0.0
    %974 = vmatprep.mubr.f32.mxu0 0.0
    %975 = vmatmul.mubr.f32.gmra.mxu0 %v908
    %v976 = vpop.f32.mrf.mxu0
    %v977 = vadd.f32 0.0, %v976
    %v978 = vpop.f32.mrf.mxu0
    %979 = vdwg.mxu0
    %v981 = vrot.slane %v977, 1
    %v983 = vadd.f32 %v150, %v981
    %v984 = vxor.u32 %v983, 2147483648
    %v985 = vmul.f32 %v984, 1.442695
    %v986 = vpow.pop %v985
    %v987 = vadd.f32 %v986, 1.0
    %v988 = vrcp.pop %v987
    %v989 = vmul.f32 1.0, %v988
    %v990 = vmul.f32 %v989, 2.0
    %v991 = vsub.f32 %v990, 1.0
    %v993 = vrot.slane %v897, 7
    %v995 = vmul.f32 %v989, %v993
    %997 = vrot.lane.b32.xlu0 %v991, 64
    %v998 = vpop.permute.xlu0 %997
    %v1000 = vmul.f32 %v989, %v998
    %1002 = vrot.lane.b32.xlu0 %v1000, 32
    %v1003 = vpop.permute.xlu0 %1002
    %v1005 = vadd.f32 %v995, %v1003
    %v1006 = vtanh.pop %v1005
    %1008 = vrot.lane.b32.xlu0 %v1006, 64
    %v1009 = vpop.permute.xlu0 %1008
    %v1011 = vmul.f32 %v989, %v1009
    %v1012 = vld [vmem:[#allocation5] sm:$0xff]
    %v1013 = vld [vmem:[#allocation5 + $0x8] sm:$0xff]
    %v1014 = vld [vmem:[#allocation7] sm:$0xff]
    %v1015 = vld [vmem:[#allocation7 + $0x8] sm:$0xff]
    %v1016 = vld [vmem:[#allocation7 + $0x10] sm:$0xff]
    %v1017 = vld [vmem:[#allocation7 + $0x18] sm:$0xff]
    %v1018 = vld [vmem:[#allocation7 + $0x20] sm:$0xff]
    %v1019 = vld [vmem:[#allocation7 + $0x28] sm:$0xff]
    %v1020 = vld [vmem:[#allocation7 + $0x30] sm:$0xff]
    %v1021 = vld [vmem:[#allocation7 + $0x38] sm:$0xff]
    %v1022 = vld [vmem:[%s6] sm:$0x1]
    %v1023 = vld [vmem:[%s3] sm:$0x1]
    %1024 = vset.pattern.permute.xlu0 0
    %1025 = vperm.xlu0 %1024, %v1023
    %v1026 = vpop.permute.xlu0 %1025
    %vm1027 = vcmp.eq.s32.totalorder %v1026, %v69
    %v1028 = vsel %vm1027, 1, 0
    %v1029 = vcvt.s32.f32 %v1028
    %v1031 = vrot.slane %v1011, 7
    %1032 = vrot.lane.b32.xlu0 %v1031, 32
    %v1033 = vpop.permute.xlu0 %1032
    %v1034 = vsel %vm157, %v1033, 0
    %1036 = vmatprep.subr.mxu0 0.0
    %1037 = vmatpush1.msra.mxu0 0.0
    %1038 = vmatprep.subr.mxu0 0.0
    %1039 = vmatpush1.msra.mxu0 0.0
    %1040 = vmatprep.subr.mxu0 0.0
    %1041 = vmatpush1.msra.mxu0 0.0
    %1042 = vmatprep.subr.mxu0 0.0
    %1043 = vmatpush1.msra.mxu0 0.0
    %1044 = vmatprep.subr.mxu0 0.0
    %1045 = vmatpush1.msra.mxu0 0.0
    %1046 = vmatprep.subr.mxu0 0.0
    %1047 = vmatpush1.msra.mxu0 0.0
    %1048 = vmatprep.subr.mxu0 0.0
    %1049 = vmatpush1.msra.mxu0 0.0
    %1050 = vmatprep.subr.mxu0 0.0
    %1051 = vmatpush1.msra.mxu0 0.0
    %1052 = vmatprep.subr.mxu0 0.0
    %1053 = vmatpush1.msra.mxu0 0.0
    %1054 = vmatprep.subr.mxu0 0.0
    %1055 = vmatpush1.msra.mxu0 0.0
    %1056 = vmatprep.subr.mxu0 0.0
    %1057 = vmatpush1.msra.mxu0 0.0
    %1058 = vmatprep.subr.mxu0 0.0
    %1059 = vmatpush1.msra.mxu0 0.0
    %1060 = vmatprep.subr.mxu0 %v1021
    %1061 = vmatpush1.msra.mxu0 %v1020
    %1062 = vmatprep.subr.mxu0 %v1019
    %1063 = vmatpush1.msra.mxu0 %v1018
    %1064 = vmatprep.subr.mxu0 %v1017
    %1065 = vmatpush1.msra.mxu0 %v1016
    %1066 = vmatprep.subr.mxu0 %v1015
    %1067 = vmatpush1.msra.mxu0 %v1014
    %1068 = vmatprep.subr.mxu0 0.0
    %1069 = vmatpush2.msra.mxu0 0.0
    %1070 = vmatprep.subr.mxu0 0.0
    %1071 = vmatpush2.msra.mxu0 0.0
    %1072 = vmatprep.subr.mxu0 0.0
    %1073 = vmatpush2.msra.mxu0 0.0
    %1074 = vmatprep.subr.mxu0 0.0
    %1075 = vmatpush2.msra.mxu0 0.0
    %1076 = vmatprep.subr.mxu0 0.0
    %1077 = vmatpush2.msra.mxu0 0.0
    %1078 = vmatprep.subr.mxu0 0.0
    %1079 = vmatpush2.msra.mxu0 0.0
    %1080 = vmatprep.subr.mxu0 0.0
    %1081 = vmatpush2.msra.mxu0 0.0
    %1082 = vmatprep.subr.mxu0 0.0
    %1083 = vmatpush2.msra.mxu0 0.0
    %1084 = vmatprep.subr.mxu0 0.0
    %1085 = vmatpush2.msra.mxu0 0.0
    %1086 = vmatprep.subr.mxu0 0.0
    %1087 = vmatpush2.msra.mxu0 0.0
    %1088 = vmatprep.subr.mxu0 0.0
    %1089 = vmatpush2.msra.mxu0 0.0
    %1090 = vmatprep.subr.mxu0 0.0
    %1091 = vmatpush2.msra.mxu0 0.0
    %1092 = vmatprep.subr.mxu0 0.0
    %1093 = vmatpush2.msra.mxu0 0.0
    %1094 = vmatprep.subr.mxu0 0.0
    %1095 = vmatpush2.msra.mxu0 0.0
    %1096 = vmatprep.subr.mxu0 0.0
    %1097 = vmatpush2.msra.mxu0 0.0
    %1098 = vmatprep.subr.mxu0 0.0
    %1099 = vmatpush2.msra.mxu0 0.0
    %1100 = vmatprep.mubr.f32.mxu0 0.0
    %1101 = vmatmul.mubr.f32.gmra.mxu0 %v1034
    %v1102 = vpop.f32.mrf.mxu0
    %v1103 = vadd.f32 0.0, %v1102
    %v1104 = vpop.f32.mrf.mxu0
    %1105 = vdwg.mxu0
    %v1107 = vsel %vm79, %v1029, 0
    %1109 = vmatprep.subr.mxu0 0.0
    %1110 = vmatpush1.msra.mxu0 0.0
    %1111 = vmatprep.subr.mxu0 0.0
    %1112 = vmatpush1.msra.mxu0 0.0
    %1113 = vmatprep.subr.mxu0 0.0
    %1114 = vmatpush1.msra.mxu0 0.0
    %1115 = vmatprep.subr.mxu0 0.0
    %1116 = vmatpush1.msra.mxu0 0.0
    %1117 = vmatprep.subr.mxu0 0.0
    %1118 = vmatpush1.msra.mxu0 0.0
    %1119 = vmatprep.subr.mxu0 0.0
    %1120 = vmatpush1.msra.mxu0 0.0
    %1121 = vmatprep.subr.mxu0 0.0
    %1122 = vmatpush1.msra.mxu0 0.0
    %1123 = vmatprep.subr.mxu0 0.0
    %1124 = vmatpush1.msra.mxu0 0.0
    %1125 = vmatprep.subr.mxu0 0.0
    %1126 = vmatpush1.msra.mxu0 0.0
    %1127 = vmatprep.subr.mxu0 0.0
    %1128 = vmatpush1.msra.mxu0 0.0
    %1129 = vmatprep.subr.mxu0 0.0
    %1130 = vmatpush1.msra.mxu0 0.0
    %1131 = vmatprep.subr.mxu0 0.0
    %1132 = vmatpush1.msra.mxu0 0.0
    %1133 = vmatprep.subr.mxu0 0.0
    %1134 = vmatpush1.msra.mxu0 0.0
    %1135 = vmatprep.subr.mxu0 0.0
    %1136 = vmatpush1.msra.mxu0 0.0
    %1137 = vmatprep.subr.mxu0 0.0
    %1138 = vmatpush1.msra.mxu0 %v1013
    %1139 = vmatprep.subr.mxu0 0.0
    %1140 = vmatpush1.msra.mxu0 %v1012
    %1141 = vmatprep.subr.mxu0 0.0
    %1142 = vmatpush2.msra.mxu0 0.0
    %1143 = vmatprep.subr.mxu0 0.0
    %1144 = vmatpush2.msra.mxu0 0.0
    %1145 = vmatprep.subr.mxu0 0.0
    %1146 = vmatpush2.msra.mxu0 0.0
    %1147 = vmatprep.subr.mxu0 0.0
    %1148 = vmatpush2.msra.mxu0 0.0
    %1149 = vmatprep.subr.mxu0 0.0
    %1150 = vmatpush2.msra.mxu0 0.0
    %1151 = vmatprep.subr.mxu0 0.0
    %1152 = vmatpush2.msra.mxu0 0.0
    %1153 = vmatprep.subr.mxu0 0.0
    %1154 = vmatpush2.msra.mxu0 0.0
    %1155 = vmatprep.subr.mxu0 0.0
    %1156 = vmatpush2.msra.mxu0 0.0
    %1157 = vmatprep.subr.mxu0 0.0
    %1158 = vmatpush2.msra.mxu0 0.0
    %1159 = vmatprep.subr.mxu0 0.0
    %1160 = vmatpush2.msra.mxu0 0.0
    %1161 = vmatprep.subr.mxu0 0.0
    %1162 = vmatpush2.msra.mxu0 0.0
    %1163 = vmatprep.subr.mxu0 0.0
    %1164 = vmatpush2.msra.mxu0 0.0
    %1165 = vmatprep.subr.mxu0 0.0
    %1166 = vmatpush2.msra.mxu0 0.0
    %1167 = vmatprep.subr.mxu0 0.0
    %1168 = vmatpush2.msra.mxu0 0.0
    %1169 = vmatprep.subr.mxu0 0.0
    %1170 = vmatpush2.msra.mxu0 0.0
    %1171 = vmatprep.subr.mxu0 0.0
    %1172 = vmatpush2.msra.mxu0 0.0
    %1173 = vmatprep.mubr.f32.mxu0 0.0
    %1174 = vmatmul.mubr.f32.gmra.mxu0 %v1107
    %v1175 = vpop.f32.mrf.mxu0
    %v1176 = vadd.f32 %v1103, %v1175
    %v1177 = vpop.f32.mrf.mxu0
    %1178 = vdwg.mxu0
    %v1179 = vxor.u32 %v1176, 2147483648
    %v1180 = vmul.f32 %v1179, 1.442695
    %v1181 = vpow.pop %v1180
    %v1182 = vadd.f32 %v1181, 1.0
    %v1183 = vrcp.pop %v1182
    %v1184 = vmul.f32 1.0, %v1183
    %v1185 = vmul.f32 %v1184, 2.0
    %v1186 = vsub.f32 %v1185, 1.0
    %v1188 = vrot.slane %v1005, 7
    %v1190 = vmul.f32 %v1184, %v1188
    %1192 = vrot.lane.b32.xlu0 %v1186, 64
    %v1193 = vpop.permute.xlu0 %1192
    %v1195 = vmul.f32 %v1184, %v1193
    %1197 = vrot.lane.b32.xlu0 %v1195, 32
    %v1198 = vpop.permute.xlu0 %1197
    %v1200 = vadd.f32 %v1190, %v1198
    %v1201 = vtanh.pop %v1200
    %1203 = vrot.lane.b32.xlu0 %v1201, 64
    %v1204 = vpop.permute.xlu0 %1203
    %v1206 = vmul.f32 %v1184, %v1204
    %1208 = vrot.lane.b32.xlu0 %v1206, 32
    %v1209 = vpop.permute.xlu0 %1208
    %v1210 = vsel %vm157, %v1209, 0
    %1212 = vmatprep.subr.mxu0 0.0
    %1213 = vmatpush1.msra.mxu0 0.0
    %1214 = vmatprep.subr.mxu0 0.0
    %1215 = vmatpush1.msra.mxu0 0.0
    %1216 = vmatprep.subr.mxu0 0.0
    %1217 = vmatpush1.msra.mxu0 0.0
    %1218 = vmatprep.subr.mxu0 0.0
    %1219 = vmatpush1.msra.mxu0 0.0
    %1220 = vmatprep.subr.mxu0 0.0
    %1221 = vmatpush1.msra.mxu0 0.0
    %1222 = vmatprep.subr.mxu0 0.0
    %1223 = vmatpush1.msra.mxu0 0.0
    %1224 = vmatprep.subr.mxu0 0.0
    %1225 = vmatpush1.msra.mxu0 0.0
    %1226 = vmatprep.subr.mxu0 0.0
    %1227 = vmatpush1.msra.mxu0 0.0
    %1228 = vmatprep.subr.mxu0 0.0
    %1229 = vmatpush1.msra.mxu0 0.0
    %1230 = vmatprep.subr.mxu0 0.0
    %1231 = vmatpush1.msra.mxu0 0.0
    %1232 = vmatprep.subr.mxu0 0.0
    %1233 = vmatpush1.msra.mxu0 0.0
    %1234 = vmatprep.subr.mxu0 0.0
    %1235 = vmatpush1.msra.mxu0 0.0
    %1236 = vmatprep.subr.mxu0 %v1021
    %1237 = vmatpush1.msra.mxu0 %v1020
    %1238 = vmatprep.subr.mxu0 %v1019
    %1239 = vmatpush1.msra.mxu0 %v1018
    %1240 = vmatprep.subr.mxu0 %v1017
    %1241 = vmatpush1.msra.mxu0 %v1016
    %1242 = vmatprep.subr.mxu0 %v1015
    %1243 = vmatpush1.msra.mxu0 %v1014
    %1244 = vmatprep.subr.mxu0 0.0
    %1245 = vmatpush2.msra.mxu0 0.0
    %1246 = vmatprep.subr.mxu0 0.0
    %1247 = vmatpush2.msra.mxu0 0.0
    %1248 = vmatprep.subr.mxu0 0.0
    %1249 = vmatpush2.msra.mxu0 0.0
    %1250 = vmatprep.subr.mxu0 0.0
    %1251 = vmatpush2.msra.mxu0 0.0
    %1252 = vmatprep.subr.mxu0 0.0
    %1253 = vmatpush2.msra.mxu0 0.0
    %1254 = vmatprep.subr.mxu0 0.0
    %1255 = vmatpush2.msra.mxu0 0.0
    %1256 = vmatprep.subr.mxu0 0.0
    %1257 = vmatpush2.msra.mxu0 0.0
    %1258 = vmatprep.subr.mxu0 0.0
    %1259 = vmatpush2.msra.mxu0 0.0
    %1260 = vmatprep.subr.mxu0 0.0
    %1261 = vmatpush2.msra.mxu0 0.0
    %1262 = vmatprep.subr.mxu0 0.0
    %1263 = vmatpush2.msra.mxu0 0.0
    %1264 = vmatprep.subr.mxu0 0.0
    %1265 = vmatpush2.msra.mxu0 0.0
    %1266 = vmatprep.subr.mxu0 0.0
    %1267 = vmatpush2.msra.mxu0 0.0
    %1268 = vmatprep.subr.mxu0 0.0
    %1269 = vmatpush2.msra.mxu0 0.0
    %1270 = vmatprep.subr.mxu0 0.0
    %1271 = vmatpush2.msra.mxu0 0.0
    %1272 = vmatprep.subr.mxu0 0.0
    %1273 = vmatpush2.msra.mxu0 0.0
    %1274 = vmatprep.subr.mxu0 0.0
    %1275 = vmatpush2.msra.mxu0 0.0
    %1276 = vmatprep.mubr.f32.mxu0 0.0
    %1277 = vmatmul.mubr.f32.gmra.mxu0 %v1210
    %v1278 = vpop.f32.mrf.mxu0
    %v1279 = vadd.f32 0.0, %v1278
    %v1280 = vpop.f32.mrf.mxu0
    %v1281 = vadd.f32 0.0, %v1280
    %1282 = vdwg.mxu0
    %v1283 = vadd.f32 %v1281, %v1022
    %vm1284 = vcmask 122880
    %v1285 = vsel %vm1284, %v1283, -inf
    %1286 = vmax.xlane.f32.xlu0 %v1285
    %v1287 = vpop.xlane.xlu0 %1286
    %vm1288 = vcmp.eq.f32.partialorder %v1283, %v1287
    %v1289 = vsel %vm1288, 1, 0
    %v1290 = vcvt.s32.f32 %v1289
    %v1291 = vsub.f32 %v1283, %v1287
    %v1292 = vmul.f32 %v1291, 1.442695
    %v1293 = vpow.pop %v1292
    %v1294 = vsel %vm1284, %v1293, 0.0
    %1295 = vadd.xlane.f32.xlu0 %v1294
    %v1296 = vpop.xlane.xlu0 %1295
    %v1297 = vlog2.pop %v1296
    %v1298 = vmul.f32 %v1297, 0.6931472
    %v1299 = vadd.f32 %v1287, %v1298
    %v1300 = vsub.f32 %v1283, %v1299
    %1301 = vst.msk [vmem:[#allocation8] sm:$0x1] %vm1284, %v1300
    %v1303 = vsel %vm79, %v1290, 0
    %1305 = vmatprep.subr.mxu0 0.0
    %1306 = vmatpush1.msra.mxu0 0.0
    %1307 = vmatprep.subr.mxu0 0.0
    %1308 = vmatpush1.msra.mxu0 0.0
    %1309 = vmatprep.subr.mxu0 0.0
    %1310 = vmatpush1.msra.mxu0 0.0
    %1311 = vmatprep.subr.mxu0 0.0
    %1312 = vmatpush1.msra.mxu0 0.0
    %1313 = vmatprep.subr.mxu0 0.0
    %1314 = vmatpush1.msra.mxu0 0.0
    %1315 = vmatprep.subr.mxu0 0.0
    %1316 = vmatpush1.msra.mxu0 0.0
    %1317 = vmatprep.subr.mxu0 0.0
    %1318 = vmatpush1.msra.mxu0 0.0
    %1319 = vmatprep.subr.mxu0 0.0
    %1320 = vmatpush1.msra.mxu0 0.0
    %1321 = vmatprep.subr.mxu0 0.0
    %1322 = vmatpush1.msra.mxu0 0.0
    %1323 = vmatprep.subr.mxu0 0.0
    %1324 = vmatpush1.msra.mxu0 0.0
    %1325 = vmatprep.subr.mxu0 0.0
    %1326 = vmatpush1.msra.mxu0 0.0
    %1327 = vmatprep.subr.mxu0 0.0
    %1328 = vmatpush1.msra.mxu0 0.0
    %1329 = vmatprep.subr.mxu0 0.0
    %1330 = vmatpush1.msra.mxu0 0.0
    %1331 = vmatprep.subr.mxu0 0.0
    %1332 = vmatpush1.msra.mxu0 0.0
    %1333 = vmatprep.subr.mxu0 0.0
    %1334 = vmatpush1.msra.mxu0 %v1013
    %1335 = vmatprep.subr.mxu0 0.0
    %1336 = vmatpush1.msra.mxu0 %v1012
    %1337 = vmatprep.subr.mxu0 0.0
    %1338 = vmatpush2.msra.mxu0 0.0
    %1339 = vmatprep.subr.mxu0 0.0
    %1340 = vmatpush2.msra.mxu0 0.0
    %1341 = vmatprep.subr.mxu0 0.0
    %1342 = vmatpush2.msra.mxu0 0.0
    %1343 = vmatprep.subr.mxu0 0.0
    %1344 = vmatpush2.msra.mxu0 0.0
    %1345 = vmatprep.subr.mxu0 0.0
    %1346 = vmatpush2.msra.mxu0 0.0
    %1347 = vmatprep.subr.mxu0 0.0
    %1348 = vmatpush2.msra.mxu0 0.0
    %1349 = vmatprep.subr.mxu0 0.0
    %1350 = vmatpush2.msra.mxu0 0.0
    %1351 = vmatprep.subr.mxu0 0.0
    %1352 = vmatpush2.msra.mxu0 0.0
    %1353 = vmatprep.subr.mxu0 0.0
    %1354 = vmatpush2.msra.mxu0 0.0
    %1355 = vmatprep.subr.mxu0 0.0
    %1356 = vmatpush2.msra.mxu0 0.0
    %1357 = vmatprep.subr.mxu0 0.0
    %1358 = vmatpush2.msra.mxu0 0.0
    %1359 = vmatprep.subr.mxu0 0.0
    %1360 = vmatpush2.msra.mxu0 0.0
    %1361 = vmatprep.subr.mxu0 0.0
    %1362 = vmatpush2.msra.mxu0 0.0
    %1363 = vmatprep.subr.mxu0 0.0
    %1364 = vmatpush2.msra.mxu0 0.0
    %1365 = vmatprep.subr.mxu0 0.0
    %1366 = vmatpush2.msra.mxu0 0.0
    %1367 = vmatprep.subr.mxu0 0.0
    %1368 = vmatpush2.msra.mxu0 0.0
    %1369 = vmatprep.mubr.f32.mxu0 0.0
    %1370 = vmatmul.mubr.f32.gmra.mxu0 %v1303
    %v1371 = vpop.f32.mrf.mxu0
    %v1372 = vadd.f32 %v1279, %v1371
    %v1373 = vpop.f32.mrf.mxu0
    %1374 = vdwg.mxu0
    %v1375 = vxor.u32 %v1372, 2147483648
    %v1376 = vmul.f32 %v1375, 1.442695
    %v1377 = vpow.pop %v1376
    %v1378 = vadd.f32 %v1377, 1.0
    %v1379 = vrcp.pop %v1378
    %v1380 = vmul.f32 1.0, %v1379
    %v1381 = vmul.f32 %v1380, 2.0
    %v1382 = vsub.f32 %v1381, 1.0
    %v1383 = vmul.f32 %v1380, %v1200
    %1385 = vrot.lane.b32.xlu0 %v1382, 64
    %v1386 = vpop.permute.xlu0 %1385
    %v1388 = vmul.f32 %v1380, %v1386
    %1390 = vrot.lane.b32.xlu0 %v1388, 32
    %v1391 = vpop.permute.xlu0 %1390
    %v1393 = vadd.f32 %v1383, %v1391
    %v1394 = vtanh.pop %v1393
    %1396 = vrot.lane.b32.xlu0 %v1394, 64
    %v1397 = vpop.permute.xlu0 %1396
    %v1399 = vmul.f32 %v1380, %v1397
    %1401 = vrot.lane.b32.xlu0 %v1399, 32
    %v1402 = vpop.permute.xlu0 %1401
    %v1403 = vsel %vm157, %v1402, 0
    %1405 = vmatprep.subr.mxu0 0.0
    %1406 = vmatpush1.msra.mxu0 0.0
    %1407 = vmatprep.subr.mxu0 0.0
    %1408 = vmatpush1.msra.mxu0 0.0
    %1409 = vmatprep.subr.mxu0 0.0
    %1410 = vmatpush1.msra.mxu0 0.0
    %1411 = vmatprep.subr.mxu0 0.0
    %1412 = vmatpush1.msra.mxu0 0.0
    %1413 = vmatprep.subr.mxu0 0.0
    %1414 = vmatpush1.msra.mxu0 0.0
    %1415 = vmatprep.subr.mxu0 0.0
    %1416 = vmatpush1.msra.mxu0 0.0
    %1417 = vmatprep.subr.mxu0 0.0
    %1418 = vmatpush1.msra.mxu0 0.0
    %1419 = vmatprep.subr.mxu0 0.0
    %1420 = vmatpush1.msra.mxu0 0.0
    %1421 = vmatprep.subr.mxu0 0.0
    %1422 = vmatpush1.msra.mxu0 0.0
    %1423 = vmatprep.subr.mxu0 0.0
    %1424 = vmatpush1.msra.mxu0 0.0
    %1425 = vmatprep.subr.mxu0 0.0
    %1426 = vmatpush1.msra.mxu0 0.0
    %1427 = vmatprep.subr.mxu0 0.0
    %1428 = vmatpush1.msra.mxu0 0.0
    %1429 = vmatprep.subr.mxu0 %v1021
    %1430 = vmatpush1.msra.mxu0 %v1020
    %1431 = vmatprep.subr.mxu0 %v1019
    %1432 = vmatpush1.msra.mxu0 %v1018
    %1433 = vmatprep.subr.mxu0 %v1017
    %1434 = vmatpush1.msra.mxu0 %v1016
    %1435 = vmatprep.subr.mxu0 %v1015
    %1436 = vmatpush1.msra.mxu0 %v1014
    %1437 = vmatprep.subr.mxu0 0.0
    %1438 = vmatpush2.msra.mxu0 0.0
    %1439 = vmatprep.subr.mxu0 0.0
    %1440 = vmatpush2.msra.mxu0 0.0
    %1441 = vmatprep.subr.mxu0 0.0
    %1442 = vmatpush2.msra.mxu0 0.0
    %1443 = vmatprep.subr.mxu0 0.0
    %1444 = vmatpush2.msra.mxu0 0.0
    %1445 = vmatprep.subr.mxu0 0.0
    %1446 = vmatpush2.msra.mxu0 0.0
    %1447 = vmatprep.subr.mxu0 0.0
    %1448 = vmatpush2.msra.mxu0 0.0
    %1449 = vmatprep.subr.mxu0 0.0
    %1450 = vmatpush2.msra.mxu0 0.0
    %1451 = vmatprep.subr.mxu0 0.0
    %1452 = vmatpush2.msra.mxu0 0.0
    %1453 = vmatprep.subr.mxu0 0.0
    %1454 = vmatpush2.msra.mxu0 0.0
    %1455 = vmatprep.subr.mxu0 0.0
    %1456 = vmatpush2.msra.mxu0 0.0
    %1457 = vmatprep.subr.mxu0 0.0
    %1458 = vmatpush2.msra.mxu0 0.0
    %1459 = vmatprep.subr.mxu0 0.0
    %1460 = vmatpush2.msra.mxu0 0.0
    %1461 = vmatprep.subr.mxu0 0.0
    %1462 = vmatpush2.msra.mxu0 0.0
    %1463 = vmatprep.subr.mxu0 0.0
    %1464 = vmatpush2.msra.mxu0 0.0
    %1465 = vmatprep.subr.mxu0 0.0
    %1466 = vmatpush2.msra.mxu0 0.0
    %1467 = vmatprep.subr.mxu0 0.0
    %1468 = vmatpush2.msra.mxu0 0.0
    %1469 = vmatprep.mubr.f32.mxu0 0.0
    %1470 = vmatmul.mubr.f32.gmra.mxu0 %v1403
    %v1471 = vpop.f32.mrf.mxu0
    %v1472 = vadd.f32 0.0, %v1471
    %v1473 = vpop.f32.mrf.mxu0
    %v1474 = vadd.f32 0.0, %v1473
    %1475 = vdwg.mxu0
    %v1476 = vadd.f32 %v1474, %v1022
    %v1477 = vsel %vm1284, %v1476, -inf
    %1478 = vmax.xlane.f32.xlu0 %v1477
    %v1479 = vpop.xlane.xlu0 %1478
    %vm1480 = vcmp.eq.f32.partialorder %v1476, %v1479
    %v1481 = vsel %vm1480, 1, 0
    %v1482 = vcvt.s32.f32 %v1481
    %v1483 = vsub.f32 %v1476, %v1479
    %v1484 = vmul.f32 %v1483, 1.442695
    %v1485 = vpow.pop %v1484
    %v1486 = vsel %vm1284, %v1485, 0.0
    %1487 = vadd.xlane.f32.xlu0 %v1486
    %v1488 = vpop.xlane.xlu0 %1487
    %v1489 = vlog2.pop %v1488
    %v1490 = vmul.f32 %v1489, 0.6931472
    %v1491 = vadd.f32 %v1479, %v1490
    %v1492 = vsub.f32 %v1476, %v1491
    %1493 = vst.msk [vmem:[#allocation8 + $0x1] sm:$0x1] %vm1284, %v1492
    %v1495 = vsel %vm79, %v1482, 0
    %1497 = vmatprep.subr.mxu0 0.0
    %1498 = vmatpush1.msra.mxu0 0.0
    %1499 = vmatprep.subr.mxu0 0.0
    %1500 = vmatpush1.msra.mxu0 0.0
    %1501 = vmatprep.subr.mxu0 0.0
    %1502 = vmatpush1.msra.mxu0 0.0
    %1503 = vmatprep.subr.mxu0 0.0
    %1504 = vmatpush1.msra.mxu0 0.0
    %1505 = vmatprep.subr.mxu0 0.0
    %1506 = vmatpush1.msra.mxu0 0.0
    %1507 = vmatprep.subr.mxu0 0.0
    %1508 = vmatpush1.msra.mxu0 0.0
    %1509 = vmatprep.subr.mxu0 0.0
    %1510 = vmatpush1.msra.mxu0 0.0
    %1511 = vmatprep.subr.mxu0 0.0
    %1512 = vmatpush1.msra.mxu0 0.0
    %1513 = vmatprep.subr.mxu0 0.0
    %1514 = vmatpush1.msra.mxu0 0.0
    %1515 = vmatprep.subr.mxu0 0.0
    %1516 = vmatpush1.msra.mxu0 0.0
    %1517 = vmatprep.subr.mxu0 0.0
    %1518 = vmatpush1.msra.mxu0 0.0
    %1519 = vmatprep.subr.mxu0 0.0
    %1520 = vmatpush1.msra.mxu0 0.0
    %1521 = vmatprep.subr.mxu0 0.0
    %1522 = vmatpush1.msra.mxu0 0.0
    %1523 = vmatprep.subr.mxu0 0.0
    %1524 = vmatpush1.msra.mxu0 0.0
    %1525 = vmatprep.subr.mxu0 0.0
    %1526 = vmatpush1.msra.mxu0 %v1013
    %1527 = vmatprep.subr.mxu0 0.0
    %1528 = vmatpush1.msra.mxu0 %v1012
    %1529 = vmatprep.subr.mxu0 0.0
    %1530 = vmatpush2.msra.mxu0 0.0
    %1531 = vmatprep.subr.mxu0 0.0
    %1532 = vmatpush2.msra.mxu0 0.0
    %1533 = vmatprep.subr.mxu0 0.0
    %1534 = vmatpush2.msra.mxu0 0.0
    %1535 = vmatprep.subr.mxu0 0.0
    %1536 = vmatpush2.msra.mxu0 0.0
    %1537 = vmatprep.subr.mxu0 0.0
    %1538 = vmatpush2.msra.mxu0 0.0
    %1539 = vmatprep.subr.mxu0 0.0
    %1540 = vmatpush2.msra.mxu0 0.0
    %1541 = vmatprep.subr.mxu0 0.0
    %1542 = vmatpush2.msra.mxu0 0.0
    %1543 = vmatprep.subr.mxu0 0.0
    %1544 = vmatpush2.msra.mxu0 0.0
    %1545 = vmatprep.subr.mxu0 0.0
    %1546 = vmatpush2.msra.mxu0 0.0
    %1547 = vmatprep.subr.mxu0 0.0
    %1548 = vmatpush2.msra.mxu0 0.0
    %1549 = vmatprep.subr.mxu0 0.0
    %1550 = vmatpush2.msra.mxu0 0.0
    %1551 = vmatprep.subr.mxu0 0.0
    %1552 = vmatpush2.msra.mxu0 0.0
    %1553 = vmatprep.subr.mxu0 0.0
    %1554 = vmatpush2.msra.mxu0 0.0
    %1555 = vmatprep.subr.mxu0 0.0
    %1556 = vmatpush2.msra.mxu0 0.0
    %1557 = vmatprep.subr.mxu0 0.0
    %1558 = vmatpush2.msra.mxu0 0.0
    %1559 = vmatprep.subr.mxu0 0.0
    %1560 = vmatpush2.msra.mxu0 0.0
    %1561 = vmatprep.mubr.f32.mxu0 0.0
    %1562 = vmatmul.mubr.f32.gmra.mxu0 %v1495
    %v1563 = vpop.f32.mrf.mxu0
    %v1564 = vadd.f32 %v1472, %v1563
    %v1565 = vpop.f32.mrf.mxu0
    %1566 = vdwg.mxu0
    %v1567 = vxor.u32 %v1564, 2147483648
    %v1568 = vmul.f32 %v1567, 1.442695
    %v1569 = vpow.pop %v1568
    %v1570 = vadd.f32 %v1569, 1.0
    %v1571 = vrcp.pop %v1570
    %v1572 = vmul.f32 1.0, %v1571
    %v1573 = vmul.f32 %v1572, 2.0
    %v1574 = vsub.f32 %v1573, 1.0
    %v1575 = vmul.f32 %v1572, %v1393
    %1577 = vrot.lane.b32.xlu0 %v1574, 64
    %v1578 = vpop.permute.xlu0 %1577
    %v1580 = vmul.f32 %v1572, %v1578
    %1582 = vrot.lane.b32.xlu0 %v1580, 32
    %v1583 = vpop.permute.xlu0 %1582
    %v1585 = vadd.f32 %v1575, %v1583
    %v1586 = vtanh.pop %v1585
    %1588 = vrot.lane.b32.xlu0 %v1586, 64
    %v1589 = vpop.permute.xlu0 %1588
    %v1591 = vmul.f32 %v1572, %v1589
    %1593 = vrot.lane.b32.xlu0 %v1591, 32
    %v1594 = vpop.permute.xlu0 %1593
    %v1595 = vsel %vm157, %v1594, 0
    %1597 = vmatprep.subr.mxu0 0.0
    %1598 = vmatpush1.msra.mxu0 0.0
    %1599 = vmatprep.subr.mxu0 0.0
    %1600 = vmatpush1.msra.mxu0 0.0
    %1601 = vmatprep.subr.mxu0 0.0
    %1602 = vmatpush1.msra.mxu0 0.0
    %1603 = vmatprep.subr.mxu0 0.0
    %1604 = vmatpush1.msra.mxu0 0.0
    %1605 = vmatprep.subr.mxu0 0.0
    %1606 = vmatpush1.msra.mxu0 0.0
    %1607 = vmatprep.subr.mxu0 0.0
    %1608 = vmatpush1.msra.mxu0 0.0
    %1609 = vmatprep.subr.mxu0 0.0
    %1610 = vmatpush1.msra.mxu0 0.0
    %1611 = vmatprep.subr.mxu0 0.0
    %1612 = vmatpush1.msra.mxu0 0.0
    %1613 = vmatprep.subr.mxu0 0.0
    %1614 = vmatpush1.msra.mxu0 0.0
    %1615 = vmatprep.subr.mxu0 0.0
    %1616 = vmatpush1.msra.mxu0 0.0
    %1617 = vmatprep.subr.mxu0 0.0
    %1618 = vmatpush1.msra.mxu0 0.0
    %1619 = vmatprep.subr.mxu0 0.0
    %1620 = vmatpush1.msra.mxu0 0.0
    %1621 = vmatprep.subr.mxu0 %v1021
    %1622 = vmatpush1.msra.mxu0 %v1020
    %1623 = vmatprep.subr.mxu0 %v1019
    %1624 = vmatpush1.msra.mxu0 %v1018
    %1625 = vmatprep.subr.mxu0 %v1017
    %1626 = vmatpush1.msra.mxu0 %v1016
    %1627 = vmatprep.subr.mxu0 %v1015
    %1628 = vmatpush1.msra.mxu0 %v1014
    %1629 = vmatprep.subr.mxu0 0.0
    %1630 = vmatpush2.msra.mxu0 0.0
    %1631 = vmatprep.subr.mxu0 0.0
    %1632 = vmatpush2.msra.mxu0 0.0
    %1633 = vmatprep.subr.mxu0 0.0
    %1634 = vmatpush2.msra.mxu0 0.0
    %1635 = vmatprep.subr.mxu0 0.0
    %1636 = vmatpush2.msra.mxu0 0.0
    %1637 = vmatprep.subr.mxu0 0.0
    %1638 = vmatpush2.msra.mxu0 0.0
    %1639 = vmatprep.subr.mxu0 0.0
    %1640 = vmatpush2.msra.mxu0 0.0
    %1641 = vmatprep.subr.mxu0 0.0
    %1642 = vmatpush2.msra.mxu0 0.0
    %1643 = vmatprep.subr.mxu0 0.0
    %1644 = vmatpush2.msra.mxu0 0.0
    %1645 = vmatprep.subr.mxu0 0.0
    %1646 = vmatpush2.msra.mxu0 0.0
    %1647 = vmatprep.subr.mxu0 0.0
    %1648 = vmatpush2.msra.mxu0 0.0
    %1649 = vmatprep.subr.mxu0 0.0
    %1650 = vmatpush2.msra.mxu0 0.0
    %1651 = vmatprep.subr.mxu0 0.0
    %1652 = vmatpush2.msra.mxu0 0.0
    %1653 = vmatprep.subr.mxu0 0.0
    %1654 = vmatpush2.msra.mxu0 0.0
    %1655 = vmatprep.subr.mxu0 0.0
    %1656 = vmatpush2.msra.mxu0 0.0
    %1657 = vmatprep.subr.mxu0 0.0
    %1658 = vmatpush2.msra.mxu0 0.0
    %1659 = vmatprep.subr.mxu0 0.0
    %1660 = vmatpush2.msra.mxu0 0.0
    %1661 = vmatprep.mubr.f32.mxu0 0.0
    %1662 = vmatmul.mubr.f32.gmra.mxu0 %v1595
    %v1663 = vpop.f32.mrf.mxu0
    %v1664 = vadd.f32 0.0, %v1663
    %v1665 = vpop.f32.mrf.mxu0
    %v1666 = vadd.f32 0.0, %v1665
    %1667 = vdwg.mxu0
    %v1668 = vadd.f32 %v1666, %v1022
    %v1669 = vsel %vm1284, %v1668, -inf
    %1670 = vmax.xlane.f32.xlu0 %v1669
    %v1671 = vpop.xlane.xlu0 %1670
    %vm1672 = vcmp.eq.f32.partialorder %v1668, %v1671
    %v1673 = vsel %vm1672, 1, 0
    %v1674 = vcvt.s32.f32 %v1673
    %v1675 = vsub.f32 %v1668, %v1671
    %v1676 = vmul.f32 %v1675, 1.442695
    %v1677 = vpow.pop %v1676
    %v1678 = vsel %vm1284, %v1677, 0.0
    %1679 = vadd.xlane.f32.xlu0 %v1678
    %v1680 = vpop.xlane.xlu0 %1679
    %v1681 = vlog2.pop %v1680
    %v1682 = vmul.f32 %v1681, 0.6931472
    %v1683 = vadd.f32 %v1671, %v1682
    %v1684 = vsub.f32 %v1668, %v1683
    %1685 = vst.msk [vmem:[#allocation8 + $0x2] sm:$0x1] %vm1284, %v1684
    %v1687 = vsel %vm79, %v1674, 0
    %1689 = vmatprep.subr.mxu0 0.0
    %1690 = vmatpush1.msra.mxu0 0.0
    %1691 = vmatprep.subr.mxu0 0.0
    %1692 = vmatpush1.msra.mxu0 0.0
    %1693 = vmatprep.subr.mxu0 0.0
    %1694 = vmatpush1.msra.mxu0 0.0
    %1695 = vmatprep.subr.mxu0 0.0
    %1696 = vmatpush1.msra.mxu0 0.0
    %1697 = vmatprep.subr.mxu0 0.0
    %1698 = vmatpush1.msra.mxu0 0.0
    %1699 = vmatprep.subr.mxu0 0.0
    %1700 = vmatpush1.msra.mxu0 0.0
    %1701 = vmatprep.subr.mxu0 0.0
    %1702 = vmatpush1.msra.mxu0 0.0
    %1703 = vmatprep.subr.mxu0 0.0
    %1704 = vmatpush1.msra.mxu0 0.0
    %1705 = vmatprep.subr.mxu0 0.0
    %1706 = vmatpush1.msra.mxu0 0.0
    %1707 = vmatprep.subr.mxu0 0.0
    %1708 = vmatpush1.msra.mxu0 0.0
    %1709 = vmatprep.subr.mxu0 0.0
    %1710 = vmatpush1.msra.mxu0 0.0
    %1711 = vmatprep.subr.mxu0 0.0
    %1712 = vmatpush1.msra.mxu0 0.0
    %1713 = vmatprep.subr.mxu0 0.0
    %1714 = vmatpush1.msra.mxu0 0.0
    %1715 = vmatprep.subr.mxu0 0.0
    %1716 = vmatpush1.msra.mxu0 0.0
    %1717 = vmatprep.subr.mxu0 0.0
    %1718 = vmatpush1.msra.mxu0 %v1013
    %1719 = vmatprep.subr.mxu0 0.0
    %1720 = vmatpush1.msra.mxu0 %v1012
    %1721 = vmatprep.subr.mxu0 0.0
    %1722 = vmatpush2.msra.mxu0 0.0
    %1723 = vmatprep.subr.mxu0 0.0
    %1724 = vmatpush2.msra.mxu0 0.0
    %1725 = vmatprep.subr.mxu0 0.0
    %1726 = vmatpush2.msra.mxu0 0.0
    %1727 = vmatprep.subr.mxu0 0.0
    %1728 = vmatpush2.msra.mxu0 0.0
    %1729 = vmatprep.subr.mxu0 0.0
    %1730 = vmatpush2.msra.mxu0 0.0
    %1731 = vmatprep.subr.mxu0 0.0
    %1732 = vmatpush2.msra.mxu0 0.0
    %1733 = vmatprep.subr.mxu0 0.0
    %1734 = vmatpush2.msra.mxu0 0.0
    %1735 = vmatprep.subr.mxu0 0.0
    %1736 = vmatpush2.msra.mxu0 0.0
    %1737 = vmatprep.subr.mxu0 0.0
    %1738 = vmatpush2.msra.mxu0 0.0
    %1739 = vmatprep.subr.mxu0 0.0
    %1740 = vmatpush2.msra.mxu0 0.0
    %1741 = vmatprep.subr.mxu0 0.0
    %1742 = vmatpush2.msra.mxu0 0.0
    %1743 = vmatprep.subr.mxu0 0.0
    %1744 = vmatpush2.msra.mxu0 0.0
    %1745 = vmatprep.subr.mxu0 0.0
    %1746 = vmatpush2.msra.mxu0 0.0
    %1747 = vmatprep.subr.mxu0 0.0
    %1748 = vmatpush2.msra.mxu0 0.0
    %1749 = vmatprep.subr.mxu0 0.0
    %1750 = vmatpush2.msra.mxu0 0.0
    %1751 = vmatprep.subr.mxu0 0.0
    %1752 = vmatpush2.msra.mxu0 0.0
    %1753 = vmatprep.mubr.f32.mxu0 0.0
    %1754 = vmatmul.mubr.f32.gmra.mxu0 %v1687
    %v1755 = vpop.f32.mrf.mxu0
    %v1756 = vadd.f32 %v1664, %v1755
    %v1757 = vpop.f32.mrf.mxu0
    %1758 = vdwg.mxu0
    %v1759 = vxor.u32 %v1756, 2147483648
    %v1760 = vmul.f32 %v1759, 1.442695
    %v1761 = vpow.pop %v1760
    %v1762 = vadd.f32 %v1761, 1.0
    %v1763 = vrcp.pop %v1762
    %v1764 = vmul.f32 1.0, %v1763
    %v1765 = vmul.f32 %v1764, 2.0
    %v1766 = vsub.f32 %v1765, 1.0
    %v1767 = vmul.f32 %v1764, %v1585
    %1769 = vrot.lane.b32.xlu0 %v1766, 64
    %v1770 = vpop.permute.xlu0 %1769
    %v1772 = vmul.f32 %v1764, %v1770
    %1774 = vrot.lane.b32.xlu0 %v1772, 32
    %v1775 = vpop.permute.xlu0 %1774
    %v1777 = vadd.f32 %v1767, %v1775
    %v1778 = vtanh.pop %v1777
    %1780 = vrot.lane.b32.xlu0 %v1778, 64
    %v1781 = vpop.permute.xlu0 %1780
    %v1783 = vmul.f32 %v1764, %v1781
    %1785 = vrot.lane.b32.xlu0 %v1783, 32
    %v1786 = vpop.permute.xlu0 %1785
    %v1787 = vsel %vm157, %v1786, 0
    %1789 = vmatprep.subr.mxu0 0.0
    %1790 = vmatpush1.msra.mxu0 0.0
    %1791 = vmatprep.subr.mxu0 0.0
    %1792 = vmatpush1.msra.mxu0 0.0
    %1793 = vmatprep.subr.mxu0 0.0
    %1794 = vmatpush1.msra.mxu0 0.0
    %1795 = vmatprep.subr.mxu0 0.0
    %1796 = vmatpush1.msra.mxu0 0.0
    %1797 = vmatprep.subr.mxu0 0.0
    %1798 = vmatpush1.msra.mxu0 0.0
    %1799 = vmatprep.subr.mxu0 0.0
    %1800 = vmatpush1.msra.mxu0 0.0
    %1801 = vmatprep.subr.mxu0 0.0
    %1802 = vmatpush1.msra.mxu0 0.0
    %1803 = vmatprep.subr.mxu0 0.0
    %1804 = vmatpush1.msra.mxu0 0.0
    %1805 = vmatprep.subr.mxu0 0.0
    %1806 = vmatpush1.msra.mxu0 0.0
    %1807 = vmatprep.subr.mxu0 0.0
    %1808 = vmatpush1.msra.mxu0 0.0
    %1809 = vmatprep.subr.mxu0 0.0
    %1810 = vmatpush1.msra.mxu0 0.0
    %1811 = vmatprep.subr.mxu0 0.0
    %1812 = vmatpush1.msra.mxu0 0.0
    %1813 = vmatprep.subr.mxu0 %v1021
    %1814 = vmatpush1.msra.mxu0 %v1020
    %1815 = vmatprep.subr.mxu0 %v1019
    %1816 = vmatpush1.msra.mxu0 %v1018
    %1817 = vmatprep.subr.mxu0 %v1017
    %1818 = vmatpush1.msra.mxu0 %v1016
    %1819 = vmatprep.subr.mxu0 %v1015
    %1820 = vmatpush1.msra.mxu0 %v1014
    %1821 = vmatprep.subr.mxu0 0.0
    %1822 = vmatpush2.msra.mxu0 0.0
    %1823 = vmatprep.subr.mxu0 0.0
    %1824 = vmatpush2.msra.mxu0 0.0
    %1825 = vmatprep.subr.mxu0 0.0
    %1826 = vmatpush2.msra.mxu0 0.0
    %1827 = vmatprep.subr.mxu0 0.0
    %1828 = vmatpush2.msra.mxu0 0.0
    %1829 = vmatprep.subr.mxu0 0.0
    %1830 = vmatpush2.msra.mxu0 0.0
    %1831 = vmatprep.subr.mxu0 0.0
    %1832 = vmatpush2.msra.mxu0 0.0
    %1833 = vmatprep.subr.mxu0 0.0
    %1834 = vmatpush2.msra.mxu0 0.0
    %1835 = vmatprep.subr.mxu0 0.0
    %1836 = vmatpush2.msra.mxu0 0.0
    %1837 = vmatprep.subr.mxu0 0.0
    %1838 = vmatpush2.msra.mxu0 0.0
    %1839 = vmatprep.subr.mxu0 0.0
    %1840 = vmatpush2.msra.mxu0 0.0
    %1841 = vmatprep.subr.mxu0 0.0
    %1842 = vmatpush2.msra.mxu0 0.0
    %1843 = vmatprep.subr.mxu0 0.0
    %1844 = vmatpush2.msra.mxu0 0.0
    %1845 = vmatprep.subr.mxu0 0.0
    %1846 = vmatpush2.msra.mxu0 0.0
    %1847 = vmatprep.subr.mxu0 0.0
    %1848 = vmatpush2.msra.mxu0 0.0
    %1849 = vmatprep.subr.mxu0 0.0
    %1850 = vmatpush2.msra.mxu0 0.0
    %1851 = vmatprep.subr.mxu0 0.0
    %1852 = vmatpush2.msra.mxu0 0.0
    %1853 = vmatprep.mubr.f32.mxu0 0.0
    %1854 = vmatmul.mubr.f32.gmra.mxu0 %v1787
    %v1855 = vpop.f32.mrf.mxu0
    %v1856 = vadd.f32 0.0, %v1855
    %v1857 = vpop.f32.mrf.mxu0
    %v1858 = vadd.f32 0.0, %v1857
    %1859 = vdwg.mxu0
    %v1860 = vadd.f32 %v1858, %v1022
    %v1861 = vsel %vm1284, %v1860, -inf
    %1862 = vmax.xlane.f32.xlu0 %v1861
    %v1863 = vpop.xlane.xlu0 %1862
    %vm1864 = vcmp.eq.f32.partialorder %v1860, %v1863
    %v1865 = vsel %vm1864, 1, 0
    %v1866 = vcvt.s32.f32 %v1865
    %v1867 = vsub.f32 %v1860, %v1863
    %v1868 = vmul.f32 %v1867, 1.442695
    %v1869 = vpow.pop %v1868
    %v1870 = vsel %vm1284, %v1869, 0.0
    %1871 = vadd.xlane.f32.xlu0 %v1870
    %v1872 = vpop.xlane.xlu0 %1871
    %v1873 = vlog2.pop %v1872
    %v1874 = vmul.f32 %v1873, 0.6931472
    %v1875 = vadd.f32 %v1863, %v1874
    %v1876 = vsub.f32 %v1860, %v1875
    %1877 = vst.msk [vmem:[#allocation8 + $0x3] sm:$0x1] %vm1284, %v1876
    %v1879 = vsel %vm79, %v1866, 0
    %1881 = vmatprep.subr.mxu0 0.0
    %1882 = vmatpush1.msra.mxu0 0.0
    %1883 = vmatprep.subr.mxu0 0.0
    %1884 = vmatpush1.msra.mxu0 0.0
    %1885 = vmatprep.subr.mxu0 0.0
    %1886 = vmatpush1.msra.mxu0 0.0
    %1887 = vmatprep.subr.mxu0 0.0
    %1888 = vmatpush1.msra.mxu0 0.0
    %1889 = vmatprep.subr.mxu0 0.0
    %1890 = vmatpush1.msra.mxu0 0.0
    %1891 = vmatprep.subr.mxu0 0.0
    %1892 = vmatpush1.msra.mxu0 0.0
    %1893 = vmatprep.subr.mxu0 0.0
    %1894 = vmatpush1.msra.mxu0 0.0
    %1895 = vmatprep.subr.mxu0 0.0
    %1896 = vmatpush1.msra.mxu0 0.0
    %1897 = vmatprep.subr.mxu0 0.0
    %1898 = vmatpush1.msra.mxu0 0.0
    %1899 = vmatprep.subr.mxu0 0.0
    %1900 = vmatpush1.msra.mxu0 0.0
    %1901 = vmatprep.subr.mxu0 0.0
    %1902 = vmatpush1.msra.mxu0 0.0
    %1903 = vmatprep.subr.mxu0 0.0
    %1904 = vmatpush1.msra.mxu0 0.0
    %1905 = vmatprep.subr.mxu0 0.0
    %1906 = vmatpush1.msra.mxu0 0.0
    %1907 = vmatprep.subr.mxu0 0.0
    %1908 = vmatpush1.msra.mxu0 0.0
    %1909 = vmatprep.subr.mxu0 0.0
    %1910 = vmatpush1.msra.mxu0 %v1013
    %1911 = vmatprep.subr.mxu0 0.0
    %1912 = vmatpush1.msra.mxu0 %v1012
    %1913 = vmatprep.subr.mxu0 0.0
    %1914 = vmatpush2.msra.mxu0 0.0
    %1915 = vmatprep.subr.mxu0 0.0
    %1916 = vmatpush2.msra.mxu0 0.0
    %1917 = vmatprep.subr.mxu0 0.0
    %1918 = vmatpush2.msra.mxu0 0.0
    %1919 = vmatprep.subr.mxu0 0.0
    %1920 = vmatpush2.msra.mxu0 0.0
    %1921 = vmatprep.subr.mxu0 0.0
    %1922 = vmatpush2.msra.mxu0 0.0
    %1923 = vmatprep.subr.mxu0 0.0
    %1924 = vmatpush2.msra.mxu0 0.0
    %1925 = vmatprep.subr.mxu0 0.0
    %1926 = vmatpush2.msra.mxu0 0.0
    %1927 = vmatprep.subr.mxu0 0.0
    %1928 = vmatpush2.msra.mxu0 0.0
    %1929 = vmatprep.subr.mxu0 0.0
    %1930 = vmatpush2.msra.mxu0 0.0
    %1931 = vmatprep.subr.mxu0 0.0
    %1932 = vmatpush2.msra.mxu0 0.0
    %1933 = vmatprep.subr.mxu0 0.0
    %1934 = vmatpush2.msra.mxu0 0.0
    %1935 = vmatprep.subr.mxu0 0.0
    %1936 = vmatpush2.msra.mxu0 0.0
    %1937 = vmatprep.subr.mxu0 0.0
    %1938 = vmatpush2.msra.mxu0 0.0
    %1939 = vmatprep.subr.mxu0 0.0
    %1940 = vmatpush2.msra.mxu0 0.0
    %1941 = vmatprep.subr.mxu0 0.0
    %1942 = vmatpush2.msra.mxu0 0.0
    %1943 = vmatprep.subr.mxu0 0.0
    %1944 = vmatpush2.msra.mxu0 0.0
    %1945 = vmatprep.mubr.f32.mxu0 0.0
    %1946 = vmatmul.mubr.f32.gmra.mxu0 %v1879
    %v1947 = vpop.f32.mrf.mxu0
    %v1948 = vadd.f32 %v1856, %v1947
    %v1949 = vpop.f32.mrf.mxu0
    %1950 = vdwg.mxu0
    %v1951 = vxor.u32 %v1948, 2147483648
    %v1952 = vmul.f32 %v1951, 1.442695
    %v1953 = vpow.pop %v1952
    %v1954 = vadd.f32 %v1953, 1.0
    %v1955 = vrcp.pop %v1954
    %v1956 = vmul.f32 1.0, %v1955
    %v1957 = vmul.f32 %v1956, 2.0
    %v1958 = vsub.f32 %v1957, 1.0
    %v1959 = vmul.f32 %v1956, %v1777
    %1961 = vrot.lane.b32.xlu0 %v1958, 64
    %v1962 = vpop.permute.xlu0 %1961
    %v1964 = vmul.f32 %v1956, %v1962
    %1966 = vrot.lane.b32.xlu0 %v1964, 32
    %v1967 = vpop.permute.xlu0 %1966
    %v1969 = vadd.f32 %v1959, %v1967
    %v1970 = vtanh.pop %v1969
    %1972 = vrot.lane.b32.xlu0 %v1970, 64
    %v1973 = vpop.permute.xlu0 %1972
    %v1975 = vmul.f32 %v1956, %v1973
    %1977 = vrot.lane.b32.xlu0 %v1975, 32
    %v1978 = vpop.permute.xlu0 %1977
    %v1979 = vsel %vm157, %v1978, 0
    %1981 = vmatprep.subr.mxu0 0.0
    %1982 = vmatpush1.msra.mxu0 0.0
    %1983 = vmatprep.subr.mxu0 0.0
    %1984 = vmatpush1.msra.mxu0 0.0
    %1985 = vmatprep.subr.mxu0 0.0
    %1986 = vmatpush1.msra.mxu0 0.0
    %1987 = vmatprep.subr.mxu0 0.0
    %1988 = vmatpush1.msra.mxu0 0.0
    %1989 = vmatprep.subr.mxu0 0.0
    %1990 = vmatpush1.msra.mxu0 0.0
    %1991 = vmatprep.subr.mxu0 0.0
    %1992 = vmatpush1.msra.mxu0 0.0
    %1993 = vmatprep.subr.mxu0 0.0
    %1994 = vmatpush1.msra.mxu0 0.0
    %1995 = vmatprep.subr.mxu0 0.0
    %1996 = vmatpush1.msra.mxu0 0.0
    %1997 = vmatprep.subr.mxu0 0.0
    %1998 = vmatpush1.msra.mxu0 0.0
    %1999 = vmatprep.subr.mxu0 0.0
    %2000 = vmatpush1.msra.mxu0 0.0
    %2001 = vmatprep.subr.mxu0 0.0
    %2002 = vmatpush1.msra.mxu0 0.0
    %2003 = vmatprep.subr.mxu0 0.0
    %2004 = vmatpush1.msra.mxu0 0.0
    %2005 = vmatprep.subr.mxu0 %v1021
    %2006 = vmatpush1.msra.mxu0 %v1020
    %2007 = vmatprep.subr.mxu0 %v1019
    %2008 = vmatpush1.msra.mxu0 %v1018
    %2009 = vmatprep.subr.mxu0 %v1017
    %2010 = vmatpush1.msra.mxu0 %v1016
    %2011 = vmatprep.subr.mxu0 %v1015
    %2012 = vmatpush1.msra.mxu0 %v1014
    %2013 = vmatprep.subr.mxu0 0.0
    %2014 = vmatpush2.msra.mxu0 0.0
    %2015 = vmatprep.subr.mxu0 0.0
    %2016 = vmatpush2.msra.mxu0 0.0
    %2017 = vmatprep.subr.mxu0 0.0
    %2018 = vmatpush2.msra.mxu0 0.0
    %2019 = vmatprep.subr.mxu0 0.0
    %2020 = vmatpush2.msra.mxu0 0.0
    %2021 = vmatprep.subr.mxu0 0.0
    %2022 = vmatpush2.msra.mxu0 0.0
    %2023 = vmatprep.subr.mxu0 0.0
    %2024 = vmatpush2.msra.mxu0 0.0
    %2025 = vmatprep.subr.mxu0 0.0
    %2026 = vmatpush2.msra.mxu0 0.0
    %2027 = vmatprep.subr.mxu0 0.0
    %2028 = vmatpush2.msra.mxu0 0.0
    %2029 = vmatprep.subr.mxu0 0.0
    %2030 = vmatpush2.msra.mxu0 0.0
    %2031 = vmatprep.subr.mxu0 0.0
    %2032 = vmatpush2.msra.mxu0 0.0
    %2033 = vmatprep.subr.mxu0 0.0
    %2034 = vmatpush2.msra.mxu0 0.0
    %2035 = vmatprep.subr.mxu0 0.0
    %2036 = vmatpush2.msra.mxu0 0.0
    %2037 = vmatprep.subr.mxu0 0.0
    %2038 = vmatpush2.msra.mxu0 0.0
    %2039 = vmatprep.subr.mxu0 0.0
    %2040 = vmatpush2.msra.mxu0 0.0
    %2041 = vmatprep.subr.mxu0 0.0
    %2042 = vmatpush2.msra.mxu0 0.0
    %2043 = vmatprep.subr.mxu0 0.0
    %2044 = vmatpush2.msra.mxu0 0.0
    %2045 = vmatprep.mubr.f32.mxu0 0.0
    %2046 = vmatmul.mubr.f32.gmra.mxu0 %v1979
    %v2047 = vpop.f32.mrf.mxu0
    %v2048 = vadd.f32 0.0, %v2047
    %v2049 = vpop.f32.mrf.mxu0
    %v2050 = vadd.f32 0.0, %v2049
    %2051 = vdwg.mxu0
    %v2052 = vadd.f32 %v2050, %v1022
    %v2053 = vsel %vm1284, %v2052, -inf
    %2054 = vmax.xlane.f32.xlu0 %v2053
    %v2055 = vpop.xlane.xlu0 %2054
    %vm2056 = vcmp.eq.f32.partialorder %v2052, %v2055
    %v2057 = vsel %vm2056, 1, 0
    %v2058 = vcvt.s32.f32 %v2057
    %v2059 = vsub.f32 %v2052, %v2055
    %v2060 = vmul.f32 %v2059, 1.442695
    %v2061 = vpow.pop %v2060
    %v2062 = vsel %vm1284, %v2061, 0.0
    %2063 = vadd.xlane.f32.xlu0 %v2062
    %v2064 = vpop.xlane.xlu0 %2063
    %v2065 = vlog2.pop %v2064
    %v2066 = vmul.f32 %v2065, 0.6931472
    %v2067 = vadd.f32 %v2055, %v2066
    %v2068 = vsub.f32 %v2052, %v2067
    %2069 = vst.msk [vmem:[#allocation8 + $0x4] sm:$0x1] %vm1284, %v2068
    %v2071 = vsel %vm79, %v2058, 0
    %2073 = vmatprep.subr.mxu0 0.0
    %2074 = vmatpush1.msra.mxu0 0.0
    %2075 = vmatprep.subr.mxu0 0.0
    %2076 = vmatpush1.msra.mxu0 0.0
    %2077 = vmatprep.subr.mxu0 0.0
    %2078 = vmatpush1.msra.mxu0 0.0
    %2079 = vmatprep.subr.mxu0 0.0
    %2080 = vmatpush1.msra.mxu0 0.0
    %2081 = vmatprep.subr.mxu0 0.0
    %2082 = vmatpush1.msra.mxu0 0.0
    %2083 = vmatprep.subr.mxu0 0.0
    %2084 = vmatpush1.msra.mxu0 0.0
    %2085 = vmatprep.subr.mxu0 0.0
    %2086 = vmatpush1.msra.mxu0 0.0
    %2087 = vmatprep.subr.mxu0 0.0
    %2088 = vmatpush1.msra.mxu0 0.0
    %2089 = vmatprep.subr.mxu0 0.0
    %2090 = vmatpush1.msra.mxu0 0.0
    %2091 = vmatprep.subr.mxu0 0.0
    %2092 = vmatpush1.msra.mxu0 0.0
    %2093 = vmatprep.subr.mxu0 0.0
    %2094 = vmatpush1.msra.mxu0 0.0
    %2095 = vmatprep.subr.mxu0 0.0
    %2096 = vmatpush1.msra.mxu0 0.0
    %2097 = vmatprep.subr.mxu0 0.0
    %2098 = vmatpush1.msra.mxu0 0.0
    %2099 = vmatprep.subr.mxu0 0.0
    %2100 = vmatpush1.msra.mxu0 0.0
    %2101 = vmatprep.subr.mxu0 0.0
    %2102 = vmatpush1.msra.mxu0 %v1013
    %2103 = vmatprep.subr.mxu0 0.0
    %2104 = vmatpush1.msra.mxu0 %v1012
    %2105 = vmatprep.subr.mxu0 0.0
    %2106 = vmatpush2.msra.mxu0 0.0
    %2107 = vmatprep.subr.mxu0 0.0
    %2108 = vmatpush2.msra.mxu0 0.0
    %2109 = vmatprep.subr.mxu0 0.0
    %2110 = vmatpush2.msra.mxu0 0.0
    %2111 = vmatprep.subr.mxu0 0.0
    %2112 = vmatpush2.msra.mxu0 0.0
    %2113 = vmatprep.subr.mxu0 0.0
    %2114 = vmatpush2.msra.mxu0 0.0
    %2115 = vmatprep.subr.mxu0 0.0
    %2116 = vmatpush2.msra.mxu0 0.0
    %2117 = vmatprep.subr.mxu0 0.0
    %2118 = vmatpush2.msra.mxu0 0.0
    %2119 = vmatprep.subr.mxu0 0.0
    %2120 = vmatpush2.msra.mxu0 0.0
    %2121 = vmatprep.subr.mxu0 0.0
    %2122 = vmatpush2.msra.mxu0 0.0
    %2123 = vmatprep.subr.mxu0 0.0
    %2124 = vmatpush2.msra.mxu0 0.0
    %2125 = vmatprep.subr.mxu0 0.0
    %2126 = vmatpush2.msra.mxu0 0.0
    %2127 = vmatprep.subr.mxu0 0.0
    %2128 = vmatpush2.msra.mxu0 0.0
    %2129 = vmatprep.subr.mxu0 0.0
    %2130 = vmatpush2.msra.mxu0 0.0
    %2131 = vmatprep.subr.mxu0 0.0
    %2132 = vmatpush2.msra.mxu0 0.0
    %2133 = vmatprep.subr.mxu0 0.0
    %2134 = vmatpush2.msra.mxu0 0.0
    %2135 = vmatprep.subr.mxu0 0.0
    %2136 = vmatpush2.msra.mxu0 0.0
    %2137 = vmatprep.mubr.f32.mxu0 0.0
    %2138 = vmatmul.mubr.f32.gmra.mxu0 %v2071
    %v2139 = vpop.f32.mrf.mxu0
    %v2140 = vadd.f32 %v2048, %v2139
    %v2141 = vpop.f32.mrf.mxu0
    %2142 = vdwg.mxu0
    %v2143 = vxor.u32 %v2140, 2147483648
    %v2144 = vmul.f32 %v2143, 1.442695
    %v2145 = vpow.pop %v2144
    %v2146 = vadd.f32 %v2145, 1.0
    %v2147 = vrcp.pop %v2146
    %v2148 = vmul.f32 1.0, %v2147
    %v2149 = vmul.f32 %v2148, 2.0
    %v2150 = vsub.f32 %v2149, 1.0
    %v2151 = vmul.f32 %v2148, %v1969
    %2153 = vrot.lane.b32.xlu0 %v2150, 64
    %v2154 = vpop.permute.xlu0 %2153
    %v2156 = vmul.f32 %v2148, %v2154
    %2158 = vrot.lane.b32.xlu0 %v2156, 32
    %v2159 = vpop.permute.xlu0 %2158
    %v2161 = vadd.f32 %v2151, %v2159
    %v2162 = vtanh.pop %v2161
    %2164 = vrot.lane.b32.xlu0 %v2162, 64
    %v2165 = vpop.permute.xlu0 %2164
    %v2167 = vmul.f32 %v2148, %v2165
    %2169 = vrot.lane.b32.xlu0 %v2167, 32
    %v2170 = vpop.permute.xlu0 %2169
    %v2171 = vsel %vm157, %v2170, 0
    %2173 = vmatprep.subr.mxu0 0.0
    %2174 = vmatpush1.msra.mxu0 0.0
    %2175 = vmatprep.subr.mxu0 0.0
    %2176 = vmatpush1.msra.mxu0 0.0
    %2177 = vmatprep.subr.mxu0 0.0
    %2178 = vmatpush1.msra.mxu0 0.0
    %2179 = vmatprep.subr.mxu0 0.0
    %2180 = vmatpush1.msra.mxu0 0.0
    %2181 = vmatprep.subr.mxu0 0.0
    %2182 = vmatpush1.msra.mxu0 0.0
    %2183 = vmatprep.subr.mxu0 0.0
    %2184 = vmatpush1.msra.mxu0 0.0
    %2185 = vmatprep.subr.mxu0 0.0
    %2186 = vmatpush1.msra.mxu0 0.0
    %2187 = vmatprep.subr.mxu0 0.0
    %2188 = vmatpush1.msra.mxu0 0.0
    %2189 = vmatprep.subr.mxu0 0.0
    %2190 = vmatpush1.msra.mxu0 0.0
    %2191 = vmatprep.subr.mxu0 0.0
    %2192 = vmatpush1.msra.mxu0 0.0
    %2193 = vmatprep.subr.mxu0 0.0
    %2194 = vmatpush1.msra.mxu0 0.0
    %2195 = vmatprep.subr.mxu0 0.0
    %2196 = vmatpush1.msra.mxu0 0.0
    %2197 = vmatprep.subr.mxu0 %v1021
    %2198 = vmatpush1.msra.mxu0 %v1020
    %2199 = vmatprep.subr.mxu0 %v1019
    %2200 = vmatpush1.msra.mxu0 %v1018
    %2201 = vmatprep.subr.mxu0 %v1017
    %2202 = vmatpush1.msra.mxu0 %v1016
    %2203 = vmatprep.subr.mxu0 %v1015
    %2204 = vmatpush1.msra.mxu0 %v1014
    %2205 = vmatprep.subr.mxu0 0.0
    %2206 = vmatpush2.msra.mxu0 0.0
    %2207 = vmatprep.subr.mxu0 0.0
    %2208 = vmatpush2.msra.mxu0 0.0
    %2209 = vmatprep.subr.mxu0 0.0
    %2210 = vmatpush2.msra.mxu0 0.0
    %2211 = vmatprep.subr.mxu0 0.0
    %2212 = vmatpush2.msra.mxu0 0.0
    %2213 = vmatprep.subr.mxu0 0.0
    %2214 = vmatpush2.msra.mxu0 0.0
    %2215 = vmatprep.subr.mxu0 0.0
    %2216 = vmatpush2.msra.mxu0 0.0
    %2217 = vmatprep.subr.mxu0 0.0
    %2218 = vmatpush2.msra.mxu0 0.0
    %2219 = vmatprep.subr.mxu0 0.0
    %2220 = vmatpush2.msra.mxu0 0.0
    %2221 = vmatprep.subr.mxu0 0.0
    %2222 = vmatpush2.msra.mxu0 0.0
    %2223 = vmatprep.subr.mxu0 0.0
    %2224 = vmatpush2.msra.mxu0 0.0
    %2225 = vmatprep.subr.mxu0 0.0
    %2226 = vmatpush2.msra.mxu0 0.0
    %2227 = vmatprep.subr.mxu0 0.0
    %2228 = vmatpush2.msra.mxu0 0.0
    %2229 = vmatprep.subr.mxu0 0.0
    %2230 = vmatpush2.msra.mxu0 0.0
    %2231 = vmatprep.subr.mxu0 0.0
    %2232 = vmatpush2.msra.mxu0 0.0
    %2233 = vmatprep.subr.mxu0 0.0
    %2234 = vmatpush2.msra.mxu0 0.0
    %2235 = vmatprep.subr.mxu0 0.0
    %2236 = vmatpush2.msra.mxu0 0.0
    %2237 = vmatprep.mubr.f32.mxu0 0.0
    %2238 = vmatmul.mubr.f32.gmra.mxu0 %v2171
    %v2239 = vpop.f32.mrf.mxu0
    %v2240 = vadd.f32 0.0, %v2239
    %v2241 = vpop.f32.mrf.mxu0
    %v2242 = vadd.f32 0.0, %v2241
    %2243 = vdwg.mxu0
    %v2244 = vadd.f32 %v2242, %v1022
    %v2245 = vsel %vm1284, %v2244, -inf
    %2246 = vmax.xlane.f32.xlu0 %v2245
    %v2247 = vpop.xlane.xlu0 %2246
    %vm2248 = vcmp.eq.f32.partialorder %v2244, %v2247
    %v2249 = vsel %vm2248, 1, 0
    %v2250 = vcvt.s32.f32 %v2249
    %v2251 = vsub.f32 %v2244, %v2247
    %v2252 = vmul.f32 %v2251, 1.442695
    %v2253 = vpow.pop %v2252
    %v2254 = vsel %vm1284, %v2253, 0.0
    %2255 = vadd.xlane.f32.xlu0 %v2254
    %v2256 = vpop.xlane.xlu0 %2255
    %v2257 = vlog2.pop %v2256
    %v2258 = vmul.f32 %v2257, 0.6931472
    %v2259 = vadd.f32 %v2247, %v2258
    %v2260 = vsub.f32 %v2244, %v2259
    %2261 = vst.msk [vmem:[#allocation8 + $0x5] sm:$0x1] %vm1284, %v2260
    %v2263 = vsel %vm79, %v2250, 0
    %2265 = vmatprep.subr.mxu0 0.0
    %2266 = vmatpush1.msra.mxu0 0.0
    %2267 = vmatprep.subr.mxu0 0.0
    %2268 = vmatpush1.msra.mxu0 0.0
    %2269 = vmatprep.subr.mxu0 0.0
    %2270 = vmatpush1.msra.mxu0 0.0
    %2271 = vmatprep.subr.mxu0 0.0
    %2272 = vmatpush1.msra.mxu0 0.0
    %2273 = vmatprep.subr.mxu0 0.0
    %2274 = vmatpush1.msra.mxu0 0.0
    %2275 = vmatprep.subr.mxu0 0.0
    %2276 = vmatpush1.msra.mxu0 0.0
    %2277 = vmatprep.subr.mxu0 0.0
    %2278 = vmatpush1.msra.mxu0 0.0
    %2279 = vmatprep.subr.mxu0 0.0
    %2280 = vmatpush1.msra.mxu0 0.0
    %2281 = vmatprep.subr.mxu0 0.0
    %2282 = vmatpush1.msra.mxu0 0.0
    %2283 = vmatprep.subr.mxu0 0.0
    %2284 = vmatpush1.msra.mxu0 0.0
    %2285 = vmatprep.subr.mxu0 0.0
    %2286 = vmatpush1.msra.mxu0 0.0
    %2287 = vmatprep.subr.mxu0 0.0
    %2288 = vmatpush1.msra.mxu0 0.0
    %2289 = vmatprep.subr.mxu0 0.0
    %2290 = vmatpush1.msra.mxu0 0.0
    %2291 = vmatprep.subr.mxu0 0.0
    %2292 = vmatpush1.msra.mxu0 0.0
    %2293 = vmatprep.subr.mxu0 0.0
    %2294 = vmatpush1.msra.mxu0 %v1013
    %2295 = vmatprep.subr.mxu0 0.0
    %2296 = vmatpush1.msra.mxu0 %v1012
    %2297 = vmatprep.subr.mxu0 0.0
    %2298 = vmatpush2.msra.mxu0 0.0
    %2299 = vmatprep.subr.mxu0 0.0
    %2300 = vmatpush2.msra.mxu0 0.0
    %2301 = vmatprep.subr.mxu0 0.0
    %2302 = vmatpush2.msra.mxu0 0.0
    %2303 = vmatprep.subr.mxu0 0.0
    %2304 = vmatpush2.msra.mxu0 0.0
    %2305 = vmatprep.subr.mxu0 0.0
    %2306 = vmatpush2.msra.mxu0 0.0
    %2307 = vmatprep.subr.mxu0 0.0
    %2308 = vmatpush2.msra.mxu0 0.0
    %2309 = vmatprep.subr.mxu0 0.0
    %2310 = vmatpush2.msra.mxu0 0.0
    %2311 = vmatprep.subr.mxu0 0.0
    %2312 = vmatpush2.msra.mxu0 0.0
    %2313 = vmatprep.subr.mxu0 0.0
    %2314 = vmatpush2.msra.mxu0 0.0
    %2315 = vmatprep.subr.mxu0 0.0
    %2316 = vmatpush2.msra.mxu0 0.0
    %2317 = vmatprep.subr.mxu0 0.0
    %2318 = vmatpush2.msra.mxu0 0.0
    %2319 = vmatprep.subr.mxu0 0.0
    %2320 = vmatpush2.msra.mxu0 0.0
    %2321 = vmatprep.subr.mxu0 0.0
    %2322 = vmatpush2.msra.mxu0 0.0
    %2323 = vmatprep.subr.mxu0 0.0
    %2324 = vmatpush2.msra.mxu0 0.0
    %2325 = vmatprep.subr.mxu0 0.0
    %2326 = vmatpush2.msra.mxu0 0.0
    %2327 = vmatprep.subr.mxu0 0.0
    %2328 = vmatpush2.msra.mxu0 0.0
    %2329 = vmatprep.mubr.f32.mxu0 0.0
    %2330 = vmatmul.mubr.f32.gmra.mxu0 %v2263
    %v2331 = vpop.f32.mrf.mxu0
    %v2332 = vadd.f32 %v2240, %v2331
    %v2333 = vpop.f32.mrf.mxu0
    %2334 = vdwg.mxu0
    %v2335 = vxor.u32 %v2332, 2147483648
    %v2336 = vmul.f32 %v2335, 1.442695
    %v2337 = vpow.pop %v2336
    %v2338 = vadd.f32 %v2337, 1.0
    %v2339 = vrcp.pop %v2338
    %v2340 = vmul.f32 1.0, %v2339
    %v2341 = vmul.f32 %v2340, 2.0
    %v2342 = vsub.f32 %v2341, 1.0
    %v2343 = vmul.f32 %v2340, %v2161
    %2345 = vrot.lane.b32.xlu0 %v2342, 64
    %v2346 = vpop.permute.xlu0 %2345
    %v2348 = vmul.f32 %v2340, %v2346
    %2350 = vrot.lane.b32.xlu0 %v2348, 32
    %v2351 = vpop.permute.xlu0 %2350
    %v2353 = vadd.f32 %v2343, %v2351
    %v2354 = vtanh.pop %v2353
    %2356 = vrot.lane.b32.xlu0 %v2354, 64
    %v2357 = vpop.permute.xlu0 %2356
    %v2359 = vmul.f32 %v2340, %v2357
    %2361 = vrot.lane.b32.xlu0 %v2359, 32
    %v2362 = vpop.permute.xlu0 %2361
    %v2363 = vsel %vm157, %v2362, 0
    %2365 = vmatprep.subr.mxu0 0.0
    %2366 = vmatpush1.msra.mxu0 0.0
    %2367 = vmatprep.subr.mxu0 0.0
    %2368 = vmatpush1.msra.mxu0 0.0
    %2369 = vmatprep.subr.mxu0 0.0
    %2370 = vmatpush1.msra.mxu0 0.0
    %2371 = vmatprep.subr.mxu0 0.0
    %2372 = vmatpush1.msra.mxu0 0.0
    %2373 = vmatprep.subr.mxu0 0.0
    %2374 = vmatpush1.msra.mxu0 0.0
    %2375 = vmatprep.subr.mxu0 0.0
    %2376 = vmatpush1.msra.mxu0 0.0
    %2377 = vmatprep.subr.mxu0 0.0
    %2378 = vmatpush1.msra.mxu0 0.0
    %2379 = vmatprep.subr.mxu0 0.0
    %2380 = vmatpush1.msra.mxu0 0.0
    %2381 = vmatprep.subr.mxu0 0.0
    %2382 = vmatpush1.msra.mxu0 0.0
    %2383 = vmatprep.subr.mxu0 0.0
    %2384 = vmatpush1.msra.mxu0 0.0
    %2385 = vmatprep.subr.mxu0 0.0
    %2386 = vmatpush1.msra.mxu0 0.0
    %2387 = vmatprep.subr.mxu0 0.0
    %2388 = vmatpush1.msra.mxu0 0.0
    %2389 = vmatprep.subr.mxu0 %v1021
    %2390 = vmatpush1.msra.mxu0 %v1020
    %2391 = vmatprep.subr.mxu0 %v1019
    %2392 = vmatpush1.msra.mxu0 %v1018
    %2393 = vmatprep.subr.mxu0 %v1017
    %2394 = vmatpush1.msra.mxu0 %v1016
    %2395 = vmatprep.subr.mxu0 %v1015
    %2396 = vmatpush1.msra.mxu0 %v1014
    %2397 = vmatprep.subr.mxu0 0.0
    %2398 = vmatpush2.msra.mxu0 0.0
    %2399 = vmatprep.subr.mxu0 0.0
    %2400 = vmatpush2.msra.mxu0 0.0
    %2401 = vmatprep.subr.mxu0 0.0
    %2402 = vmatpush2.msra.mxu0 0.0
    %2403 = vmatprep.subr.mxu0 0.0
    %2404 = vmatpush2.msra.mxu0 0.0
    %2405 = vmatprep.subr.mxu0 0.0
    %2406 = vmatpush2.msra.mxu0 0.0
    %2407 = vmatprep.subr.mxu0 0.0
    %2408 = vmatpush2.msra.mxu0 0.0
    %2409 = vmatprep.subr.mxu0 0.0
    %2410 = vmatpush2.msra.mxu0 0.0
    %2411 = vmatprep.subr.mxu0 0.0
    %2412 = vmatpush2.msra.mxu0 0.0
    %2413 = vmatprep.subr.mxu0 0.0
    %2414 = vmatpush2.msra.mxu0 0.0
    %2415 = vmatprep.subr.mxu0 0.0
    %2416 = vmatpush2.msra.mxu0 0.0
    %2417 = vmatprep.subr.mxu0 0.0
    %2418 = vmatpush2.msra.mxu0 0.0
    %2419 = vmatprep.subr.mxu0 0.0
    %2420 = vmatpush2.msra.mxu0 0.0
    %2421 = vmatprep.subr.mxu0 0.0
    %2422 = vmatpush2.msra.mxu0 0.0
    %2423 = vmatprep.subr.mxu0 0.0
    %2424 = vmatpush2.msra.mxu0 0.0
    %2425 = vmatprep.subr.mxu0 0.0
    %2426 = vmatpush2.msra.mxu0 0.0
    %2427 = vmatprep.subr.mxu0 0.0
    %2428 = vmatpush2.msra.mxu0 0.0
    %2429 = vmatprep.mubr.f32.mxu0 0.0
    %2430 = vmatmul.mubr.f32.gmra.mxu0 %v2363
    %v2431 = vpop.f32.mrf.mxu0
    %v2432 = vadd.f32 0.0, %v2431
    %v2433 = vpop.f32.mrf.mxu0
    %v2434 = vadd.f32 0.0, %v2433
    %2435 = vdwg.mxu0
    %v2436 = vadd.f32 %v2434, %v1022
    %v2437 = vsel %vm1284, %v2436, -inf
    %2438 = vmax.xlane.f32.xlu0 %v2437
    %v2439 = vpop.xlane.xlu0 %2438
    %vm2440 = vcmp.eq.f32.partialorder %v2436, %v2439
    %v2441 = vsel %vm2440, 1, 0
    %v2442 = vcvt.s32.f32 %v2441
    %v2443 = vsub.f32 %v2436, %v2439
    %v2444 = vmul.f32 %v2443, 1.442695
    %v2445 = vpow.pop %v2444
    %v2446 = vsel %vm1284, %v2445, 0.0
    %2447 = vadd.xlane.f32.xlu0 %v2446
    %v2448 = vpop.xlane.xlu0 %2447
    %v2449 = vlog2.pop %v2448
    %v2450 = vmul.f32 %v2449, 0.6931472
    %v2451 = vadd.f32 %v2439, %v2450
    %v2452 = vsub.f32 %v2436, %v2451
    %2453 = vst.msk [vmem:[#allocation8 + $0x6] sm:$0x1] %vm1284, %v2452
    %v2455 = vsel %vm79, %v2442, 0
    %2457 = vmatprep.subr.mxu0 0.0
    %2458 = vmatpush1.msra.mxu0 0.0
    %2459 = vmatprep.subr.mxu0 0.0
    %2460 = vmatpush1.msra.mxu0 0.0
    %2461 = vmatprep.subr.mxu0 0.0
    %2462 = vmatpush1.msra.mxu0 0.0
    %2463 = vmatprep.subr.mxu0 0.0
    %2464 = vmatpush1.msra.mxu0 0.0
    %2465 = vmatprep.subr.mxu0 0.0
    %2466 = vmatpush1.msra.mxu0 0.0
    %2467 = vmatprep.subr.mxu0 0.0
    %2468 = vmatpush1.msra.mxu0 0.0
    %2469 = vmatprep.subr.mxu0 0.0
    %2470 = vmatpush1.msra.mxu0 0.0
    %2471 = vmatprep.subr.mxu0 0.0
    %2472 = vmatpush1.msra.mxu0 0.0
    %2473 = vmatprep.subr.mxu0 0.0
    %2474 = vmatpush1.msra.mxu0 0.0
    %2475 = vmatprep.subr.mxu0 0.0
    %2476 = vmatpush1.msra.mxu0 0.0
    %2477 = vmatprep.subr.mxu0 0.0
    %2478 = vmatpush1.msra.mxu0 0.0
    %2479 = vmatprep.subr.mxu0 0.0
    %2480 = vmatpush1.msra.mxu0 0.0
    %2481 = vmatprep.subr.mxu0 0.0
    %2482 = vmatpush1.msra.mxu0 0.0
    %2483 = vmatprep.subr.mxu0 0.0
    %2484 = vmatpush1.msra.mxu0 0.0
    %2485 = vmatprep.subr.mxu0 0.0
    %2486 = vmatpush1.msra.mxu0 %v1013
    %2487 = vmatprep.subr.mxu0 0.0
    %2488 = vmatpush1.msra.mxu0 %v1012
    %2489 = vmatprep.subr.mxu0 0.0
    %2490 = vmatpush2.msra.mxu0 0.0
    %2491 = vmatprep.subr.mxu0 0.0
    %2492 = vmatpush2.msra.mxu0 0.0
    %2493 = vmatprep.subr.mxu0 0.0
    %2494 = vmatpush2.msra.mxu0 0.0
    %2495 = vmatprep.subr.mxu0 0.0
    %2496 = vmatpush2.msra.mxu0 0.0
    %2497 = vmatprep.subr.mxu0 0.0
    %2498 = vmatpush2.msra.mxu0 0.0
    %2499 = vmatprep.subr.mxu0 0.0
    %2500 = vmatpush2.msra.mxu0 0.0
    %2501 = vmatprep.subr.mxu0 0.0
    %2502 = vmatpush2.msra.mxu0 0.0
    %2503 = vmatprep.subr.mxu0 0.0
    %2504 = vmatpush2.msra.mxu0 0.0
    %2505 = vmatprep.subr.mxu0 0.0
    %2506 = vmatpush2.msra.mxu0 0.0
    %2507 = vmatprep.subr.mxu0 0.0
    %2508 = vmatpush2.msra.mxu0 0.0
    %2509 = vmatprep.subr.mxu0 0.0
    %2510 = vmatpush2.msra.mxu0 0.0
    %2511 = vmatprep.subr.mxu0 0.0
    %2512 = vmatpush2.msra.mxu0 0.0
    %2513 = vmatprep.subr.mxu0 0.0
    %2514 = vmatpush2.msra.mxu0 0.0
    %2515 = vmatprep.subr.mxu0 0.0
    %2516 = vmatpush2.msra.mxu0 0.0
    %2517 = vmatprep.subr.mxu0 0.0
    %2518 = vmatpush2.msra.mxu0 0.0
    %2519 = vmatprep.subr.mxu0 0.0
    %2520 = vmatpush2.msra.mxu0 0.0
    %2521 = vmatprep.mubr.f32.mxu0 0.0
    %2522 = vmatmul.mubr.f32.gmra.mxu0 %v2455
    %v2523 = vpop.f32.mrf.mxu0
    %v2524 = vadd.f32 %v2432, %v2523
    %v2525 = vpop.f32.mrf.mxu0
    %2526 = vdwg.mxu0
    %v2527 = vxor.u32 %v2524, 2147483648
    %v2528 = vmul.f32 %v2527, 1.442695
    %v2529 = vpow.pop %v2528
    %v2530 = vadd.f32 %v2529, 1.0
    %v2531 = vrcp.pop %v2530
    %v2532 = vmul.f32 1.0, %v2531
    %v2533 = vmul.f32 %v2532, 2.0
    %v2534 = vsub.f32 %v2533, 1.0
    %v2535 = vmul.f32 %v2532, %v2353
    %2537 = vrot.lane.b32.xlu0 %v2534, 64
    %v2538 = vpop.permute.xlu0 %2537
    %v2540 = vmul.f32 %v2532, %v2538
    %2542 = vrot.lane.b32.xlu0 %v2540, 32
    %v2543 = vpop.permute.xlu0 %2542
    %v2545 = vadd.f32 %v2535, %v2543
    %v2546 = vtanh.pop %v2545
    %2548 = vrot.lane.b32.xlu0 %v2546, 64
    %v2549 = vpop.permute.xlu0 %2548
    %v2551 = vmul.f32 %v2532, %v2549
    %2553 = vrot.lane.b32.xlu0 %v2551, 32
    %v2554 = vpop.permute.xlu0 %2553
    %v2555 = vsel %vm157, %v2554, 0
    %2557 = vmatprep.subr.mxu0 0.0
    %2558 = vmatpush1.msra.mxu0 0.0
    %2559 = vmatprep.subr.mxu0 0.0
    %2560 = vmatpush1.msra.mxu0 0.0
    %2561 = vmatprep.subr.mxu0 0.0
    %2562 = vmatpush1.msra.mxu0 0.0
    %2563 = vmatprep.subr.mxu0 0.0
    %2564 = vmatpush1.msra.mxu0 0.0
    %2565 = vmatprep.subr.mxu0 0.0
    %2566 = vmatpush1.msra.mxu0 0.0
    %2567 = vmatprep.subr.mxu0 0.0
    %2568 = vmatpush1.msra.mxu0 0.0
    %2569 = vmatprep.subr.mxu0 0.0
    %2570 = vmatpush1.msra.mxu0 0.0
    %2571 = vmatprep.subr.mxu0 0.0
    %2572 = vmatpush1.msra.mxu0 0.0
    %2573 = vmatprep.subr.mxu0 0.0
    %2574 = vmatpush1.msra.mxu0 0.0
    %2575 = vmatprep.subr.mxu0 0.0
    %2576 = vmatpush1.msra.mxu0 0.0
    %2577 = vmatprep.subr.mxu0 0.0
    %2578 = vmatpush1.msra.mxu0 0.0
    %2579 = vmatprep.subr.mxu0 0.0
    %2580 = vmatpush1.msra.mxu0 0.0
    %2581 = vmatprep.subr.mxu0 %v1021
    %2582 = vmatpush1.msra.mxu0 %v1020
    %2583 = vmatprep.subr.mxu0 %v1019
    %2584 = vmatpush1.msra.mxu0 %v1018
    %2585 = vmatprep.subr.mxu0 %v1017
    %2586 = vmatpush1.msra.mxu0 %v1016
    %2587 = vmatprep.subr.mxu0 %v1015
    %2588 = vmatpush1.msra.mxu0 %v1014
    %2589 = vmatprep.subr.mxu0 0.0
    %2590 = vmatpush2.msra.mxu0 0.0
    %2591 = vmatprep.subr.mxu0 0.0
    %2592 = vmatpush2.msra.mxu0 0.0
    %2593 = vmatprep.subr.mxu0 0.0
    %2594 = vmatpush2.msra.mxu0 0.0
    %2595 = vmatprep.subr.mxu0 0.0
    %2596 = vmatpush2.msra.mxu0 0.0
    %2597 = vmatprep.subr.mxu0 0.0
    %2598 = vmatpush2.msra.mxu0 0.0
    %2599 = vmatprep.subr.mxu0 0.0
    %2600 = vmatpush2.msra.mxu0 0.0
    %2601 = vmatprep.subr.mxu0 0.0
    %2602 = vmatpush2.msra.mxu0 0.0
    %2603 = vmatprep.subr.mxu0 0.0
    %2604 = vmatpush2.msra.mxu0 0.0
    %2605 = vmatprep.subr.mxu0 0.0
    %2606 = vmatpush2.msra.mxu0 0.0
    %2607 = vmatprep.subr.mxu0 0.0
    %2608 = vmatpush2.msra.mxu0 0.0
    %2609 = vmatprep.subr.mxu0 0.0
    %2610 = vmatpush2.msra.mxu0 0.0
    %2611 = vmatprep.subr.mxu0 0.0
    %2612 = vmatpush2.msra.mxu0 0.0
    %2613 = vmatprep.subr.mxu0 0.0
    %2614 = vmatpush2.msra.mxu0 0.0
    %2615 = vmatprep.subr.mxu0 0.0
    %2616 = vmatpush2.msra.mxu0 0.0
    %2617 = vmatprep.subr.mxu0 0.0
    %2618 = vmatpush2.msra.mxu0 0.0
    %2619 = vmatprep.subr.mxu0 0.0
    %2620 = vmatpush2.msra.mxu0 0.0
    %2621 = vmatprep.mubr.f32.mxu0 0.0
    %2622 = vmatmul.mubr.f32.gmra.mxu0 %v2555
    %v2623 = vpop.f32.mrf.mxu0
    %v2624 = vpop.f32.mrf.mxu0
    %v2625 = vadd.f32 0.0, %v2624
    %2626 = vdwg.mxu0
    %v2627 = vadd.f32 %v2625, %v1022
    %v2628 = vsel %vm1284, %v2627, -inf
    %2629 = vmax.xlane.f32.xlu0 %v2628
    %v2630 = vpop.xlane.xlu0 %2629
    %v2631 = vsub.f32 %v2627, %v2630
    %v2632 = vmul.f32 %v2631, 1.442695
    %v2633 = vpow.pop %v2632
    %v2634 = vsel %vm1284, %v2633, 0.0
    %2635 = vadd.xlane.f32.xlu0 %v2634
    %v2636 = vpop.xlane.xlu0 %2635
    %v2637 = vlog2.pop %v2636
    %v2638 = vmul.f32 %v2637, 0.6931472
    %v2639 = vadd.f32 %v2630, %v2638
    %v2640 = vsub.f32 %v2627, %v2639
    %2641 = vst.msk [vmem:[#allocation8 + $0x7] sm:$0x1] %vm1284, %v2640
    // Predicated region
    $region42: #{seq2seq_forward.1} parent=1 // pred_check
      _
    $region43: #{seq2seq_forward.1} parent=1 // pred_check_branch
      %2643 = sbr.rel (0) target = $region45
    $region44: #{seq2seq_forward.1} parent=1 // pred_region
      %s2645 = ssub.s32 128, 128
      %2646 = vsyncadd [#allocation4], %s2645
      %s2648 = sshll.u32 [#allocation8], 4
      %s2649 = int_to_ptr.vmem [resolvable:$true] %s2648
      %2651 = dma.vmem_to_hbm [thread:$0]  %s2649, 128, %s7, [#allocation4]
    $region45: #{seq2seq_forward.1} parent=1 // pred_fallthru
      _
    // Predicated region
    $region46: #{seq2seq_forward.1} parent=1 // pred_check
      _
    $region47: #{seq2seq_forward.1} parent=1 // pred_check_branch
      %2653 = sbr.rel (0) target = $region49
    $region48: #{seq2seq_forward.1} parent=1 // pred_region
      %2654 = dma.done [#allocation4], 128
    $region49: #{seq2seq_forward.1} parent=1 // pred_fallthru
      _
    %2655 = vsyncpa [#allocation3], 1
    %2656 = vsyncpa [#allocation6], 1
    %2657 = vsyncpa [#allocation4], 1

</llo_original>
